<compile_context>
chip_gen: v5e
topology: v5e:2x2
jax: 0.10.0
libtpu: 0.0.40
codegen_flags: <defaults>
</compile_context>

<pallas_src>
import jax
import jax.numpy as jnp
import numpy as np
from jax.experimental import pallas as pl
from jax.experimental.pallas import tpu as pltpu


def autoencoder_forward(x, edge_index, params):
    """x: (num_nodes, num_channels, seq_len), exactly like the PyTorch module.

    Returns the reconstructed tensor of shape (num_nodes, num_channels, seq_len).
    """
    del edge_index  # K_cheb == 1: ChebConv K=1 is a plain Linear; graph unused.
    N, C_in, T = x.shape
    D = params["ewh"].shape[0]        # conv_dim (hidden size of both GConvLSTMs)
    C_out = params["dw2"].shape[1]    # num_channels (reconstruction width)
    TN = T * N

    # Time-major, flattened to rows:  row index = t*N + n.
    x_flat = jnp.transpose(x, (2, 0, 1)).reshape(TN, C_in)

    def kernel(x_ref,
               ewx_ref, ewh_ref, eb_ref, epeep_ref,
               ebn_s_ref, ebn_b_ref, ew1_ref, eb1_ref, ew2_ref, eb2_ref,
               dwx_ref, dwh_ref, db_ref, dpeep_ref,
               dbn_s_ref, dbn_b_ref, dw1_ref, db1_ref, dw2_ref, db2_ref,
               out_ref,
               gxe_ref, gxd_ref, henc_ref, hdec_ref):

        def lstm_unrolled(gx_ref, wh, b, peep, h_slab_ref):
            """GConvLSTM recurrence; input projection `gx_ref` precomputed."""
            # Loop-invariant peephole rows hoisted out of the unrolled loop.
            wp_i = peep[0:1, :]
            wp_f = peep[1:2, :]
            wp_o = peep[2:3, :]
            h = jnp.zeros((N, D), jnp.float32)
            c = jnp.zeros((N, D), jnp.float32)
            for t in range(T):  # static -> fully unrolled, static slice offsets
                gates = (gx_ref[t * N:(t + 1) * N, :]
                         + jnp.dot(h, wh, preferred_element_type=jnp.float32)
                         + b)                               # (N, 4D) fused gates
                g_i = gates[:, 0 * D:1 * D]
                g_f = gates[:, 1 * D:2 * D]
                g_c = gates[:, 2 * D:3 * D]
                g_o = gates[:, 3 * D:4 * D]
                i_g = jax.nn.sigmoid(g_i + wp_i * c)
                f_g = jax.nn.sigmoid(g_f + wp_f * c)
                t_g = jnp.tanh(g_c)
                c = f_g * c + i_g * t_g
                o_g = jax.nn.sigmoid(g_o + wp_o * c)
                h = o_g * jnp.tanh(c)
                h_slab_ref[t * N:(t + 1) * N, :] = h        # stage to VMEM slab

        def head(h_slab, bn_s, bn_b, w1, b1, w2, b2):
            # tanh -> eval-mode BatchNorm1d (folded affine) -> dropout(identity)
            # -> Linear -> ReLU -> Linear, batched over all T*N rows at once.
            a = jnp.tanh(h_slab) * bn_s + bn_b
            z = jnp.maximum(
                jnp.dot(a, w1, preferred_element_type=jnp.float32) + b1, 0.0)
            return jnp.dot(z, w2, preferred_element_type=jnp.float32) + b2

        # ---------------- Encoder ----------------
        gxe_ref[...] = jnp.dot(x_ref[...], ewx_ref[...],
                               preferred_element_type=jnp.float32)   # (TN, 4D)
        lstm_unrolled(gxe_ref, ewh_ref[...], eb_ref[...], epeep_ref[...],
                      henc_ref)
        h_lat = head(henc_ref[...], ebn_s_ref[...], ebn_b_ref[...],
                     ew1_ref[...], eb1_ref[...], ew2_ref[...], eb2_ref[...])

        # ---------------- Decoder ----------------
        gxd_ref[...] = jnp.dot(h_lat, dwx_ref[...],
                               preferred_element_type=jnp.float32)   # (TN, 4D)
        lstm_unrolled(gxd_ref, dwh_ref[...], db_ref[...], dpeep_ref[...],
                      hdec_ref)
        y = head(hdec_ref[...], dbn_s_ref[...], dbn_b_ref[...],
                 dw1_ref[...], db1_ref[...], dw2_ref[...], db2_ref[...])
        out_ref[...] = jax.nn.sigmoid(y).astype(out_ref.dtype)

    out_flat = pl.pallas_call(
        kernel,
        out_shape=jax.ShapeDtypeStruct((TN, C_out), jnp.float32),
        scratch_shapes=[
            pltpu.VMEM((TN, 4 * D), jnp.float32),   # encoder input projection
            pltpu.VMEM((TN, 4 * D), jnp.float32),   # decoder input projection
            pltpu.VMEM((TN, D), jnp.float32),       # encoder hidden-state slab
            pltpu.VMEM((TN, D), jnp.float32),       # decoder hidden-state slab
        ],
    )(x_flat,
      params["ewx"], params["ewh"], params["eb"], params["epeep"],
      params["ebn_scale"], params["ebn_shift"],
      params["ew1"], params["eb1"], params["ew2"], params["eb2"],
      params["dwx"], params["dwh"], params["db"], params["dpeep"],
      params["dbn_scale"], params["dbn_shift"],
      params["dw1"], params["db1"], params["dw2"], params["db2"])

    # (T*N, C) -> (T, N, C) -> (N, C, T)  : matches the PyTorch output layout.
    return jnp.transpose(out_flat.reshape(T, N, C_out), (1, 2, 0))


def autoencoder_ref(x, params):
    """Pure-JAX reference of the same forward semantics (for verification)."""
    N, C_in, T = x.shape
    D = params["ewh"].shape[0]

    def run_lstm(x_tm, wx, wh, b, peep):
        def step(carry, x_t):
            h, c = carry
            gates = x_t @ wx + h @ wh + b
            g_i, g_f, g_c, g_o = jnp.split(gates, 4, axis=-1)
            i = jax.nn.sigmoid(g_i + peep[0] * c)
            f = jax.nn.sigmoid(g_f + peep[1] * c)
            g = jnp.tanh(g_c)
            c = f * c + i * g
            o = jax.nn.sigmoid(g_o + peep[2] * c)
            h = o * jnp.tanh(c)
            return (h, c), h
        init = (jnp.zeros((N, D), jnp.float32), jnp.zeros((N, D), jnp.float32))
        _, H = jax.lax.scan(step, init, x_tm)
        return H                                            # (T, N, D)

    x_tm = jnp.transpose(x, (2, 0, 1))                      # (T, N, C_in)
    h_enc = run_lstm(x_tm, params["ewx"], params["ewh"], params["eb"],
                     params["epeep"])
    a = jnp.tanh(h_enc) * params["ebn_scale"] + params["ebn_shift"]
    z = jnp.maximum(a @ params["ew1"] + params["eb1"], 0.0)
    h_lat = z @ params["ew2"] + params["eb2"]               # (T, N, linear_dim)

    h_dec = run_lstm(h_lat, params["dwx"], params["dwh"], params["db"],
                     params["dpeep"])
    a2 = jnp.tanh(h_dec) * params["dbn_scale"] + params["dbn_shift"]
    z2 = jnp.maximum(a2 @ params["dw1"] + params["db1"], 0.0)
    y = jax.nn.sigmoid(z2 @ params["dw2"] + params["db2"])  # (T, N, num_channels)
    return jnp.transpose(y, (1, 2, 0))                      # (N, num_channels, T)


if __name__ == "__main__":
    # Shapes consistent with the module: x is (num_nodes, num_channels, seq_len).
    N, C_in, T = 16, 4, 8
    conv_dim, linear_dim = 32, 16
    enc_hidden = (conv_dim + linear_dim) // 2   # 24
    dec_hidden = (conv_dim + C_in) // 2         # 18

    key = jax.random.PRNGKey(0)
    keys = jax.random.split(key, 32)
    s = 0.1

    def bn_fold(k0, k1, k2, k3, dim):
        # Eval-mode BatchNorm1d folded into per-feature affine scale/shift.
        gamma = 1.0 + 0.1 * jax.random.normal(k0, (dim,), jnp.float32)
        beta = 0.1 * jax.random.normal(k1, (dim,), jnp.float32)
        mean = 0.1 * jax.random.normal(k2, (dim,), jnp.float32)
        var = jnp.abs(1.0 + 0.1 * jax.random.normal(k3, (dim,), jnp.float32))
        scale = gamma / jnp.sqrt(var + 1e-5)
        return scale.reshape(1, dim), (beta - mean * scale).reshape(1, dim)

    ebn_scale, ebn_shift = bn_fold(keys[20], keys[21], keys[22], keys[23], conv_dim)
    dbn_scale, dbn_shift = bn_fold(keys[24], keys[25], keys[26], keys[27], conv_dim)

    params = {
        # Encoder GConvLSTM (K=1): conv_x_* -> Wx, conv_h_* -> Wh, biases fused.
        "ewx": s * jax.random.normal(keys[0], (C_in, 4 * conv_dim), jnp.float32),
        "ewh": s * jax.random.normal(keys[1], (conv_dim, 4 * conv_dim), jnp.float32),
        "eb": s * jax.random.normal(keys[2], (1, 4 * conv_dim), jnp.float32),
        "epeep": s * jax.random.normal(keys[3], (3, conv_dim), jnp.float32),
        "ebn_scale": ebn_scale, "ebn_shift": ebn_shift,
        # Encoder head: Linear(conv_dim, 24) -> ReLU -> Linear(24, linear_dim)
        "ew1": s * jax.random.normal(keys[4], (conv_dim, enc_hidden), jnp.float32),
        "eb1": s * jax.random.normal(keys[5], (1, enc_hidden), jnp.float32),
        "ew2": s * jax.random.normal(keys[6], (enc_hidden, linear_dim), jnp.float32),
        "eb2": s * jax.random.normal(keys[7], (1, linear_dim), jnp.float32),
        # Decoder GConvLSTM (K=1): in=linear_dim, out=conv_dim.
        "dwx": s * jax.random.normal(keys[8], (linear_dim, 4 * conv_dim), jnp.float32),
        "dwh": s * jax.random.normal(keys[9], (conv_dim, 4 * conv_dim), jnp.float32),
        "db": s * jax.random.normal(keys[10], (1, 4 * conv_dim), jnp.float32),
        "dpeep": s * jax.random.normal(keys[11], (3, conv_dim), jnp.float32),
        "dbn_scale": dbn_scale, "dbn_shift": dbn_shift,
        # Decoder head: Linear(conv_dim, 18) -> ReLU -> Linear(18, num_channels)
        "dw1": s * jax.random.normal(keys[12], (conv_dim, dec_hidden), jnp.float32),
        "db1": s * jax.random.normal(keys[13], (1, dec_hidden), jnp.float32),
        "dw2": s * jax.random.normal(keys[14], (dec_hidden, C_in), jnp.float32),
        "db2": s * jax.random.normal(keys[15], (1, C_in), jnp.float32),
    }

    x = jax.random.normal(keys[16], (N, C_in, T), jnp.float32)
    edge_index = jnp.stack([jnp.arange(N), (jnp.arange(N) + 1) % N])  # unused (K=1)

    out = autoencoder_forward(x, edge_index, params)
    out = jax.block_until_ready(out)

    ref = autoencoder_ref(x, params)
    assert out.shape == (N, C_in, T), out.shape
    np.testing.assert_allclose(np.asarray(out), np.asarray(ref), rtol=5e-5, atol=5e-5)
    print("KERNEL_OK")
</pallas_src>

<mosaic_0001>
module attributes {stable_mosaic.version = 11 : i64} {
  func.func @kernel(%arg0: memref<128x4xf32, #tpu.memory_space<vmem>>, %arg1: memref<4x128xf32, #tpu.memory_space<vmem>>, %arg2: memref<32x128xf32, #tpu.memory_space<vmem>>, %arg3: memref<1x128xf32, #tpu.memory_space<vmem>>, %arg4: memref<3x32xf32, #tpu.memory_space<vmem>>, %arg5: memref<1x32xf32, #tpu.memory_space<vmem>>, %arg6: memref<1x32xf32, #tpu.memory_space<vmem>>, %arg7: memref<32x24xf32, #tpu.memory_space<vmem>>, %arg8: memref<1x24xf32, #tpu.memory_space<vmem>>, %arg9: memref<24x16xf32, #tpu.memory_space<vmem>>, %arg10: memref<1x16xf32, #tpu.memory_space<vmem>>, %arg11: memref<16x128xf32, #tpu.memory_space<vmem>>, %arg12: memref<32x128xf32, #tpu.memory_space<vmem>>, %arg13: memref<1x128xf32, #tpu.memory_space<vmem>>, %arg14: memref<3x32xf32, #tpu.memory_space<vmem>>, %arg15: memref<1x32xf32, #tpu.memory_space<vmem>>, %arg16: memref<1x32xf32, #tpu.memory_space<vmem>>, %arg17: memref<32x18xf32, #tpu.memory_space<vmem>>, %arg18: memref<1x18xf32, #tpu.memory_space<vmem>>, %arg19: memref<18x4xf32, #tpu.memory_space<vmem>>, %arg20: memref<1x4xf32, #tpu.memory_space<vmem>>, %arg21: memref<128x4xf32, #tpu.memory_space<vmem>>, %arg22: memref<128x128xf32, #tpu.memory_space<vmem>>, %arg23: memref<128x128xf32, #tpu.memory_space<vmem>>, %arg24: memref<128x32xf32, #tpu.memory_space<vmem>>, %arg25: memref<128x32xf32, #tpu.memory_space<vmem>>) attributes {dimension_semantics = [], scalar_prefetch = 0 : i64, scratch_operands = 4 : i64, tpu.core_type = #tpu.core_type<tc>} {
    %c0 = arith.constant 0 : index
    %c0_0 = arith.constant 0 : index
    %0 = vector.load %arg0[%c0, %c0_0] : memref<128x4xf32, #tpu.memory_space<vmem>>, vector<128x4xf32>
    %c0_1 = arith.constant 0 : index
    %c0_2 = arith.constant 0 : index
    %1 = vector.load %arg1[%c0_1, %c0_2] : memref<4x128xf32, #tpu.memory_space<vmem>>, vector<4x128xf32>
    %cst = arith.constant dense<0.000000e+00> : vector<128x128xf32>
    %2 = tpu.matmul %0, %1, %cst {dimension_numbers = #tpu.dot_dimension_numbers<[1], [0], [0], [1], [0, 0, 1, 1], [], []>} : vector<128x4xf32>, vector<4x128xf32>, vector<128x128xf32> -> vector<128x128xf32>
    %c0_3 = arith.constant 0 : index
    %c0_4 = arith.constant 0 : index
    %3 = vector.load %arg22[%c0_3, %c0_4] : memref<128x128xf32, #tpu.memory_space<vmem>>, vector<128x128xf32>
    tpu.vector_store %arg22[%c0_3, %c0_4], %2 {strides = array<i32>} : memref<128x128xf32, #tpu.memory_space<vmem>>, vector<128x128xf32>,
    %c0_5 = arith.constant 0 : index
    %c0_6 = arith.constant 0 : index
    %4 = vector.load %arg2[%c0_5, %c0_6] : memref<32x128xf32, #tpu.memory_space<vmem>>, vector<32x128xf32>
    %c0_7 = arith.constant 0 : index
    %c0_8 = arith.constant 0 : index
    %5 = vector.load %arg3[%c0_7, %c0_8] : memref<1x128xf32, #tpu.memory_space<vmem>>, vector<1x128xf32>
    %c0_9 = arith.constant 0 : index
    %c0_10 = arith.constant 0 : index
    %6 = vector.load %arg4[%c0_9, %c0_10] : memref<3x32xf32, #tpu.memory_space<vmem>>, vector<3x32xf32>
    %7 = vector.extract_strided_slice %6 {offsets = [0, 0], sizes = [1, 32], strides = [1, 1]} : vector<3x32xf32> to vector<1x32xf32>
    %8 = vector.extract_strided_slice %6 {offsets = [1, 0], sizes = [1, 32], strides = [1, 1]} : vector<3x32xf32> to vector<1x32xf32>
    %9 = vector.extract_strided_slice %6 {offsets = [2, 0], sizes = [1, 32], strides = [1, 1]} : vector<3x32xf32> to vector<1x32xf32>
    %cst_11 = arith.constant 0.000000e+00 : f32
    %10 = vector.broadcast %cst_11 : f32 to vector<16x32xf32>
    %cst_12 = arith.constant 0.000000e+00 : f32
    %11 = vector.broadcast %cst_12 : f32 to vector<16x32xf32>
    %c0_13 = arith.constant 0 : index
    %c0_14 = arith.constant 0 : index
    %12 = vector.load %arg22[%c0_13, %c0_14] : memref<128x128xf32, #tpu.memory_space<vmem>>, vector<16x128xf32>
    %cst_15 = arith.constant dense<0.000000e+00> : vector<16x128xf32>
    %13 = tpu.matmul %10, %4, %cst_15 {dimension_numbers = #tpu.dot_dimension_numbers<[1], [0], [0], [1], [0, 0, 1, 1], [], []>} : vector<16x32xf32>, vector<32x128xf32>, vector<16x128xf32> -> vector<16x128xf32>
    %14 = arith.addf %12, %13 : vector<16x128xf32>
    %15 = vector.broadcast %5 : vector<1x128xf32> to vector<16x128xf32>
    %16 = arith.addf %14, %15 : vector<16x128xf32>
    %17 = vector.extract_strided_slice %16 {offsets = [0, 0], sizes = [16, 32], strides = [1, 1]} : vector<16x128xf32> to vector<16x32xf32>
    %18 = vector.extract_strided_slice %16 {offsets = [0, 32], sizes = [16, 32], strides = [1, 1]} : vector<16x128xf32> to vector<16x32xf32>
    %19 = vector.extract_strided_slice %16 {offsets = [0, 64], sizes = [16, 32], strides = [1, 1]} : vector<16x128xf32> to vector<16x32xf32>
    %20 = vector.extract_strided_slice %16 {offsets = [0, 96], sizes = [16, 32], strides = [1, 1]} : vector<16x128xf32> to vector<16x32xf32>
    %21 = vector.broadcast %7 : vector<1x32xf32> to vector<16x32xf32>
    %22 = arith.mulf %21, %11 : vector<16x32xf32>
    %23 = arith.addf %17, %22 : vector<16x32xf32>
    %24 = arith.negf %23 : vector<16x32xf32>
    %25 = math.exp %24 : vector<16x32xf32>
    %cst_16 = arith.constant 1.000000e+00 : f32
    %26 = vector.broadcast %cst_16 : f32 to vector<16x32xf32>
    %27 = arith.addf %26, %25 : vector<16x32xf32>
    %28 = arith.divf %26, %27 : vector<16x32xf32>
    %29 = vector.broadcast %8 : vector<1x32xf32> to vector<16x32xf32>
    %30 = arith.mulf %29, %11 : vector<16x32xf32>
    %31 = arith.addf %18, %30 : vector<16x32xf32>
    %32 = arith.negf %31 : vector<16x32xf32>
    %33 = math.exp %32 : vector<16x32xf32>
    %cst_17 = arith.constant 1.000000e+00 : f32
    %34 = vector.broadcast %cst_17 : f32 to vector<16x32xf32>
    %35 = arith.addf %34, %33 : vector<16x32xf32>
    %36 = arith.divf %34, %35 : vector<16x32xf32>
    %37 = math.tanh %19 : vector<16x32xf32>
    %38 = arith.mulf %36, %11 : vector<16x32xf32>
    %39 = arith.mulf %28, %37 : vector<16x32xf32>
    %40 = arith.addf %38, %39 : vector<16x32xf32>
    %41 = vector.broadcast %9 : vector<1x32xf32> to vector<16x32xf32>
    %42 = arith.mulf %41, %40 : vector<16x32xf32>
    %43 = arith.addf %20, %42 : vector<16x32xf32>
    %44 = arith.negf %43 : vector<16x32xf32>
    %45 = math.exp %44 : vector<16x32xf32>
    %cst_18 = arith.constant 1.000000e+00 : f32
    %46 = vector.broadcast %cst_18 : f32 to vector<16x32xf32>
    %47 = arith.addf %46, %45 : vector<16x32xf32>
    %48 = arith.divf %46, %47 : vector<16x32xf32>
    %49 = math.tanh %40 : vector<16x32xf32>
    %50 = arith.mulf %48, %49 : vector<16x32xf32>
    %c0_19 = arith.constant 0 : index
    %c0_20 = arith.constant 0 : index
    %51 = vector.load %arg24[%c0_19, %c0_20] : memref<128x32xf32, #tpu.memory_space<vmem>>, vector<16x32xf32>
    tpu.vector_store %arg24[%c0_19, %c0_20], %50 {strides = array<i32>} : memref<128x32xf32, #tpu.memory_space<vmem>>, vector<16x32xf32>,
    %c16 = arith.constant 16 : index
    %c0_21 = arith.constant 0 : index
    %52 = vector.load %arg22[%c16, %c0_21] : memref<128x128xf32, #tpu.memory_space<vmem>>, vector<16x128xf32>
    %cst_22 = arith.constant dense<0.000000e+00> : vector<16x128xf32>
    %53 = tpu.matmul %50, %4, %cst_22 {dimension_numbers = #tpu.dot_dimension_numbers<[1], [0], [0], [1], [0, 0, 1, 1], [], []>} : vector<16x32xf32>, vector<32x128xf32>, vector<16x128xf32> -> vector<16x128xf32>
    %54 = arith.addf %52, %53 : vector<16x128xf32>
    %55 = vector.broadcast %5 : vector<1x128xf32> to vector<16x128xf32>
    %56 = arith.addf %54, %55 : vector<16x128xf32>
    %57 = vector.extract_strided_slice %56 {offsets = [0, 0], sizes = [16, 32], strides = [1, 1]} : vector<16x128xf32> to vector<16x32xf32>
    %58 = vector.extract_strided_slice %56 {offsets = [0, 32], sizes = [16, 32], strides = [1, 1]} : vector<16x128xf32> to vector<16x32xf32>
    %59 = vector.extract_strided_slice %56 {offsets = [0, 64], sizes = [16, 32], strides = [1, 1]} : vector<16x128xf32> to vector<16x32xf32>
    %60 = vector.extract_strided_slice %56 {offsets = [0, 96], sizes = [16, 32], strides = [1, 1]} : vector<16x128xf32> to vector<16x32xf32>
    %61 = vector.broadcast %7 : vector<1x32xf32> to vector<16x32xf32>
    %62 = arith.mulf %61, %40 : vector<16x32xf32>
    %63 = arith.addf %57, %62 : vector<16x32xf32>
    %64 = arith.negf %63 : vector<16x32xf32>
    %65 = math.exp %64 : vector<16x32xf32>
    %cst_23 = arith.constant 1.000000e+00 : f32
    %66 = vector.broadcast %cst_23 : f32 to vector<16x32xf32>
    %67 = arith.addf %66, %65 : vector<16x32xf32>
    %68 = arith.divf %66, %67 : vector<16x32xf32>
    %69 = vector.broadcast %8 : vector<1x32xf32> to vector<16x32xf32>
    %70 = arith.mulf %69, %40 : vector<16x32xf32>
    %71 = arith.addf %58, %70 : vector<16x32xf32>
    %72 = arith.negf %71 : vector<16x32xf32>
    %73 = math.exp %72 : vector<16x32xf32>
    %cst_24 = arith.constant 1.000000e+00 : f32
    %74 = vector.broadcast %cst_24 : f32 to vector<16x32xf32>
    %75 = arith.addf %74, %73 : vector<16x32xf32>
    %76 = arith.divf %74, %75 : vector<16x32xf32>
    %77 = math.tanh %59 : vector<16x32xf32>
    %78 = arith.mulf %76, %40 : vector<16x32xf32>
    %79 = arith.mulf %68, %77 : vector<16x32xf32>
    %80 = arith.addf %78, %79 : vector<16x32xf32>
    %81 = vector.broadcast %9 : vector<1x32xf32> to vector<16x32xf32>
    %82 = arith.mulf %81, %80 : vector<16x32xf32>
    %83 = arith.addf %60, %82 : vector<16x32xf32>
    %84 = arith.negf %83 : vector<16x32xf32>
    %85 = math.exp %84 : vector<16x32xf32>
    %cst_25 = arith.constant 1.000000e+00 : f32
    %86 = vector.broadcast %cst_25 : f32 to vector<16x32xf32>
    %87 = arith.addf %86, %85 : vector<16x32xf32>
    %88 = arith.divf %86, %87 : vector<16x32xf32>
    %89 = math.tanh %80 : vector<16x32xf32>
    %90 = arith.mulf %88, %89 : vector<16x32xf32>
    %c16_26 = arith.constant 16 : index
    %c0_27 = arith.constant 0 : index
    %91 = vector.load %arg24[%c16_26, %c0_27] : memref<128x32xf32, #tpu.memory_space<vmem>>, vector<16x32xf32>
    tpu.vector_store %arg24[%c16_26, %c0_27], %90 {strides = array<i32>} : memref<128x32xf32, #tpu.memory_space<vmem>>, vector<16x32xf32>,
    %c32 = arith.constant 32 : index
    %c0_28 = arith.constant 0 : index
    %92 = vector.load %arg22[%c32, %c0_28] : memref<128x128xf32, #tpu.memory_space<vmem>>, vector<16x128xf32>
    %cst_29 = arith.constant dense<0.000000e+00> : vector<16x128xf32>
    %93 = tpu.matmul %90, %4, %cst_29 {dimension_numbers = #tpu.dot_dimension_numbers<[1], [0], [0], [1], [0, 0, 1, 1], [], []>} : vector<16x32xf32>, vector<32x128xf32>, vector<16x128xf32> -> vector<16x128xf32>
    %94 = arith.addf %92, %93 : vector<16x128xf32>
    %95 = vector.broadcast %5 : vector<1x128xf32> to vector<16x128xf32>
    %96 = arith.addf %94, %95 : vector<16x128xf32>
    %97 = vector.extract_strided_slice %96 {offsets = [0, 0], sizes = [16, 32], strides = [1, 1]} : vector<16x128xf32> to vector<16x32xf32>
    %98 = vector.extract_strided_slice %96 {offsets = [0, 32], sizes = [16, 32], strides = [1, 1]} : vector<16x128xf32> to vector<16x32xf32>
    %99 = vector.extract_strided_slice %96 {offsets = [0, 64], sizes = [16, 32], strides = [1, 1]} : vector<16x128xf32> to vector<16x32xf32>
    %100 = vector.extract_strided_slice %96 {offsets = [0, 96], sizes = [16, 32], strides = [1, 1]} : vector<16x128xf32> to vector<16x32xf32>
    %101 = vector.broadcast %7 : vector<1x32xf32> to vector<16x32xf32>
    %102 = arith.mulf %101, %80 : vector<16x32xf32>
    %103 = arith.addf %97, %102 : vector<16x32xf32>
    %104 = arith.negf %103 : vector<16x32xf32>
    %105 = math.exp %104 : vector<16x32xf32>
    %cst_30 = arith.constant 1.000000e+00 : f32
    %106 = vector.broadcast %cst_30 : f32 to vector<16x32xf32>
    %107 = arith.addf %106, %105 : vector<16x32xf32>
    %108 = arith.divf %106, %107 : vector<16x32xf32>
    %109 = vector.broadcast %8 : vector<1x32xf32> to vector<16x32xf32>
    %110 = arith.mulf %109, %80 : vector<16x32xf32>
    %111 = arith.addf %98, %110 : vector<16x32xf32>
    %112 = arith.negf %111 : vector<16x32xf32>
    %113 = math.exp %112 : vector<16x32xf32>
    %cst_31 = arith.constant 1.000000e+00 : f32
    %114 = vector.broadcast %cst_31 : f32 to vector<16x32xf32>
    %115 = arith.addf %114, %113 : vector<16x32xf32>
    %116 = arith.divf %114, %115 : vector<16x32xf32>
    %117 = math.tanh %99 : vector<16x32xf32>
    %118 = arith.mulf %116, %80 : vector<16x32xf32>
    %119 = arith.mulf %108, %117 : vector<16x32xf32>
    %120 = arith.addf %118, %119 : vector<16x32xf32>
    %121 = vector.broadcast %9 : vector<1x32xf32> to vector<16x32xf32>
    %122 = arith.mulf %121, %120 : vector<16x32xf32>
    %123 = arith.addf %100, %122 : vector<16x32xf32>
    %124 = arith.negf %123 : vector<16x32xf32>
    %125 = math.exp %124 : vector<16x32xf32>
    %cst_32 = arith.constant 1.000000e+00 : f32
    %126 = vector.broadcast %cst_32 : f32 to vector<16x32xf32>
    %127 = arith.addf %126, %125 : vector<16x32xf32>
    %128 = arith.divf %126, %127 : vector<16x32xf32>
    %129 = math.tanh %120 : vector<16x32xf32>
    %130 = arith.mulf %128, %129 : vector<16x32xf32>
    %c32_33 = arith.constant 32 : index
    %c0_34 = arith.constant 0 : index
    %131 = vector.load %arg24[%c32_33, %c0_34] : memref<128x32xf32, #tpu.memory_space<vmem>>, vector<16x32xf32>
    tpu.vector_store %arg24[%c32_33, %c0_34], %130 {strides = array<i32>} : memref<128x32xf32, #tpu.memory_space<vmem>>, vector<16x32xf32>,
    %c48 = arith.constant 48 : index
    %c0_35 = arith.constant 0 : index
    %132 = vector.load %arg22[%c48, %c0_35] : memref<128x128xf32, #tpu.memory_space<vmem>>, vector<16x128xf32>
    %cst_36 = arith.constant dense<0.000000e+00> : vector<16x128xf32>
    %133 = tpu.matmul %130, %4, %cst_36 {dimension_numbers = #tpu.dot_dimension_numbers<[1], [0], [0], [1], [0, 0, 1, 1], [], []>} : vector<16x32xf32>, vector<32x128xf32>, vector<16x128xf32> -> vector<16x128xf32>
    %134 = arith.addf %132, %133 : vector<16x128xf32>
    %135 = vector.broadcast %5 : vector<1x128xf32> to vector<16x128xf32>
    %136 = arith.addf %134, %135 : vector<16x128xf32>
    %137 = vector.extract_strided_slice %136 {offsets = [0, 0], sizes = [16, 32], strides = [1, 1]} : vector<16x128xf32> to vector<16x32xf32>
    %138 = vector.extract_strided_slice %136 {offsets = [0, 32], sizes = [16, 32], strides = [1, 1]} : vector<16x128xf32> to vector<16x32xf32>
    %139 = vector.extract_strided_slice %136 {offsets = [0, 64], sizes = [16, 32], strides = [1, 1]} : vector<16x128xf32> to vector<16x32xf32>
    %140 = vector.extract_strided_slice %136 {offsets = [0, 96], sizes = [16, 32], strides = [1, 1]} : vector<16x128xf32> to vector<16x32xf32>
    %141 = vector.broadcast %7 : vector<1x32xf32> to vector<16x32xf32>
    %142 = arith.mulf %141, %120 : vector<16x32xf32>
    %143 = arith.addf %137, %142 : vector<16x32xf32>
    %144 = arith.negf %143 : vector<16x32xf32>
    %145 = math.exp %144 : vector<16x32xf32>
    %cst_37 = arith.constant 1.000000e+00 : f32
    %146 = vector.broadcast %cst_37 : f32 to vector<16x32xf32>
    %147 = arith.addf %146, %145 : vector<16x32xf32>
    %148 = arith.divf %146, %147 : vector<16x32xf32>
    %149 = vector.broadcast %8 : vector<1x32xf32> to vector<16x32xf32>
    %150 = arith.mulf %149, %120 : vector<16x32xf32>
    %151 = arith.addf %138, %150 : vector<16x32xf32>
    %152 = arith.negf %151 : vector<16x32xf32>
    %153 = math.exp %152 : vector<16x32xf32>
    %cst_38 = arith.constant 1.000000e+00 : f32
    %154 = vector.broadcast %cst_38 : f32 to vector<16x32xf32>
    %155 = arith.addf %154, %153 : vector<16x32xf32>
    %156 = arith.divf %154, %155 : vector<16x32xf32>
    %157 = math.tanh %139 : vector<16x32xf32>
    %158 = arith.mulf %156, %120 : vector<16x32xf32>
    %159 = arith.mulf %148, %157 : vector<16x32xf32>
    %160 = arith.addf %158, %159 : vector<16x32xf32>
    %161 = vector.broadcast %9 : vector<1x32xf32> to vector<16x32xf32>
    %162 = arith.mulf %161, %160 : vector<16x32xf32>
    %163 = arith.addf %140, %162 : vector<16x32xf32>
    %164 = arith.negf %163 : vector<16x32xf32>
    %165 = math.exp %164 : vector<16x32xf32>
    %cst_39 = arith.constant 1.000000e+00 : f32
    %166 = vector.broadcast %cst_39 : f32 to vector<16x32xf32>
    %167 = arith.addf %166, %165 : vector<16x32xf32>
    %168 = arith.divf %166, %167 : vector<16x32xf32>
    %169 = math.tanh %160 : vector<16x32xf32>
    %170 = arith.mulf %168, %169 : vector<16x32xf32>
    %c48_40 = arith.constant 48 : index
    %c0_41 = arith.constant 0 : index
    %171 = vector.load %arg24[%c48_40, %c0_41] : memref<128x32xf32, #tpu.memory_space<vmem>>, vector<16x32xf32>
    tpu.vector_store %arg24[%c48_40, %c0_41], %170 {strides = array<i32>} : memref<128x32xf32, #tpu.memory_space<vmem>>, vector<16x32xf32>,
    %c64 = arith.constant 64 : index
    %c0_42 = arith.constant 0 : index
    %172 = vector.load %arg22[%c64, %c0_42] : memref<128x128xf32, #tpu.memory_space<vmem>>, vector<16x128xf32>
    %cst_43 = arith.constant dense<0.000000e+00> : vector<16x128xf32>
    %173 = tpu.matmul %170, %4, %cst_43 {dimension_numbers = #tpu.dot_dimension_numbers<[1], [0], [0], [1], [0, 0, 1, 1], [], []>} : vector<16x32xf32>, vector<32x128xf32>, vector<16x128xf32> -> vector<16x128xf32>
    %174 = arith.addf %172, %173 : vector<16x128xf32>
    %175 = vector.broadcast %5 : vector<1x128xf32> to vector<16x128xf32>
    %176 = arith.addf %174, %175 : vector<16x128xf32>
    %177 = vector.extract_strided_slice %176 {offsets = [0, 0], sizes = [16, 32], strides = [1, 1]} : vector<16x128xf32> to vector<16x32xf32>
    %178 = vector.extract_strided_slice %176 {offsets = [0, 32], sizes = [16, 32], strides = [1, 1]} : vector<16x128xf32> to vector<16x32xf32>
    %179 = vector.extract_strided_slice %176 {offsets = [0, 64], sizes = [16, 32], strides = [1, 1]} : vector<16x128xf32> to vector<16x32xf32>
    %180 = vector.extract_strided_slice %176 {offsets = [0, 96], sizes = [16, 32], strides = [1, 1]} : vector<16x128xf32> to vector<16x32xf32>
    %181 = vector.broadcast %7 : vector<1x32xf32> to vector<16x32xf32>
    %182 = arith.mulf %181, %160 : vector<16x32xf32>
    %183 = arith.addf %177, %182 : vector<16x32xf32>
    %184 = arith.negf %183 : vector<16x32xf32>
    %185 = math.exp %184 : vector<16x32xf32>
    %cst_44 = arith.constant 1.000000e+00 : f32
    %186 = vector.broadcast %cst_44 : f32 to vector<16x32xf32>
    %187 = arith.addf %186, %185 : vector<16x32xf32>
    %188 = arith.divf %186, %187 : vector<16x32xf32>
    %189 = vector.broadcast %8 : vector<1x32xf32> to vector<16x32xf32>
    %190 = arith.mulf %189, %160 : vector<16x32xf32>
    %191 = arith.addf %178, %190 : vector<16x32xf32>
    %192 = arith.negf %191 : vector<16x32xf32>
    %193 = math.exp %192 : vector<16x32xf32>
    %cst_45 = arith.constant 1.000000e+00 : f32
    %194 = vector.broadcast %cst_45 : f32 to vector<16x32xf32>
    %195 = arith.addf %194, %193 : vector<16x32xf32>
    %196 = arith.divf %194, %195 : vector<16x32xf32>
    %197 = math.tanh %179 : vector<16x32xf32>
    %198 = arith.mulf %196, %160 : vector<16x32xf32>
    %199 = arith.mulf %188, %197 : vector<16x32xf32>
    %200 = arith.addf %198, %199 : vector<16x32xf32>
    %201 = vector.broadcast %9 : vector<1x32xf32> to vector<16x32xf32>
    %202 = arith.mulf %201, %200 : vector<16x32xf32>
    %203 = arith.addf %180, %202 : vector<16x32xf32>
    %204 = arith.negf %203 : vector<16x32xf32>
    %205 = math.exp %204 : vector<16x32xf32>
    %cst_46 = arith.constant 1.000000e+00 : f32
    %206 = vector.broadcast %cst_46 : f32 to vector<16x32xf32>
    %207 = arith.addf %206, %205 : vector<16x32xf32>
    %208 = arith.divf %206, %207 : vector<16x32xf32>
    %209 = math.tanh %200 : vector<16x32xf32>
    %210 = arith.mulf %208, %209 : vector<16x32xf32>
    %c64_47 = arith.constant 64 : index
    %c0_48 = arith.constant 0 : index
    %211 = vector.load %arg24[%c64_47, %c0_48] : memref<128x32xf32, #tpu.memory_space<vmem>>, vector<16x32xf32>
    tpu.vector_store %arg24[%c64_47, %c0_48], %210 {strides = array<i32>} : memref<128x32xf32, #tpu.memory_space<vmem>>, vector<16x32xf32>,
    %c80 = arith.constant 80 : index
    %c0_49 = arith.constant 0 : index
    %212 = vector.load %arg22[%c80, %c0_49] : memref<128x128xf32, #tpu.memory_space<vmem>>, vector<16x128xf32>
    %cst_50 = arith.constant dense<0.000000e+00> : vector<16x128xf32>
    %213 = tpu.matmul %210, %4, %cst_50 {dimension_numbers = #tpu.dot_dimension_numbers<[1], [0], [0], [1], [0, 0, 1, 1], [], []>} : vector<16x32xf32>, vector<32x128xf32>, vector<16x128xf32> -> vector<16x128xf32>
    %214 = arith.addf %212, %213 : vector<16x128xf32>
    %215 = vector.broadcast %5 : vector<1x128xf32> to vector<16x128xf32>
    %216 = arith.addf %214, %215 : vector<16x128xf32>
    %217 = vector.extract_strided_slice %216 {offsets = [0, 0], sizes = [16, 32], strides = [1, 1]} : vector<16x128xf32> to vector<16x32xf32>
    %218 = vector.extract_strided_slice %216 {offsets = [0, 32], sizes = [16, 32], strides = [1, 1]} : vector<16x128xf32> to vector<16x32xf32>
    %219 = vector.extract_strided_slice %216 {offsets = [0, 64], sizes = [16, 32], strides = [1, 1]} : vector<16x128xf32> to vector<16x32xf32>
    %220 = vector.extract_strided_slice %216 {offsets = [0, 96], sizes = [16, 32], strides = [1, 1]} : vector<16x128xf32> to vector<16x32xf32>
    %221 = vector.broadcast %7 : vector<1x32xf32> to vector<16x32xf32>
    %222 = arith.mulf %221, %200 : vector<16x32xf32>
    %223 = arith.addf %217, %222 : vector<16x32xf32>
    %224 = arith.negf %223 : vector<16x32xf32>
    %225 = math.exp %224 : vector<16x32xf32>
    %cst_51 = arith.constant 1.000000e+00 : f32
    %226 = vector.broadcast %cst_51 : f32 to vector<16x32xf32>
    %227 = arith.addf %226, %225 : vector<16x32xf32>
    %228 = arith.divf %226, %227 : vector<16x32xf32>
    %229 = vector.broadcast %8 : vector<1x32xf32> to vector<16x32xf32>
    %230 = arith.mulf %229, %200 : vector<16x32xf32>
    %231 = arith.addf %218, %230 : vector<16x32xf32>
    %232 = arith.negf %231 : vector<16x32xf32>
    %233 = math.exp %232 : vector<16x32xf32>
    %cst_52 = arith.constant 1.000000e+00 : f32
    %234 = vector.broadcast %cst_52 : f32 to vector<16x32xf32>
    %235 = arith.addf %234, %233 : vector<16x32xf32>
    %236 = arith.divf %234, %235 : vector<16x32xf32>
    %237 = math.tanh %219 : vector<16x32xf32>
    %238 = arith.mulf %236, %200 : vector<16x32xf32>
    %239 = arith.mulf %228, %237 : vector<16x32xf32>
    %240 = arith.addf %238, %239 : vector<16x32xf32>
    %241 = vector.broadcast %9 : vector<1x32xf32> to vector<16x32xf32>
    %242 = arith.mulf %241, %240 : vector<16x32xf32>
    %243 = arith.addf %220, %242 : vector<16x32xf32>
    %244 = arith.negf %243 : vector<16x32xf32>
    %245 = math.exp %244 : vector<16x32xf32>
    %cst_53 = arith.constant 1.000000e+00 : f32
    %246 = vector.broadcast %cst_53 : f32 to vector<16x32xf32>
    %247 = arith.addf %246, %245 : vector<16x32xf32>
    %248 = arith.divf %246, %247 : vector<16x32xf32>
    %249 = math.tanh %240 : vector<16x32xf32>
    %250 = arith.mulf %248, %249 : vector<16x32xf32>
    %c80_54 = arith.constant 80 : index
    %c0_55 = arith.constant 0 : index
    %251 = vector.load %arg24[%c80_54, %c0_55] : memref<128x32xf32, #tpu.memory_space<vmem>>, vector<16x32xf32>
    tpu.vector_store %arg24[%c80_54, %c0_55], %250 {strides = array<i32>} : memref<128x32xf32, #tpu.memory_space<vmem>>, vector<16x32xf32>,
    %c96 = arith.constant 96 : index
    %c0_56 = arith.constant 0 : index
    %252 = vector.load %arg22[%c96, %c0_56] : memref<128x128xf32, #tpu.memory_space<vmem>>, vector<16x128xf32>
    %cst_57 = arith.constant dense<0.000000e+00> : vector<16x128xf32>
    %253 = tpu.matmul %250, %4, %cst_57 {dimension_numbers = #tpu.dot_dimension_numbers<[1], [0], [0], [1], [0, 0, 1, 1], [], []>} : vector<16x32xf32>, vector<32x128xf32>, vector<16x128xf32> -> vector<16x128xf32>
    %254 = arith.addf %252, %253 : vector<16x128xf32>
    %255 = vector.broadcast %5 : vector<1x128xf32> to vector<16x128xf32>
    %256 = arith.addf %254, %255 : vector<16x128xf32>
    %257 = vector.extract_strided_slice %256 {offsets = [0, 0], sizes = [16, 32], strides = [1, 1]} : vector<16x128xf32> to vector<16x32xf32>
    %258 = vector.extract_strided_slice %256 {offsets = [0, 32], sizes = [16, 32], strides = [1, 1]} : vector<16x128xf32> to vector<16x32xf32>
    %259 = vector.extract_strided_slice %256 {offsets = [0, 64], sizes = [16, 32], strides = [1, 1]} : vector<16x128xf32> to vector<16x32xf32>
    %260 = vector.extract_strided_slice %256 {offsets = [0, 96], sizes = [16, 32], strides = [1, 1]} : vector<16x128xf32> to vector<16x32xf32>
    %261 = vector.broadcast %7 : vector<1x32xf32> to vector<16x32xf32>
    %262 = arith.mulf %261, %240 : vector<16x32xf32>
    %263 = arith.addf %257, %262 : vector<16x32xf32>
    %264 = arith.negf %263 : vector<16x32xf32>
    %265 = math.exp %264 : vector<16x32xf32>
    %cst_58 = arith.constant 1.000000e+00 : f32
    %266 = vector.broadcast %cst_58 : f32 to vector<16x32xf32>
    %267 = arith.addf %266, %265 : vector<16x32xf32>
    %268 = arith.divf %266, %267 : vector<16x32xf32>
    %269 = vector.broadcast %8 : vector<1x32xf32> to vector<16x32xf32>
    %270 = arith.mulf %269, %240 : vector<16x32xf32>
    %271 = arith.addf %258, %270 : vector<16x32xf32>
    %272 = arith.negf %271 : vector<16x32xf32>
    %273 = math.exp %272 : vector<16x32xf32>
    %cst_59 = arith.constant 1.000000e+00 : f32
    %274 = vector.broadcast %cst_59 : f32 to vector<16x32xf32>
    %275 = arith.addf %274, %273 : vector<16x32xf32>
    %276 = arith.divf %274, %275 : vector<16x32xf32>
    %277 = math.tanh %259 : vector<16x32xf32>
    %278 = arith.mulf %276, %240 : vector<16x32xf32>
    %279 = arith.mulf %268, %277 : vector<16x32xf32>
    %280 = arith.addf %278, %279 : vector<16x32xf32>
    %281 = vector.broadcast %9 : vector<1x32xf32> to vector<16x32xf32>
    %282 = arith.mulf %281, %280 : vector<16x32xf32>
    %283 = arith.addf %260, %282 : vector<16x32xf32>
    %284 = arith.negf %283 : vector<16x32xf32>
    %285 = math.exp %284 : vector<16x32xf32>
    %cst_60 = arith.constant 1.000000e+00 : f32
    %286 = vector.broadcast %cst_60 : f32 to vector<16x32xf32>
    %287 = arith.addf %286, %285 : vector<16x32xf32>
    %288 = arith.divf %286, %287 : vector<16x32xf32>
    %289 = math.tanh %280 : vector<16x32xf32>
    %290 = arith.mulf %288, %289 : vector<16x32xf32>
    %c96_61 = arith.constant 96 : index
    %c0_62 = arith.constant 0 : index
    %291 = vector.load %arg24[%c96_61, %c0_62] : memref<128x32xf32, #tpu.memory_space<vmem>>, vector<16x32xf32>
    tpu.vector_store %arg24[%c96_61, %c0_62], %290 {strides = array<i32>} : memref<128x32xf32, #tpu.memory_space<vmem>>, vector<16x32xf32>,
    %c112 = arith.constant 112 : index
    %c0_63 = arith.constant 0 : index
    %292 = vector.load %arg22[%c112, %c0_63] : memref<128x128xf32, #tpu.memory_space<vmem>>, vector<16x128xf32>
    %cst_64 = arith.constant dense<0.000000e+00> : vector<16x128xf32>
    %293 = tpu.matmul %290, %4, %cst_64 {dimension_numbers = #tpu.dot_dimension_numbers<[1], [0], [0], [1], [0, 0, 1, 1], [], []>} : vector<16x32xf32>, vector<32x128xf32>, vector<16x128xf32> -> vector<16x128xf32>
    %294 = arith.addf %292, %293 : vector<16x128xf32>
    %295 = vector.broadcast %5 : vector<1x128xf32> to vector<16x128xf32>
    %296 = arith.addf %294, %295 : vector<16x128xf32>
    %297 = vector.extract_strided_slice %296 {offsets = [0, 0], sizes = [16, 32], strides = [1, 1]} : vector<16x128xf32> to vector<16x32xf32>
    %298 = vector.extract_strided_slice %296 {offsets = [0, 32], sizes = [16, 32], strides = [1, 1]} : vector<16x128xf32> to vector<16x32xf32>
    %299 = vector.extract_strided_slice %296 {offsets = [0, 64], sizes = [16, 32], strides = [1, 1]} : vector<16x128xf32> to vector<16x32xf32>
    %300 = vector.extract_strided_slice %296 {offsets = [0, 96], sizes = [16, 32], strides = [1, 1]} : vector<16x128xf32> to vector<16x32xf32>
    %301 = vector.broadcast %7 : vector<1x32xf32> to vector<16x32xf32>
    %302 = arith.mulf %301, %280 : vector<16x32xf32>
    %303 = arith.addf %297, %302 : vector<16x32xf32>
    %304 = arith.negf %303 : vector<16x32xf32>
    %305 = math.exp %304 : vector<16x32xf32>
    %cst_65 = arith.constant 1.000000e+00 : f32
    %306 = vector.broadcast %cst_65 : f32 to vector<16x32xf32>
    %307 = arith.addf %306, %305 : vector<16x32xf32>
    %308 = arith.divf %306, %307 : vector<16x32xf32>
    %309 = vector.broadcast %8 : vector<1x32xf32> to vector<16x32xf32>
    %310 = arith.mulf %309, %280 : vector<16x32xf32>
    %311 = arith.addf %298, %310 : vector<16x32xf32>
    %312 = arith.negf %311 : vector<16x32xf32>
    %313 = math.exp %312 : vector<16x32xf32>
    %cst_66 = arith.constant 1.000000e+00 : f32
    %314 = vector.broadcast %cst_66 : f32 to vector<16x32xf32>
    %315 = arith.addf %314, %313 : vector<16x32xf32>
    %316 = arith.divf %314, %315 : vector<16x32xf32>
    %317 = math.tanh %299 : vector<16x32xf32>
    %318 = arith.mulf %316, %280 : vector<16x32xf32>
    %319 = arith.mulf %308, %317 : vector<16x32xf32>
    %320 = arith.addf %318, %319 : vector<16x32xf32>
    %321 = vector.broadcast %9 : vector<1x32xf32> to vector<16x32xf32>
    %322 = arith.mulf %321, %320 : vector<16x32xf32>
    %323 = arith.addf %300, %322 : vector<16x32xf32>
    %324 = arith.negf %323 : vector<16x32xf32>
    %325 = math.exp %324 : vector<16x32xf32>
    %cst_67 = arith.constant 1.000000e+00 : f32
    %326 = vector.broadcast %cst_67 : f32 to vector<16x32xf32>
    %327 = arith.addf %326, %325 : vector<16x32xf32>
    %328 = arith.divf %326, %327 : vector<16x32xf32>
    %329 = math.tanh %320 : vector<16x32xf32>
    %330 = arith.mulf %328, %329 : vector<16x32xf32>
    %c112_68 = arith.constant 112 : index
    %c0_69 = arith.constant 0 : index
    %331 = vector.load %arg24[%c112_68, %c0_69] : memref<128x32xf32, #tpu.memory_space<vmem>>, vector<16x32xf32>
    tpu.vector_store %arg24[%c112_68, %c0_69], %330 {strides = array<i32>} : memref<128x32xf32, #tpu.memory_space<vmem>>, vector<16x32xf32>,
    %c0_70 = arith.constant 0 : index
    %c0_71 = arith.constant 0 : index
    %332 = vector.load %arg24[%c0_70, %c0_71] : memref<128x32xf32, #tpu.memory_space<vmem>>, vector<128x32xf32>
    %c0_72 = arith.constant 0 : index
    %c0_73 = arith.constant 0 : index
    %333 = vector.load %arg5[%c0_72, %c0_73] : memref<1x32xf32, #tpu.memory_space<vmem>>, vector<1x32xf32>
    %c0_74 = arith.constant 0 : index
    %c0_75 = arith.constant 0 : index
    %334 = vector.load %arg6[%c0_74, %c0_75] : memref<1x32xf32, #tpu.memory_space<vmem>>, vector<1x32xf32>
    %c0_76 = arith.constant 0 : index
    %c0_77 = arith.constant 0 : index
    %335 = vector.load %arg7[%c0_76, %c0_77] : memref<32x24xf32, #tpu.memory_space<vmem>>, vector<32x24xf32>
    %c0_78 = arith.constant 0 : index
    %c0_79 = arith.constant 0 : index
    %336 = vector.load %arg8[%c0_78, %c0_79] : memref<1x24xf32, #tpu.memory_space<vmem>>, vector<1x24xf32>
    %c0_80 = arith.constant 0 : index
    %c0_81 = arith.constant 0 : index
    %337 = vector.load %arg9[%c0_80, %c0_81] : memref<24x16xf32, #tpu.memory_space<vmem>>, vector<24x16xf32>
    %c0_82 = arith.constant 0 : index
    %c0_83 = arith.constant 0 : index
    %338 = vector.load %arg10[%c0_82, %c0_83] : memref<1x16xf32, #tpu.memory_space<vmem>>, vector<1x16xf32>
    %339 = math.tanh %332 : vector<128x32xf32>
    %340 = vector.broadcast %333 : vector<1x32xf32> to vector<128x32xf32>
    %341 = arith.mulf %339, %340 : vector<128x32xf32>
    %342 = vector.broadcast %334 : vector<1x32xf32> to vector<128x32xf32>
    %343 = arith.addf %341, %342 : vector<128x32xf32>
    %cst_84 = arith.constant dense<0.000000e+00> : vector<128x24xf32>
    %344 = tpu.matmul %343, %335, %cst_84 {dimension_numbers = #tpu.dot_dimension_numbers<[1], [0], [0], [1], [0, 0, 1, 1], [], []>} : vector<128x32xf32>, vector<32x24xf32>, vector<128x24xf32> -> vector<128x24xf32>
    %345 = vector.broadcast %336 : vector<1x24xf32> to vector<128x24xf32>
    %346 = arith.addf %344, %345 : vector<128x24xf32>
    %cst_85 = arith.constant 0.000000e+00 : f32
    %347 = vector.broadcast %cst_85 : f32 to vector<128x24xf32>
    %348 = arith.maximumf %346, %347 : vector<128x24xf32>
    %cst_86 = arith.constant dense<0.000000e+00> : vector<128x16xf32>
    %349 = tpu.matmul %348, %337, %cst_86 {dimension_numbers = #tpu.dot_dimension_numbers<[1], [0], [0], [1], [0, 0, 1, 1], [], []>} : vector<128x24xf32>, vector<24x16xf32>, vector<128x16xf32> -> vector<128x16xf32>
    %350 = vector.broadcast %338 : vector<1x16xf32> to vector<128x16xf32>
    %351 = arith.addf %349, %350 : vector<128x16xf32>
    %c0_87 = arith.constant 0 : index
    %c0_88 = arith.constant 0 : index
    %352 = vector.load %arg11[%c0_87, %c0_88] : memref<16x128xf32, #tpu.memory_space<vmem>>, vector<16x128xf32>
    %cst_89 = arith.constant dense<0.000000e+00> : vector<128x128xf32>
    %353 = tpu.matmul %351, %352, %cst_89 {dimension_numbers = #tpu.dot_dimension_numbers<[1], [0], [0], [1], [0, 0, 1, 1], [], []>} : vector<128x16xf32>, vector<16x128xf32>, vector<128x128xf32> -> vector<128x128xf32>
    %c0_90 = arith.constant 0 : index
    %c0_91 = arith.constant 0 : index
    %354 = vector.load %arg23[%c0_90, %c0_91] : memref<128x128xf32, #tpu.memory_space<vmem>>, vector<128x128xf32>
    tpu.vector_store %arg23[%c0_90, %c0_91], %353 {strides = array<i32>} : memref<128x128xf32, #tpu.memory_space<vmem>>, vector<128x128xf32>,
    %c0_92 = arith.constant 0 : index
    %c0_93 = arith.constant 0 : index
    %355 = vector.load %arg12[%c0_92, %c0_93] : memref<32x128xf32, #tpu.memory_space<vmem>>, vector<32x128xf32>
    %c0_94 = arith.constant 0 : index
    %c0_95 = arith.constant 0 : index
    %356 = vector.load %arg13[%c0_94, %c0_95] : memref<1x128xf32, #tpu.memory_space<vmem>>, vector<1x128xf32>
    %c0_96 = arith.constant 0 : index
    %c0_97 = arith.constant 0 : index
    %357 = vector.load %arg14[%c0_96, %c0_97] : memref<3x32xf32, #tpu.memory_space<vmem>>, vector<3x32xf32>
    %358 = vector.extract_strided_slice %357 {offsets = [0, 0], sizes = [1, 32], strides = [1, 1]} : vector<3x32xf32> to vector<1x32xf32>
    %359 = vector.extract_strided_slice %357 {offsets = [1, 0], sizes = [1, 32], strides = [1, 1]} : vector<3x32xf32> to vector<1x32xf32>
    %360 = vector.extract_strided_slice %357 {offsets = [2, 0], sizes = [1, 32], strides = [1, 1]} : vector<3x32xf32> to vector<1x32xf32>
    %cst_98 = arith.constant 0.000000e+00 : f32
    %361 = vector.broadcast %cst_98 : f32 to vector<16x32xf32>
    %cst_99 = arith.constant 0.000000e+00 : f32
    %362 = vector.broadcast %cst_99 : f32 to vector<16x32xf32>
    %c0_100 = arith.constant 0 : index
    %c0_101 = arith.constant 0 : index
    %363 = vector.load %arg23[%c0_100, %c0_101] : memref<128x128xf32, #tpu.memory_space<vmem>>, vector<16x128xf32>
    %cst_102 = arith.constant dense<0.000000e+00> : vector<16x128xf32>
    %364 = tpu.matmul %361, %355, %cst_102 {dimension_numbers = #tpu.dot_dimension_numbers<[1], [0], [0], [1], [0, 0, 1, 1], [], []>} : vector<16x32xf32>, vector<32x128xf32>, vector<16x128xf32> -> vector<16x128xf32>
    %365 = arith.addf %363, %364 : vector<16x128xf32>
    %366 = vector.broadcast %356 : vector<1x128xf32> to vector<16x128xf32>
    %367 = arith.addf %365, %366 : vector<16x128xf32>
    %368 = vector.extract_strided_slice %367 {offsets = [0, 0], sizes = [16, 32], strides = [1, 1]} : vector<16x128xf32> to vector<16x32xf32>
    %369 = vector.extract_strided_slice %367 {offsets = [0, 32], sizes = [16, 32], strides = [1, 1]} : vector<16x128xf32> to vector<16x32xf32>
    %370 = vector.extract_strided_slice %367 {offsets = [0, 64], sizes = [16, 32], strides = [1, 1]} : vector<16x128xf32> to vector<16x32xf32>
    %371 = vector.extract_strided_slice %367 {offsets = [0, 96], sizes = [16, 32], strides = [1, 1]} : vector<16x128xf32> to vector<16x32xf32>
    %372 = vector.broadcast %358 : vector<1x32xf32> to vector<16x32xf32>
    %373 = arith.mulf %372, %362 : vector<16x32xf32>
    %374 = arith.addf %368, %373 : vector<16x32xf32>
    %375 = arith.negf %374 : vector<16x32xf32>
    %376 = math.exp %375 : vector<16x32xf32>
    %cst_103 = arith.constant 1.000000e+00 : f32
    %377 = vector.broadcast %cst_103 : f32 to vector<16x32xf32>
    %378 = arith.addf %377, %376 : vector<16x32xf32>
    %379 = arith.divf %377, %378 : vector<16x32xf32>
    %380 = vector.broadcast %359 : vector<1x32xf32> to vector<16x32xf32>
    %381 = arith.mulf %380, %362 : vector<16x32xf32>
    %382 = arith.addf %369, %381 : vector<16x32xf32>
    %383 = arith.negf %382 : vector<16x32xf32>
    %384 = math.exp %383 : vector<16x32xf32>
    %cst_104 = arith.constant 1.000000e+00 : f32
    %385 = vector.broadcast %cst_104 : f32 to vector<16x32xf32>
    %386 = arith.addf %385, %384 : vector<16x32xf32>
    %387 = arith.divf %385, %386 : vector<16x32xf32>
    %388 = math.tanh %370 : vector<16x32xf32>
    %389 = arith.mulf %387, %362 : vector<16x32xf32>
    %390 = arith.mulf %379, %388 : vector<16x32xf32>
    %391 = arith.addf %389, %390 : vector<16x32xf32>
    %392 = vector.broadcast %360 : vector<1x32xf32> to vector<16x32xf32>
    %393 = arith.mulf %392, %391 : vector<16x32xf32>
    %394 = arith.addf %371, %393 : vector<16x32xf32>
    %395 = arith.negf %394 : vector<16x32xf32>
    %396 = math.exp %395 : vector<16x32xf32>
    %cst_105 = arith.constant 1.000000e+00 : f32
    %397 = vector.broadcast %cst_105 : f32 to vector<16x32xf32>
    %398 = arith.addf %397, %396 : vector<16x32xf32>
    %399 = arith.divf %397, %398 : vector<16x32xf32>
    %400 = math.tanh %391 : vector<16x32xf32>
    %401 = arith.mulf %399, %400 : vector<16x32xf32>
    %c0_106 = arith.constant 0 : index
    %c0_107 = arith.constant 0 : index
    %402 = vector.load %arg25[%c0_106, %c0_107] : memref<128x32xf32, #tpu.memory_space<vmem>>, vector<16x32xf32>
    tpu.vector_store %arg25[%c0_106, %c0_107], %401 {strides = array<i32>} : memref<128x32xf32, #tpu.memory_space<vmem>>, vector<16x32xf32>,
    %c16_108 = arith.constant 16 : index
    %c0_109 = arith.constant 0 : index
    %403 = vector.load %arg23[%c16_108, %c0_109] : memref<128x128xf32, #tpu.memory_space<vmem>>, vector<16x128xf32>
    %cst_110 = arith.constant dense<0.000000e+00> : vector<16x128xf32>
    %404 = tpu.matmul %401, %355, %cst_110 {dimension_numbers = #tpu.dot_dimension_numbers<[1], [0], [0], [1], [0, 0, 1, 1], [], []>} : vector<16x32xf32>, vector<32x128xf32>, vector<16x128xf32> -> vector<16x128xf32>
    %405 = arith.addf %403, %404 : vector<16x128xf32>
    %406 = vector.broadcast %356 : vector<1x128xf32> to vector<16x128xf32>
    %407 = arith.addf %405, %406 : vector<16x128xf32>
    %408 = vector.extract_strided_slice %407 {offsets = [0, 0], sizes = [16, 32], strides = [1, 1]} : vector<16x128xf32> to vector<16x32xf32>
    %409 = vector.extract_strided_slice %407 {offsets = [0, 32], sizes = [16, 32], strides = [1, 1]} : vector<16x128xf32> to vector<16x32xf32>
    %410 = vector.extract_strided_slice %407 {offsets = [0, 64], sizes = [16, 32], strides = [1, 1]} : vector<16x128xf32> to vector<16x32xf32>
    %411 = vector.extract_strided_slice %407 {offsets = [0, 96], sizes = [16, 32], strides = [1, 1]} : vector<16x128xf32> to vector<16x32xf32>
    %412 = vector.broadcast %358 : vector<1x32xf32> to vector<16x32xf32>
    %413 = arith.mulf %412, %391 : vector<16x32xf32>
    %414 = arith.addf %408, %413 : vector<16x32xf32>
    %415 = arith.negf %414 : vector<16x32xf32>
    %416 = math.exp %415 : vector<16x32xf32>
    %cst_111 = arith.constant 1.000000e+00 : f32
    %417 = vector.broadcast %cst_111 : f32 to vector<16x32xf32>
    %418 = arith.addf %417, %416 : vector<16x32xf32>
    %419 = arith.divf %417, %418 : vector<16x32xf32>
    %420 = vector.broadcast %359 : vector<1x32xf32> to vector<16x32xf32>
    %421 = arith.mulf %420, %391 : vector<16x32xf32>
    %422 = arith.addf %409, %421 : vector<16x32xf32>
    %423 = arith.negf %422 : vector<16x32xf32>
    %424 = math.exp %423 : vector<16x32xf32>
    %cst_112 = arith.constant 1.000000e+00 : f32
    %425 = vector.broadcast %cst_112 : f32 to vector<16x32xf32>
    %426 = arith.addf %425, %424 : vector<16x32xf32>
    %427 = arith.divf %425, %426 : vector<16x32xf32>
    %428 = math.tanh %410 : vector<16x32xf32>
    %429 = arith.mulf %427, %391 : vector<16x32xf32>
    %430 = arith.mulf %419, %428 : vector<16x32xf32>
    %431 = arith.addf %429, %430 : vector<16x32xf32>
    %432 = vector.broadcast %360 : vector<1x32xf32> to vector<16x32xf32>
    %433 = arith.mulf %432, %431 : vector<16x32xf32>
    %434 = arith.addf %411, %433 : vector<16x32xf32>
    %435 = arith.negf %434 : vector<16x32xf32>
    %436 = math.exp %435 : vector<16x32xf32>
    %cst_113 = arith.constant 1.000000e+00 : f32
    %437 = vector.broadcast %cst_113 : f32 to vector<16x32xf32>
    %438 = arith.addf %437, %436 : vector<16x32xf32>
    %439 = arith.divf %437, %438 : vector<16x32xf32>
    %440 = math.tanh %431 : vector<16x32xf32>
    %441 = arith.mulf %439, %440 : vector<16x32xf32>
    %c16_114 = arith.constant 16 : index
    %c0_115 = arith.constant 0 : index
    %442 = vector.load %arg25[%c16_114, %c0_115] : memref<128x32xf32, #tpu.memory_space<vmem>>, vector<16x32xf32>
    tpu.vector_store %arg25[%c16_114, %c0_115], %441 {strides = array<i32>} : memref<128x32xf32, #tpu.memory_space<vmem>>, vector<16x32xf32>,
    %c32_116 = arith.constant 32 : index
    %c0_117 = arith.constant 0 : index
    %443 = vector.load %arg23[%c32_116, %c0_117] : memref<128x128xf32, #tpu.memory_space<vmem>>, vector<16x128xf32>
    %cst_118 = arith.constant dense<0.000000e+00> : vector<16x128xf32>
    %444 = tpu.matmul %441, %355, %cst_118 {dimension_numbers = #tpu.dot_dimension_numbers<[1], [0], [0], [1], [0, 0, 1, 1], [], []>} : vector<16x32xf32>, vector<32x128xf32>, vector<16x128xf32> -> vector<16x128xf32>
    %445 = arith.addf %443, %444 : vector<16x128xf32>
    %446 = vector.broadcast %356 : vector<1x128xf32> to vector<16x128xf32>
    %447 = arith.addf %445, %446 : vector<16x128xf32>
    %448 = vector.extract_strided_slice %447 {offsets = [0, 0], sizes = [16, 32], strides = [1, 1]} : vector<16x128xf32> to vector<16x32xf32>
    %449 = vector.extract_strided_slice %447 {offsets = [0, 32], sizes = [16, 32], strides = [1, 1]} : vector<16x128xf32> to vector<16x32xf32>
    %450 = vector.extract_strided_slice %447 {offsets = [0, 64], sizes = [16, 32], strides = [1, 1]} : vector<16x128xf32> to vector<16x32xf32>
    %451 = vector.extract_strided_slice %447 {offsets = [0, 96], sizes = [16, 32], strides = [1, 1]} : vector<16x128xf32> to vector<16x32xf32>
    %452 = vector.broadcast %358 : vector<1x32xf32> to vector<16x32xf32>
    %453 = arith.mulf %452, %431 : vector<16x32xf32>
    %454 = arith.addf %448, %453 : vector<16x32xf32>
    %455 = arith.negf %454 : vector<16x32xf32>
    %456 = math.exp %455 : vector<16x32xf32>
    %cst_119 = arith.constant 1.000000e+00 : f32
    %457 = vector.broadcast %cst_119 : f32 to vector<16x32xf32>
    %458 = arith.addf %457, %456 : vector<16x32xf32>
    %459 = arith.divf %457, %458 : vector<16x32xf32>
    %460 = vector.broadcast %359 : vector<1x32xf32> to vector<16x32xf32>
    %461 = arith.mulf %460, %431 : vector<16x32xf32>
    %462 = arith.addf %449, %461 : vector<16x32xf32>
    %463 = arith.negf %462 : vector<16x32xf32>
    %464 = math.exp %463 : vector<16x32xf32>
    %cst_120 = arith.constant 1.000000e+00 : f32
    %465 = vector.broadcast %cst_120 : f32 to vector<16x32xf32>
    %466 = arith.addf %465, %464 : vector<16x32xf32>
    %467 = arith.divf %465, %466 : vector<16x32xf32>
    %468 = math.tanh %450 : vector<16x32xf32>
    %469 = arith.mulf %467, %431 : vector<16x32xf32>
    %470 = arith.mulf %459, %468 : vector<16x32xf32>
    %471 = arith.addf %469, %470 : vector<16x32xf32>
    %472 = vector.broadcast %360 : vector<1x32xf32> to vector<16x32xf32>
    %473 = arith.mulf %472, %471 : vector<16x32xf32>
    %474 = arith.addf %451, %473 : vector<16x32xf32>
    %475 = arith.negf %474 : vector<16x32xf32>
    %476 = math.exp %475 : vector<16x32xf32>
    %cst_121 = arith.constant 1.000000e+00 : f32
    %477 = vector.broadcast %cst_121 : f32 to vector<16x32xf32>
    %478 = arith.addf %477, %476 : vector<16x32xf32>
    %479 = arith.divf %477, %478 : vector<16x32xf32>
    %480 = math.tanh %471 : vector<16x32xf32>
    %481 = arith.mulf %479, %480 : vector<16x32xf32>
    %c32_122 = arith.constant 32 : index
    %c0_123 = arith.constant 0 : index
    %482 = vector.load %arg25[%c32_122, %c0_123] : memref<128x32xf32, #tpu.memory_space<vmem>>, vector<16x32xf32>
    tpu.vector_store %arg25[%c32_122, %c0_123], %481 {strides = array<i32>} : memref<128x32xf32, #tpu.memory_space<vmem>>, vector<16x32xf32>,
    %c48_124 = arith.constant 48 : index
    %c0_125 = arith.constant 0 : index
    %483 = vector.load %arg23[%c48_124, %c0_125] : memref<128x128xf32, #tpu.memory_space<vmem>>, vector<16x128xf32>
    %cst_126 = arith.constant dense<0.000000e+00> : vector<16x128xf32>
    %484 = tpu.matmul %481, %355, %cst_126 {dimension_numbers = #tpu.dot_dimension_numbers<[1], [0], [0], [1], [0, 0, 1, 1], [], []>} : vector<16x32xf32>, vector<32x128xf32>, vector<16x128xf32> -> vector<16x128xf32>
    %485 = arith.addf %483, %484 : vector<16x128xf32>
    %486 = vector.broadcast %356 : vector<1x128xf32> to vector<16x128xf32>
    %487 = arith.addf %485, %486 : vector<16x128xf32>
    %488 = vector.extract_strided_slice %487 {offsets = [0, 0], sizes = [16, 32], strides = [1, 1]} : vector<16x128xf32> to vector<16x32xf32>
    %489 = vector.extract_strided_slice %487 {offsets = [0, 32], sizes = [16, 32], strides = [1, 1]} : vector<16x128xf32> to vector<16x32xf32>
    %490 = vector.extract_strided_slice %487 {offsets = [0, 64], sizes = [16, 32], strides = [1, 1]} : vector<16x128xf32> to vector<16x32xf32>
    %491 = vector.extract_strided_slice %487 {offsets = [0, 96], sizes = [16, 32], strides = [1, 1]} : vector<16x128xf32> to vector<16x32xf32>
    %492 = vector.broadcast %358 : vector<1x32xf32> to vector<16x32xf32>
    %493 = arith.mulf %492, %471 : vector<16x32xf32>
    %494 = arith.addf %488, %493 : vector<16x32xf32>
    %495 = arith.negf %494 : vector<16x32xf32>
    %496 = math.exp %495 : vector<16x32xf32>
    %cst_127 = arith.constant 1.000000e+00 : f32
    %497 = vector.broadcast %cst_127 : f32 to vector<16x32xf32>
    %498 = arith.addf %497, %496 : vector<16x32xf32>
    %499 = arith.divf %497, %498 : vector<16x32xf32>
    %500 = vector.broadcast %359 : vector<1x32xf32> to vector<16x32xf32>
    %501 = arith.mulf %500, %471 : vector<16x32xf32>
    %502 = arith.addf %489, %501 : vector<16x32xf32>
    %503 = arith.negf %502 : vector<16x32xf32>
    %504 = math.exp %503 : vector<16x32xf32>
    %cst_128 = arith.constant 1.000000e+00 : f32
    %505 = vector.broadcast %cst_128 : f32 to vector<16x32xf32>
    %506 = arith.addf %505, %504 : vector<16x32xf32>
    %507 = arith.divf %505, %506 : vector<16x32xf32>
    %508 = math.tanh %490 : vector<16x32xf32>
    %509 = arith.mulf %507, %471 : vector<16x32xf32>
    %510 = arith.mulf %499, %508 : vector<16x32xf32>
    %511 = arith.addf %509, %510 : vector<16x32xf32>
    %512 = vector.broadcast %360 : vector<1x32xf32> to vector<16x32xf32>
    %513 = arith.mulf %512, %511 : vector<16x32xf32>
    %514 = arith.addf %491, %513 : vector<16x32xf32>
    %515 = arith.negf %514 : vector<16x32xf32>
    %516 = math.exp %515 : vector<16x32xf32>
    %cst_129 = arith.constant 1.000000e+00 : f32
    %517 = vector.broadcast %cst_129 : f32 to vector<16x32xf32>
    %518 = arith.addf %517, %516 : vector<16x32xf32>
    %519 = arith.divf %517, %518 : vector<16x32xf32>
    %520 = math.tanh %511 : vector<16x32xf32>
    %521 = arith.mulf %519, %520 : vector<16x32xf32>
    %c48_130 = arith.constant 48 : index
    %c0_131 = arith.constant 0 : index
    %522 = vector.load %arg25[%c48_130, %c0_131] : memref<128x32xf32, #tpu.memory_space<vmem>>, vector<16x32xf32>
    tpu.vector_store %arg25[%c48_130, %c0_131], %521 {strides = array<i32>} : memref<128x32xf32, #tpu.memory_space<vmem>>, vector<16x32xf32>,
    %c64_132 = arith.constant 64 : index
    %c0_133 = arith.constant 0 : index
    %523 = vector.load %arg23[%c64_132, %c0_133] : memref<128x128xf32, #tpu.memory_space<vmem>>, vector<16x128xf32>
    %cst_134 = arith.constant dense<0.000000e+00> : vector<16x128xf32>
    %524 = tpu.matmul %521, %355, %cst_134 {dimension_numbers = #tpu.dot_dimension_numbers<[1], [0], [0], [1], [0, 0, 1, 1], [], []>} : vector<16x32xf32>, vector<32x128xf32>, vector<16x128xf32> -> vector<16x128xf32>
    %525 = arith.addf %523, %524 : vector<16x128xf32>
    %526 = vector.broadcast %356 : vector<1x128xf32> to vector<16x128xf32>
    %527 = arith.addf %525, %526 : vector<16x128xf32>
    %528 = vector.extract_strided_slice %527 {offsets = [0, 0], sizes = [16, 32], strides = [1, 1]} : vector<16x128xf32> to vector<16x32xf32>
    %529 = vector.extract_strided_slice %527 {offsets = [0, 32], sizes = [16, 32], strides = [1, 1]} : vector<16x128xf32> to vector<16x32xf32>
    %530 = vector.extract_strided_slice %527 {offsets = [0, 64], sizes = [16, 32], strides = [1, 1]} : vector<16x128xf32> to vector<16x32xf32>
    %531 = vector.extract_strided_slice %527 {offsets = [0, 96], sizes = [16, 32], strides = [1, 1]} : vector<16x128xf32> to vector<16x32xf32>
    %532 = vector.broadcast %358 : vector<1x32xf32> to vector<16x32xf32>
    %533 = arith.mulf %532, %511 : vector<16x32xf32>
    %534 = arith.addf %528, %533 : vector<16x32xf32>
    %535 = arith.negf %534 : vector<16x32xf32>
    %536 = math.exp %535 : vector<16x32xf32>
    %cst_135 = arith.constant 1.000000e+00 : f32
    %537 = vector.broadcast %cst_135 : f32 to vector<16x32xf32>
    %538 = arith.addf %537, %536 : vector<16x32xf32>
    %539 = arith.divf %537, %538 : vector<16x32xf32>
    %540 = vector.broadcast %359 : vector<1x32xf32> to vector<16x32xf32>
    %541 = arith.mulf %540, %511 : vector<16x32xf32>
    %542 = arith.addf %529, %541 : vector<16x32xf32>
    %543 = arith.negf %542 : vector<16x32xf32>
    %544 = math.exp %543 : vector<16x32xf32>
    %cst_136 = arith.constant 1.000000e+00 : f32
    %545 = vector.broadcast %cst_136 : f32 to vector<16x32xf32>
    %546 = arith.addf %545, %544 : vector<16x32xf32>
    %547 = arith.divf %545, %546 : vector<16x32xf32>
    %548 = math.tanh %530 : vector<16x32xf32>
    %549 = arith.mulf %547, %511 : vector<16x32xf32>
    %550 = arith.mulf %539, %548 : vector<16x32xf32>
    %551 = arith.addf %549, %550 : vector<16x32xf32>
    %552 = vector.broadcast %360 : vector<1x32xf32> to vector<16x32xf32>
    %553 = arith.mulf %552, %551 : vector<16x32xf32>
    %554 = arith.addf %531, %553 : vector<16x32xf32>
    %555 = arith.negf %554 : vector<16x32xf32>
    %556 = math.exp %555 : vector<16x32xf32>
    %cst_137 = arith.constant 1.000000e+00 : f32
    %557 = vector.broadcast %cst_137 : f32 to vector<16x32xf32>
    %558 = arith.addf %557, %556 : vector<16x32xf32>
    %559 = arith.divf %557, %558 : vector<16x32xf32>
    %560 = math.tanh %551 : vector<16x32xf32>
    %561 = arith.mulf %559, %560 : vector<16x32xf32>
    %c64_138 = arith.constant 64 : index
    %c0_139 = arith.constant 0 : index
    %562 = vector.load %arg25[%c64_138, %c0_139] : memref<128x32xf32, #tpu.memory_space<vmem>>, vector<16x32xf32>
    tpu.vector_store %arg25[%c64_138, %c0_139], %561 {strides = array<i32>} : memref<128x32xf32, #tpu.memory_space<vmem>>, vector<16x32xf32>,
    %c80_140 = arith.constant 80 : index
    %c0_141 = arith.constant 0 : index
    %563 = vector.load %arg23[%c80_140, %c0_141] : memref<128x128xf32, #tpu.memory_space<vmem>>, vector<16x128xf32>
    %cst_142 = arith.constant dense<0.000000e+00> : vector<16x128xf32>
    %564 = tpu.matmul %561, %355, %cst_142 {dimension_numbers = #tpu.dot_dimension_numbers<[1], [0], [0], [1], [0, 0, 1, 1], [], []>} : vector<16x32xf32>, vector<32x128xf32>, vector<16x128xf32> -> vector<16x128xf32>
    %565 = arith.addf %563, %564 : vector<16x128xf32>
    %566 = vector.broadcast %356 : vector<1x128xf32> to vector<16x128xf32>
    %567 = arith.addf %565, %566 : vector<16x128xf32>
    %568 = vector.extract_strided_slice %567 {offsets = [0, 0], sizes = [16, 32], strides = [1, 1]} : vector<16x128xf32> to vector<16x32xf32>
    %569 = vector.extract_strided_slice %567 {offsets = [0, 32], sizes = [16, 32], strides = [1, 1]} : vector<16x128xf32> to vector<16x32xf32>
    %570 = vector.extract_strided_slice %567 {offsets = [0, 64], sizes = [16, 32], strides = [1, 1]} : vector<16x128xf32> to vector<16x32xf32>
    %571 = vector.extract_strided_slice %567 {offsets = [0, 96], sizes = [16, 32], strides = [1, 1]} : vector<16x128xf32> to vector<16x32xf32>
    %572 = vector.broadcast %358 : vector<1x32xf32> to vector<16x32xf32>
    %573 = arith.mulf %572, %551 : vector<16x32xf32>
    %574 = arith.addf %568, %573 : vector<16x32xf32>
    %575 = arith.negf %574 : vector<16x32xf32>
    %576 = math.exp %575 : vector<16x32xf32>
    %cst_143 = arith.constant 1.000000e+00 : f32
    %577 = vector.broadcast %cst_143 : f32 to vector<16x32xf32>
    %578 = arith.addf %577, %576 : vector<16x32xf32>
    %579 = arith.divf %577, %578 : vector<16x32xf32>
    %580 = vector.broadcast %359 : vector<1x32xf32> to vector<16x32xf32>
    %581 = arith.mulf %580, %551 : vector<16x32xf32>
    %582 = arith.addf %569, %581 : vector<16x32xf32>
    %583 = arith.negf %582 : vector<16x32xf32>
    %584 = math.exp %583 : vector<16x32xf32>
    %cst_144 = arith.constant 1.000000e+00 : f32
    %585 = vector.broadcast %cst_144 : f32 to vector<16x32xf32>
    %586 = arith.addf %585, %584 : vector<16x32xf32>
    %587 = arith.divf %585, %586 : vector<16x32xf32>
    %588 = math.tanh %570 : vector<16x32xf32>
    %589 = arith.mulf %587, %551 : vector<16x32xf32>
    %590 = arith.mulf %579, %588 : vector<16x32xf32>
    %591 = arith.addf %589, %590 : vector<16x32xf32>
    %592 = vector.broadcast %360 : vector<1x32xf32> to vector<16x32xf32>
    %593 = arith.mulf %592, %591 : vector<16x32xf32>
    %594 = arith.addf %571, %593 : vector<16x32xf32>
    %595 = arith.negf %594 : vector<16x32xf32>
    %596 = math.exp %595 : vector<16x32xf32>
    %cst_145 = arith.constant 1.000000e+00 : f32
    %597 = vector.broadcast %cst_145 : f32 to vector<16x32xf32>
    %598 = arith.addf %597, %596 : vector<16x32xf32>
    %599 = arith.divf %597, %598 : vector<16x32xf32>
    %600 = math.tanh %591 : vector<16x32xf32>
    %601 = arith.mulf %599, %600 : vector<16x32xf32>
    %c80_146 = arith.constant 80 : index
    %c0_147 = arith.constant 0 : index
    %602 = vector.load %arg25[%c80_146, %c0_147] : memref<128x32xf32, #tpu.memory_space<vmem>>, vector<16x32xf32>
    tpu.vector_store %arg25[%c80_146, %c0_147], %601 {strides = array<i32>} : memref<128x32xf32, #tpu.memory_space<vmem>>, vector<16x32xf32>,
    %c96_148 = arith.constant 96 : index
    %c0_149 = arith.constant 0 : index
    %603 = vector.load %arg23[%c96_148, %c0_149] : memref<128x128xf32, #tpu.memory_space<vmem>>, vector<16x128xf32>
    %cst_150 = arith.constant dense<0.000000e+00> : vector<16x128xf32>
    %604 = tpu.matmul %601, %355, %cst_150 {dimension_numbers = #tpu.dot_dimension_numbers<[1], [0], [0], [1], [0, 0, 1, 1], [], []>} : vector<16x32xf32>, vector<32x128xf32>, vector<16x128xf32> -> vector<16x128xf32>
    %605 = arith.addf %603, %604 : vector<16x128xf32>
    %606 = vector.broadcast %356 : vector<1x128xf32> to vector<16x128xf32>
    %607 = arith.addf %605, %606 : vector<16x128xf32>
    %608 = vector.extract_strided_slice %607 {offsets = [0, 0], sizes = [16, 32], strides = [1, 1]} : vector<16x128xf32> to vector<16x32xf32>
    %609 = vector.extract_strided_slice %607 {offsets = [0, 32], sizes = [16, 32], strides = [1, 1]} : vector<16x128xf32> to vector<16x32xf32>
    %610 = vector.extract_strided_slice %607 {offsets = [0, 64], sizes = [16, 32], strides = [1, 1]} : vector<16x128xf32> to vector<16x32xf32>
    %611 = vector.extract_strided_slice %607 {offsets = [0, 96], sizes = [16, 32], strides = [1, 1]} : vector<16x128xf32> to vector<16x32xf32>
    %612 = vector.broadcast %358 : vector<1x32xf32> to vector<16x32xf32>
    %613 = arith.mulf %612, %591 : vector<16x32xf32>
    %614 = arith.addf %608, %613 : vector<16x32xf32>
    %615 = arith.negf %614 : vector<16x32xf32>
    %616 = math.exp %615 : vector<16x32xf32>
    %cst_151 = arith.constant 1.000000e+00 : f32
    %617 = vector.broadcast %cst_151 : f32 to vector<16x32xf32>
    %618 = arith.addf %617, %616 : vector<16x32xf32>
    %619 = arith.divf %617, %618 : vector<16x32xf32>
    %620 = vector.broadcast %359 : vector<1x32xf32> to vector<16x32xf32>
    %621 = arith.mulf %620, %591 : vector<16x32xf32>
    %622 = arith.addf %609, %621 : vector<16x32xf32>
    %623 = arith.negf %622 : vector<16x32xf32>
    %624 = math.exp %623 : vector<16x32xf32>
    %cst_152 = arith.constant 1.000000e+00 : f32
    %625 = vector.broadcast %cst_152 : f32 to vector<16x32xf32>
    %626 = arith.addf %625, %624 : vector<16x32xf32>
    %627 = arith.divf %625, %626 : vector<16x32xf32>
    %628 = math.tanh %610 : vector<16x32xf32>
    %629 = arith.mulf %627, %591 : vector<16x32xf32>
    %630 = arith.mulf %619, %628 : vector<16x32xf32>
    %631 = arith.addf %629, %630 : vector<16x32xf32>
    %632 = vector.broadcast %360 : vector<1x32xf32> to vector<16x32xf32>
    %633 = arith.mulf %632, %631 : vector<16x32xf32>
    %634 = arith.addf %611, %633 : vector<16x32xf32>
    %635 = arith.negf %634 : vector<16x32xf32>
    %636 = math.exp %635 : vector<16x32xf32>
    %cst_153 = arith.constant 1.000000e+00 : f32
    %637 = vector.broadcast %cst_153 : f32 to vector<16x32xf32>
    %638 = arith.addf %637, %636 : vector<16x32xf32>
    %639 = arith.divf %637, %638 : vector<16x32xf32>
    %640 = math.tanh %631 : vector<16x32xf32>
    %641 = arith.mulf %639, %640 : vector<16x32xf32>
    %c96_154 = arith.constant 96 : index
    %c0_155 = arith.constant 0 : index
    %642 = vector.load %arg25[%c96_154, %c0_155] : memref<128x32xf32, #tpu.memory_space<vmem>>, vector<16x32xf32>
    tpu.vector_store %arg25[%c96_154, %c0_155], %641 {strides = array<i32>} : memref<128x32xf32, #tpu.memory_space<vmem>>, vector<16x32xf32>,
    %c112_156 = arith.constant 112 : index
    %c0_157 = arith.constant 0 : index
    %643 = vector.load %arg23[%c112_156, %c0_157] : memref<128x128xf32, #tpu.memory_space<vmem>>, vector<16x128xf32>
    %cst_158 = arith.constant dense<0.000000e+00> : vector<16x128xf32>
    %644 = tpu.matmul %641, %355, %cst_158 {dimension_numbers = #tpu.dot_dimension_numbers<[1], [0], [0], [1], [0, 0, 1, 1], [], []>} : vector<16x32xf32>, vector<32x128xf32>, vector<16x128xf32> -> vector<16x128xf32>
    %645 = arith.addf %643, %644 : vector<16x128xf32>
    %646 = vector.broadcast %356 : vector<1x128xf32> to vector<16x128xf32>
    %647 = arith.addf %645, %646 : vector<16x128xf32>
    %648 = vector.extract_strided_slice %647 {offsets = [0, 0], sizes = [16, 32], strides = [1, 1]} : vector<16x128xf32> to vector<16x32xf32>
    %649 = vector.extract_strided_slice %647 {offsets = [0, 32], sizes = [16, 32], strides = [1, 1]} : vector<16x128xf32> to vector<16x32xf32>
    %650 = vector.extract_strided_slice %647 {offsets = [0, 64], sizes = [16, 32], strides = [1, 1]} : vector<16x128xf32> to vector<16x32xf32>
    %651 = vector.extract_strided_slice %647 {offsets = [0, 96], sizes = [16, 32], strides = [1, 1]} : vector<16x128xf32> to vector<16x32xf32>
    %652 = vector.broadcast %358 : vector<1x32xf32> to vector<16x32xf32>
    %653 = arith.mulf %652, %631 : vector<16x32xf32>
    %654 = arith.addf %648, %653 : vector<16x32xf32>
    %655 = arith.negf %654 : vector<16x32xf32>
    %656 = math.exp %655 : vector<16x32xf32>
    %cst_159 = arith.constant 1.000000e+00 : f32
    %657 = vector.broadcast %cst_159 : f32 to vector<16x32xf32>
    %658 = arith.addf %657, %656 : vector<16x32xf32>
    %659 = arith.divf %657, %658 : vector<16x32xf32>
    %660 = vector.broadcast %359 : vector<1x32xf32> to vector<16x32xf32>
    %661 = arith.mulf %660, %631 : vector<16x32xf32>
    %662 = arith.addf %649, %661 : vector<16x32xf32>
    %663 = arith.negf %662 : vector<16x32xf32>
    %664 = math.exp %663 : vector<16x32xf32>
    %cst_160 = arith.constant 1.000000e+00 : f32
    %665 = vector.broadcast %cst_160 : f32 to vector<16x32xf32>
    %666 = arith.addf %665, %664 : vector<16x32xf32>
    %667 = arith.divf %665, %666 : vector<16x32xf32>
    %668 = math.tanh %650 : vector<16x32xf32>
    %669 = arith.mulf %667, %631 : vector<16x32xf32>
    %670 = arith.mulf %659, %668 : vector<16x32xf32>
    %671 = arith.addf %669, %670 : vector<16x32xf32>
    %672 = vector.broadcast %360 : vector<1x32xf32> to vector<16x32xf32>
    %673 = arith.mulf %672, %671 : vector<16x32xf32>
    %674 = arith.addf %651, %673 : vector<16x32xf32>
    %675 = arith.negf %674 : vector<16x32xf32>
    %676 = math.exp %675 : vector<16x32xf32>
    %cst_161 = arith.constant 1.000000e+00 : f32
    %677 = vector.broadcast %cst_161 : f32 to vector<16x32xf32>
    %678 = arith.addf %677, %676 : vector<16x32xf32>
    %679 = arith.divf %677, %678 : vector<16x32xf32>
    %680 = math.tanh %671 : vector<16x32xf32>
    %681 = arith.mulf %679, %680 : vector<16x32xf32>
    %c112_162 = arith.constant 112 : index
    %c0_163 = arith.constant 0 : index
    %682 = vector.load %arg25[%c112_162, %c0_163] : memref<128x32xf32, #tpu.memory_space<vmem>>, vector<16x32xf32>
    tpu.vector_store %arg25[%c112_162, %c0_163], %681 {strides = array<i32>} : memref<128x32xf32, #tpu.memory_space<vmem>>, vector<16x32xf32>,
    %c0_164 = arith.constant 0 : index
    %c0_165 = arith.constant 0 : index
    %683 = vector.load %arg25[%c0_164, %c0_165] : memref<128x32xf32, #tpu.memory_space<vmem>>, vector<128x32xf32>
    %c0_166 = arith.constant 0 : index
    %c0_167 = arith.constant 0 : index
    %684 = vector.load %arg15[%c0_166, %c0_167] : memref<1x32xf32, #tpu.memory_space<vmem>>, vector<1x32xf32>
    %c0_168 = arith.constant 0 : index
    %c0_169 = arith.constant 0 : index
    %685 = vector.load %arg16[%c0_168, %c0_169] : memref<1x32xf32, #tpu.memory_space<vmem>>, vector<1x32xf32>
    %c0_170 = arith.constant 0 : index
    %c0_171 = arith.constant 0 : index
    %686 = vector.load %arg17[%c0_170, %c0_171] : memref<32x18xf32, #tpu.memory_space<vmem>>, vector<32x18xf32>
    %c0_172 = arith.constant 0 : index
    %c0_173 = arith.constant 0 : index
    %687 = vector.load %arg18[%c0_172, %c0_173] : memref<1x18xf32, #tpu.memory_space<vmem>>, vector<1x18xf32>
    %c0_174 = arith.constant 0 : index
    %c0_175 = arith.constant 0 : index
    %688 = vector.load %arg19[%c0_174, %c0_175] : memref<18x4xf32, #tpu.memory_space<vmem>>, vector<18x4xf32>
    %c0_176 = arith.constant 0 : index
    %c0_177 = arith.constant 0 : index
    %689 = vector.load %arg20[%c0_176, %c0_177] : memref<1x4xf32, #tpu.memory_space<vmem>>, vector<1x4xf32>
    %690 = math.tanh %683 : vector<128x32xf32>
    %691 = vector.broadcast %684 : vector<1x32xf32> to vector<128x32xf32>
    %692 = arith.mulf %690, %691 : vector<128x32xf32>
    %693 = vector.broadcast %685 : vector<1x32xf32> to vector<128x32xf32>
    %694 = arith.addf %692, %693 : vector<128x32xf32>
    %cst_178 = arith.constant dense<0.000000e+00> : vector<128x18xf32>
    %695 = tpu.matmul %694, %686, %cst_178 {dimension_numbers = #tpu.dot_dimension_numbers<[1], [0], [0], [1], [0, 0, 1, 1], [], []>} : vector<128x32xf32>, vector<32x18xf32>, vector<128x18xf32> -> vector<128x18xf32>
    %696 = vector.broadcast %687 : vector<1x18xf32> to vector<128x18xf32>
    %697 = arith.addf %695, %696 : vector<128x18xf32>
    %cst_179 = arith.constant 0.000000e+00 : f32
    %698 = vector.broadcast %cst_179 : f32 to vector<128x18xf32>
    %699 = arith.maximumf %697, %698 : vector<128x18xf32>
    %cst_180 = arith.constant dense<0.000000e+00> : vector<128x4xf32>
    %700 = tpu.matmul %699, %688, %cst_180 {dimension_numbers = #tpu.dot_dimension_numbers<[1], [0], [0], [1], [0, 0, 1, 1], [], []>} : vector<128x18xf32>, vector<18x4xf32>, vector<128x4xf32> -> vector<128x4xf32>
    %701 = vector.broadcast %689 : vector<1x4xf32> to vector<128x4xf32>
    %702 = arith.addf %700, %701 : vector<128x4xf32>
    %703 = arith.negf %702 : vector<128x4xf32>
    %704 = math.exp %703 : vector<128x4xf32>
    %cst_181 = arith.constant 1.000000e+00 : f32
    %705 = vector.broadcast %cst_181 : f32 to vector<128x4xf32>
    %706 = arith.addf %705, %704 : vector<128x4xf32>
    %707 = arith.divf %705, %706 : vector<128x4xf32>
    %c0_182 = arith.constant 0 : index
    %c0_183 = arith.constant 0 : index
    %708 = vector.load %arg21[%c0_182, %c0_183] : memref<128x4xf32, #tpu.memory_space<vmem>>, vector<128x4xf32>
    tpu.vector_store %arg21[%c0_182, %c0_183], %707 {strides = array<i32>} : memref<128x4xf32, #tpu.memory_space<vmem>>, vector<128x4xf32>,
    return
  }
}

</mosaic_0001>

<llo_original>
// kernel: tpu_custom_call.1
$region0: #{tpu_custom_call.1}
  #allocation0 [shape = 'u32[]', space=smem, size = 0x4, offset = 0x4, fixed_abs, tag = 'smem constant byte address 0x4 - core index']
  #allocation1 [shape = 'u32[72,128]{1,0:T(1,128)}', space=vmem, size = 0x9000, scoped, tag = 'internal scratch']
  #allocation2 [shape = 'f32[128,128]{1,0:T(8,128)}', space=vmem, size = 0x10000, scoped, tag = 'scratch operand']
  #allocation3 [shape = 'f32[128,128]{1,0:T(8,128)}', space=vmem, size = 0x10000, scoped, tag = 'scratch operand']
  #allocation4 [shape = 'f32[128,32]{1,0:T(8,128)}', space=vmem, size = 0x10000, scoped, tag = 'scratch operand']
  #allocation5 [shape = 'f32[128,32]{1,0:T(8,128)}', space=vmem, size = 0x10000, scoped, tag = 'scratch operand']
  %s0 = inlined_call_operand.vmem [shape: f32[128,4], index: 0, kind: input, shape index: {}]
  %s1 = inlined_call_operand.vmem [shape: f32[4,128], index: 1, kind: input, shape index: {}]
  %s2 = inlined_call_operand.vmem [shape: f32[32,128], index: 2, kind: input, shape index: {}]
  %s3 = inlined_call_operand.vmem [shape: f32[1,128], index: 3, kind: input, shape index: {}]
  %s4 = inlined_call_operand.vmem [shape: f32[3,32], index: 4, kind: input, shape index: {}]
  %s5 = inlined_call_operand.vmem [shape: f32[1,32], index: 5, kind: input, shape index: {}]
  %s6 = inlined_call_operand.vmem [shape: f32[1,32], index: 6, kind: input, shape index: {}]
  %s7 = inlined_call_operand.vmem [shape: f32[32,24], index: 7, kind: input, shape index: {}]
  %s8 = inlined_call_operand.vmem [shape: f32[1,24], index: 8, kind: input, shape index: {}]
  %s9 = inlined_call_operand.vmem [shape: f32[24,16], index: 9, kind: input, shape index: {}]
  %s10 = inlined_call_operand.vmem [shape: f32[1,16], index: 10, kind: input, shape index: {}]
  %s11 = inlined_call_operand.vmem [shape: f32[16,128], index: 11, kind: input, shape index: {}]
  %s12 = inlined_call_operand.vmem [shape: f32[32,128], index: 12, kind: input, shape index: {}]
  %s13 = inlined_call_operand.vmem [shape: f32[1,128], index: 13, kind: input, shape index: {}]
  %s14 = inlined_call_operand.vmem [shape: f32[3,32], index: 14, kind: input, shape index: {}]
  %s15 = inlined_call_operand.vmem [shape: f32[1,32], index: 15, kind: input, shape index: {}]
  %s16 = inlined_call_operand.vmem [shape: f32[1,32], index: 16, kind: input, shape index: {}]
  %s17 = inlined_call_operand.vmem [shape: f32[32,18], index: 17, kind: input, shape index: {}]
  %s18 = inlined_call_operand.vmem [shape: f32[1,18], index: 18, kind: input, shape index: {}]
  %s19 = inlined_call_operand.vmem [shape: f32[18,4], index: 19, kind: input, shape index: {}]
  %s20 = inlined_call_operand.vmem [shape: f32[1,4], index: 20, kind: input, shape index: {}]
  %s21 = inlined_call_operand.vmem [shape: f32[128,4], index: 21, kind: output, shape index: {}]
  %s22 = sld [smem:[#allocation0]]
  $region94: #{tpu_custom_call.1} parent=0
    _
  %s24 = ssub.s32 1, %s22
  %s25 = scalar_select 0, %s24, %s22
  // Predicated region
  $region2: #{tpu_custom_call.1} parent=0 // pred_check
    _
  $region3: #{tpu_custom_call.1} parent=0 // pred_check_branch
    %27 = sbr.rel (0) target = $region5
  $region4: #{tpu_custom_call.1} parent=0 // pred_region
    _
  $region5: #{tpu_custom_call.1} parent=0 // pred_fallthru
    _
  // Predicated region
  $region6: #{tpu_custom_call.1} parent=0 // pred_check
    _
  $region7: #{tpu_custom_call.1} parent=0 // pred_check_branch
    %29 = sbr.rel (0) target = $region9
  $region8: #{tpu_custom_call.1} parent=0 // pred_region
    _
  $region9: #{tpu_custom_call.1} parent=0 // pred_fallthru
    _
  // Predicated region
  $region10: #{tpu_custom_call.1} parent=0 // pred_check
    _
  $region11: #{tpu_custom_call.1} parent=0 // pred_check_branch
    %31 = sbr.rel (0) target = $region13
  $region12: #{tpu_custom_call.1} parent=0 // pred_region
    _
  $region13: #{tpu_custom_call.1} parent=0 // pred_fallthru
    _
  // Predicated region
  $region14: #{tpu_custom_call.1} parent=0 // pred_check
    _
  $region15: #{tpu_custom_call.1} parent=0 // pred_check_branch
    %33 = sbr.rel (0) target = $region17
  $region16: #{tpu_custom_call.1} parent=0 // pred_region
    _
  $region17: #{tpu_custom_call.1} parent=0 // pred_fallthru
    _
  // Predicated region
  $region18: #{tpu_custom_call.1} parent=0 // pred_check
    _
  $region19: #{tpu_custom_call.1} parent=0 // pred_check_branch
    %35 = sbr.rel (0) target = $region21
  $region20: #{tpu_custom_call.1} parent=0 // pred_region
    _
  $region21: #{tpu_custom_call.1} parent=0 // pred_fallthru
    _
  // Predicated region
  $region22: #{tpu_custom_call.1} parent=0 // pred_check
    _
  $region23: #{tpu_custom_call.1} parent=0 // pred_check_branch
    %37 = sbr.rel (0) target = $region25
  $region24: #{tpu_custom_call.1} parent=0 // pred_region
    _
  $region25: #{tpu_custom_call.1} parent=0 // pred_fallthru
    _
  // Predicated region
  $region26: #{tpu_custom_call.1} parent=0 // pred_check
    _
  $region27: #{tpu_custom_call.1} parent=0 // pred_check_branch
    %39 = sbr.rel (0) target = $region29
  $region28: #{tpu_custom_call.1} parent=0 // pred_region
    _
  $region29: #{tpu_custom_call.1} parent=0 // pred_fallthru
    _
  // Predicated region
  $region30: #{tpu_custom_call.1} parent=0 // pred_check
    _
  $region31: #{tpu_custom_call.1} parent=0 // pred_check_branch
    %41 = sbr.rel (0) target = $region33
  $region32: #{tpu_custom_call.1} parent=0 // pred_region
    _
  $region33: #{tpu_custom_call.1} parent=0 // pred_fallthru
    _
  // Predicated region
  $region34: #{tpu_custom_call.1} parent=0 // pred_check
    _
  $region35: #{tpu_custom_call.1} parent=0 // pred_check_branch
    %43 = sbr.rel (0) target = $region37
  $region36: #{tpu_custom_call.1} parent=0 // pred_region
    _
  $region37: #{tpu_custom_call.1} parent=0 // pred_fallthru
    _
  // Predicated region
  $region38: #{tpu_custom_call.1} parent=0 // pred_check
    _
  $region39: #{tpu_custom_call.1} parent=0 // pred_check_branch
    %45 = sbr.rel (0) target = $region41
  $region40: #{tpu_custom_call.1} parent=0 // pred_region
    _
  $region41: #{tpu_custom_call.1} parent=0 // pred_fallthru
    _
  // Predicated region
  $region42: #{tpu_custom_call.1} parent=0 // pred_check
    _
  $region43: #{tpu_custom_call.1} parent=0 // pred_check_branch
    %47 = sbr.rel (0) target = $region45
  $region44: #{tpu_custom_call.1} parent=0 // pred_region
    _
  $region45: #{tpu_custom_call.1} parent=0 // pred_fallthru
    _
  // Predicated region
  $region46: #{tpu_custom_call.1} parent=0 // pred_check
    _
  $region47: #{tpu_custom_call.1} parent=0 // pred_check_branch
    %49 = sbr.rel (0) target = $region49
  $region48: #{tpu_custom_call.1} parent=0 // pred_region
    _
  $region49: #{tpu_custom_call.1} parent=0 // pred_fallthru
    _
  // Predicated region
  $region50: #{tpu_custom_call.1} parent=0 // pred_check
    _
  $region51: #{tpu_custom_call.1} parent=0 // pred_check_branch
    %51 = sbr.rel (0) target = $region53
  $region52: #{tpu_custom_call.1} parent=0 // pred_region
    _
  $region53: #{tpu_custom_call.1} parent=0 // pred_fallthru
    _
  // Predicated region
  $region54: #{tpu_custom_call.1} parent=0 // pred_check
    _
  $region55: #{tpu_custom_call.1} parent=0 // pred_check_branch
    %53 = sbr.rel (0) target = $region57
  $region56: #{tpu_custom_call.1} parent=0 // pred_region
    _
  $region57: #{tpu_custom_call.1} parent=0 // pred_fallthru
    _
  // Predicated region
  $region58: #{tpu_custom_call.1} parent=0 // pred_check
    _
  $region59: #{tpu_custom_call.1} parent=0 // pred_check_branch
    %55 = sbr.rel (0) target = $region61
  $region60: #{tpu_custom_call.1} parent=0 // pred_region
    _
  $region61: #{tpu_custom_call.1} parent=0 // pred_fallthru
    _
  // Predicated region
  $region62: #{tpu_custom_call.1} parent=0 // pred_check
    _
  $region63: #{tpu_custom_call.1} parent=0 // pred_check_branch
    %57 = sbr.rel (0) target = $region65
  $region64: #{tpu_custom_call.1} parent=0 // pred_region
    _
  $region65: #{tpu_custom_call.1} parent=0 // pred_fallthru
    _
  // Predicated region
  $region66: #{tpu_custom_call.1} parent=0 // pred_check
    _
  $region67: #{tpu_custom_call.1} parent=0 // pred_check_branch
    %59 = sbr.rel (0) target = $region69
  $region68: #{tpu_custom_call.1} parent=0 // pred_region
    _
  $region69: #{tpu_custom_call.1} parent=0 // pred_fallthru
    _
  // Predicated region
  $region70: #{tpu_custom_call.1} parent=0 // pred_check
    _
  $region71: #{tpu_custom_call.1} parent=0 // pred_check_branch
    %61 = sbr.rel (0) target = $region73
  $region72: #{tpu_custom_call.1} parent=0 // pred_region
    _
  $region73: #{tpu_custom_call.1} parent=0 // pred_fallthru
    _
  // Predicated region
  $region74: #{tpu_custom_call.1} parent=0 // pred_check
    _
  $region75: #{tpu_custom_call.1} parent=0 // pred_check_branch
    %63 = sbr.rel (0) target = $region77
  $region76: #{tpu_custom_call.1} parent=0 // pred_region
    _
  $region77: #{tpu_custom_call.1} parent=0 // pred_fallthru
    _
  // Predicated region
  $region78: #{tpu_custom_call.1} parent=0 // pred_check
    _
  $region79: #{tpu_custom_call.1} parent=0 // pred_check_branch
    %65 = sbr.rel (0) target = $region81
  $region80: #{tpu_custom_call.1} parent=0 // pred_region
    _
  $region81: #{tpu_custom_call.1} parent=0 // pred_fallthru
    _
  // Predicated region
  $region82: #{tpu_custom_call.1} parent=0 // pred_check
    _
  $region83: #{tpu_custom_call.1} parent=0 // pred_check_branch
    %67 = sbr.rel (0) target = $region85
  $region84: #{tpu_custom_call.1} parent=0 // pred_region
    _
  $region85: #{tpu_custom_call.1} parent=0 // pred_fallthru
    _
  %v68 = vld [vmem:[%s0] sm:$0xff]
  %v69 = vld [vmem:[%s0 + $0x8] sm:$0xff]
  %v70 = vld [vmem:[%s0 + $0x10] sm:$0xff]
  %v71 = vld [vmem:[%s0 + $0x18] sm:$0xff]
  %v72 = vld [vmem:[%s0 + $0x20] sm:$0xff]
  %v73 = vld [vmem:[%s0 + $0x28] sm:$0xff]
  %v74 = vld [vmem:[%s0 + $0x30] sm:$0xff]
  %v75 = vld [vmem:[%s0 + $0x38] sm:$0xff]
  %v76 = vld [vmem:[%s0 + $0x40] sm:$0xff]
  %v77 = vld [vmem:[%s0 + $0x48] sm:$0xff]
  %v78 = vld [vmem:[%s0 + $0x50] sm:$0xff]
  %v79 = vld [vmem:[%s0 + $0x58] sm:$0xff]
  %v80 = vld [vmem:[%s0 + $0x60] sm:$0xff]
  %v81 = vld [vmem:[%s0 + $0x68] sm:$0xff]
  %v82 = vld [vmem:[%s0 + $0x70] sm:$0xff]
  %v83 = vld [vmem:[%s0 + $0x78] sm:$0xff]
  %v84 = vld [vmem:[%s1] sm:$0xf]
  %vm85 = vcmask 31744
  %v87 = vsel %vm85, %v68, 0
  %v90 = vsel %vm85, %v69, 0
  %v93 = vsel %vm85, %v70, 0
  %v96 = vsel %vm85, %v71, 0
  %v99 = vsel %vm85, %v72, 0
  %v102 = vsel %vm85, %v73, 0
  %v105 = vsel %vm85, %v74, 0
  %v108 = vsel %vm85, %v75, 0
  %v111 = vsel %vm85, %v76, 0
  %v114 = vsel %vm85, %v77, 0
  %v117 = vsel %vm85, %v78, 0
  %v120 = vsel %vm85, %v79, 0
  %v123 = vsel %vm85, %v80, 0
  %v126 = vsel %vm85, %v81, 0
  %v129 = vsel %vm85, %v82, 0
  %v132 = vsel %vm85, %v83, 0
  %vm134 = vcmask 1043456
  %v136 = vsel %vm134, %v84, 0
  %138 = vmatpush.msra.mxu0 0.0
  %139 = vmatpush.msra.mxu0 0.0
  %140 = vmatpush.msra.mxu0 0.0
  %141 = vmatpush.msra.mxu0 0.0
  %142 = vmatpush.msra.mxu0 0.0
  %143 = vmatpush.msra.mxu0 0.0
  %144 = vmatpush.msra.mxu0 0.0
  %145 = vmatpush.msra.mxu0 0.0
  %146 = vmatpush.msra.mxu0 0.0
  %147 = vmatpush.msra.mxu0 0.0
  %148 = vmatpush.msra.mxu0 0.0
  %149 = vmatpush.msra.mxu0 0.0
  %150 = vmatpush.msra.mxu0 0.0
  %151 = vmatpush.msra.mxu0 0.0
  %152 = vmatpush.msra.mxu0 0.0
  %153 = vmatpush.msra.mxu0 %v136
  %154 = vmatmul.f32.gmra.mxu0 %v87
  %v155 = vpop.f32.mrf.mxu0
  %v156 = vadd.f32 0.0, %v155
  %157 = vmatmul.f32.gmra.mxu0 %v90
  %v158 = vpop.f32.mrf.mxu0
  %v159 = vadd.f32 0.0, %v158
  %160 = vmatmul.f32.gmra.mxu0 %v93
  %v161 = vpop.f32.mrf.mxu0
  %v162 = vadd.f32 0.0, %v161
  %163 = vmatmul.f32.gmra.mxu0 %v96
  %v164 = vpop.f32.mrf.mxu0
  %v165 = vadd.f32 0.0, %v164
  %166 = vmatmul.f32.gmra.mxu0 %v99
  %v167 = vpop.f32.mrf.mxu0
  %v168 = vadd.f32 0.0, %v167
  %169 = vmatmul.f32.gmra.mxu0 %v102
  %v170 = vpop.f32.mrf.mxu0
  %v171 = vadd.f32 0.0, %v170
  %172 = vmatmul.f32.gmra.mxu0 %v105
  %v173 = vpop.f32.mrf.mxu0
  %v174 = vadd.f32 0.0, %v173
  %175 = vmatmul.f32.gmra.mxu0 %v108
  %v176 = vpop.f32.mrf.mxu0
  %v177 = vadd.f32 0.0, %v176
  %178 = vmatmul.f32.gmra.mxu0 %v111
  %v179 = vpop.f32.mrf.mxu0
  %v180 = vadd.f32 0.0, %v179
  %181 = vmatmul.f32.gmra.mxu0 %v114
  %v182 = vpop.f32.mrf.mxu0
  %v183 = vadd.f32 0.0, %v182
  %184 = vmatmul.f32.gmra.mxu0 %v117
  %v185 = vpop.f32.mrf.mxu0
  %v186 = vadd.f32 0.0, %v185
  %187 = vmatmul.f32.gmra.mxu0 %v120
  %v188 = vpop.f32.mrf.mxu0
  %v189 = vadd.f32 0.0, %v188
  %190 = vmatmul.f32.gmra.mxu0 %v123
  %v191 = vpop.f32.mrf.mxu0
  %v192 = vadd.f32 0.0, %v191
  %193 = vmatmul.f32.gmra.mxu0 %v126
  %v194 = vpop.f32.mrf.mxu0
  %v195 = vadd.f32 0.0, %v194
  %196 = vmatmul.f32.gmra.mxu0 %v129
  %v197 = vpop.f32.mrf.mxu0
  %v198 = vadd.f32 0.0, %v197
  %199 = vmatmul.f32.gmra.mxu0 %v132
  %v200 = vpop.f32.mrf.mxu0
  %v201 = vadd.f32 0.0, %v200
  %202 = vdwg.mxu0
  %203 = vst [vmem:[#allocation2] sm:$0xff] %v156
  %204 = vst [vmem:[#allocation2 + $0x8] sm:$0xff] %v159
  %205 = vst [vmem:[#allocation2 + $0x10] sm:$0xff] %v162
  %206 = vst [vmem:[#allocation2 + $0x18] sm:$0xff] %v165
  %207 = vst [vmem:[#allocation2 + $0x20] sm:$0xff] %v168
  %208 = vst [vmem:[#allocation2 + $0x28] sm:$0xff] %v171
  %209 = vst [vmem:[#allocation2 + $0x30] sm:$0xff] %v174
  %210 = vst [vmem:[#allocation2 + $0x38] sm:$0xff] %v177
  %211 = vst [vmem:[#allocation2 + $0x40] sm:$0xff] %v180
  %212 = vst [vmem:[#allocation2 + $0x48] sm:$0xff] %v183
  %213 = vst [vmem:[#allocation2 + $0x50] sm:$0xff] %v186
  %214 = vst [vmem:[#allocation2 + $0x58] sm:$0xff] %v189
  %215 = vst [vmem:[#allocation2 + $0x60] sm:$0xff] %v192
  %216 = vst [vmem:[#allocation2 + $0x68] sm:$0xff] %v195
  %217 = vst [vmem:[#allocation2 + $0x70] sm:$0xff] %v198
  %218 = vst [vmem:[#allocation2 + $0x78] sm:$0xff] %v201
  %v219 = vld [vmem:[%s2] sm:$0xff]
  %v220 = vld [vmem:[%s2 + $0x8] sm:$0xff]
  %v221 = vld [vmem:[%s2 + $0x10] sm:$0xff]
  %v222 = vld [vmem:[%s2 + $0x18] sm:$0xff]
  %v223 = vld [vmem:[%s3] sm:$0x1]
  %v224 = vld [vmem:[%s4] sm:$0x7]
  %v225 = vld [vmem:[#allocation2] sm:$0xff]
  %v226 = vld [vmem:[#allocation2 + $0x8] sm:$0xff]
  %vm227 = vcmask 261120
  %v229 = vsel %vm227, 0.0, 0
  %231 = vmatpush.msra.mxu0 0.0
  %232 = vmatpush.msra.mxu0 0.0
  %233 = vmatpush.msra.mxu0 0.0
  %234 = vmatpush.msra.mxu0 0.0
  %235 = vmatpush.msra.mxu0 0.0
  %236 = vmatpush.msra.mxu0 0.0
  %237 = vmatpush.msra.mxu0 0.0
  %238 = vmatpush.msra.mxu0 0.0
  %239 = vmatpush.msra.mxu0 0.0
  %240 = vmatpush.msra.mxu0 0.0
  %241 = vmatpush.msra.mxu0 0.0
  %242 = vmatpush.msra.mxu0 0.0
  %243 = vmatpush.msra.mxu0 %v222
  %244 = vmatpush.msra.mxu0 %v221
  %245 = vmatpush.msra.mxu0 %v220
  %246 = vmatpush.msra.mxu0 %v219
  %247 = vmatmul.f32.gmra.mxu0 %v229
  %v248 = vpop.f32.mrf.mxu0
  %v249 = vadd.f32 0.0, %v248
  %250 = vmatmul.f32.gmra.mxu0 %v229
  %v251 = vpop.f32.mrf.mxu0
  %v252 = vadd.f32 0.0, %v251
  %253 = vdwg.mxu0
  %v254 = vadd.f32 %v225, %v249
  %v255 = vadd.f32 %v226, %v252
  %v257 = vperm.slane %v223, 0
  %v259 = vadd.f32 %v254, %v257
  %v260 = vadd.f32 %v255, %v257
  %v261 = vperm.slane %v224, 0
  %v262 = vmul.f32 %v261, 0.0
  %v263 = vadd.f32 %v259, %v262
  %v264 = vadd.f32 %v260, %v262
  %v265 = vxor.u32 %v263, 2147483648
  %v266 = vxor.u32 %v264, 2147483648
  %v267 = vmul.f32 %v265, 1.442695
  %v268 = vpow.pop %v267
  %v269 = vmul.f32 %v266, 1.442695
  %v270 = vpow.pop %v269
  %v271 = vadd.f32 %v268, 1.0
  %v272 = vadd.f32 %v270, 1.0
  %v273 = vrcp.pop %v271
  %v274 = vmul.f32 %v271, %v273
  %v275 = vsub.f32 1.0, %v274
  %v276 = vmul.f32 %v273, %v275
  %v277 = vadd.f32 %v273, %v276
  %vm278 = vweird.f32 %v271
  %vm279 = vweird.f32 %v273
  %vm280 = vmor %vm278, %vm279
  %v281 = vsel %vm280, %v273, %v277
  %v282 = vand.u32 2147483647, %v271
  %vm283 = vcmp.eq.f32.partialorder %v282, 8.507059e+37
  %v284 = vand.u32 %v271, 2147483648
  %v285 = vor.u32 1.1754944e-38, %v284
  %v286 = vsel %vm283, %v285, %v281
  %v287 = vmul.f32 1.0, %v286
  %v288 = vrcp.pop %v272
  %v289 = vmul.f32 %v272, %v288
  %v290 = vsub.f32 1.0, %v289
  %v291 = vmul.f32 %v288, %v290
  %v292 = vadd.f32 %v288, %v291
  %vm293 = vweird.f32 %v272
  %vm294 = vweird.f32 %v288
  %vm295 = vmor %vm293, %vm294
  %v296 = vsel %vm295, %v288, %v292
  %v297 = vand.u32 2147483647, %v272
  %vm298 = vcmp.eq.f32.partialorder %v297, 8.507059e+37
  %v299 = vand.u32 %v272, 2147483648
  %v300 = vor.u32 1.1754944e-38, %v299
  %v301 = vsel %vm298, %v300, %v296
  %v302 = vmul.f32 1.0, %v301
  %v303 = vperm.slane %v224, 1
  %v304 = vmul.f32 %v303, 0.0
  %306 = vrot.lane.b32.xlu0 %v304, 32
  %v307 = vpop.permute.xlu0 %306
  %v309 = vadd.f32 %v259, %v307
  %v310 = vadd.f32 %v260, %v307
  %v311 = vxor.u32 %v309, 2147483648
  %v312 = vxor.u32 %v310, 2147483648
  %v313 = vmul.f32 %v311, 1.442695
  %v314 = vpow.pop %v313
  %v315 = vmul.f32 %v312, 1.442695
  %v316 = vpow.pop %v315
  %v317 = vadd.f32 %v314, 1.0
  %v318 = vadd.f32 %v316, 1.0
  %v319 = vrcp.pop %v317
  %v320 = vmul.f32 %v317, %v319
  %v321 = vsub.f32 1.0, %v320
  %v322 = vmul.f32 %v319, %v321
  %v323 = vadd.f32 %v319, %v322
  %vm324 = vweird.f32 %v317
  %vm325 = vweird.f32 %v319
  %vm326 = vmor %vm324, %vm325
  %v327 = vsel %vm326, %v319, %v323
  %v328 = vand.u32 2147483647, %v317
  %vm329 = vcmp.eq.f32.partialorder %v328, 8.507059e+37
  %v330 = vand.u32 %v317, 2147483648
  %v331 = vor.u32 1.1754944e-38, %v330
  %v332 = vsel %vm329, %v331, %v327
  %v333 = vmul.f32 1.0, %v332
  %v334 = vrcp.pop %v318
  %v335 = vmul.f32 %v318, %v334
  %v336 = vsub.f32 1.0, %v335
  %v337 = vmul.f32 %v334, %v336
  %v338 = vadd.f32 %v334, %v337
  %vm339 = vweird.f32 %v318
  %vm340 = vweird.f32 %v334
  %vm341 = vmor %vm339, %vm340
  %v342 = vsel %vm341, %v334, %v338
  %v343 = vand.u32 2147483647, %v318
  %vm344 = vcmp.eq.f32.partialorder %v343, 8.507059e+37
  %v345 = vand.u32 %v318, 2147483648
  %v346 = vor.u32 1.1754944e-38, %v345
  %v347 = vsel %vm344, %v346, %v342
  %v348 = vmul.f32 1.0, %v347
  %v349 = vtanh.pop %v259
  %v350 = vtanh.pop %v260
  %v351 = vmul.f32 %v333, 0.0
  %v352 = vmul.f32 %v348, 0.0
  %355 = vrot.lane.b32.xlu0 %v349, 64
  %v356 = vpop.permute.xlu0 %355
  %357 = vrot.lane.b32.xlu0 %v350, 64
  %v358 = vpop.permute.xlu0 %357
  %v361 = vmul.f32 %v287, %v356
  %v362 = vmul.f32 %v302, %v358
  %365 = vrot.lane.b32.xlu0 %v361, 32
  %v366 = vpop.permute.xlu0 %365
  %367 = vrot.lane.b32.xlu0 %v362, 32
  %v368 = vpop.permute.xlu0 %367
  %v371 = vadd.f32 %v351, %v366
  %v372 = vadd.f32 %v352, %v368
  %v373 = vperm.slane %v224, 2
  %376 = vrot.lane.b32.xlu0 %v371, 96
  %v377 = vpop.permute.xlu0 %376
  %378 = vrot.lane.b32.xlu0 %v372, 96
  %v379 = vpop.permute.xlu0 %378
  %v382 = vmul.f32 %v373, %v377
  %v383 = vmul.f32 %v373, %v379
  %386 = vrot.lane.b32.xlu0 %v382, 96
  %v387 = vpop.permute.xlu0 %386
  %388 = vrot.lane.b32.xlu0 %v383, 96
  %v389 = vpop.permute.xlu0 %388
  %v392 = vadd.f32 %v259, %v387
  %v393 = vadd.f32 %v260, %v389
  %v394 = vxor.u32 %v392, 2147483648
  %v395 = vxor.u32 %v393, 2147483648
  %v396 = vmul.f32 %v394, 1.442695
  %v397 = vpow.pop %v396
  %v398 = vmul.f32 %v395, 1.442695
  %v399 = vpow.pop %v398
  %v400 = vadd.f32 %v397, 1.0
  %v401 = vadd.f32 %v399, 1.0
  %v402 = vrcp.pop %v400
  %v403 = vmul.f32 %v400, %v402
  %v404 = vsub.f32 1.0, %v403
  %v405 = vmul.f32 %v402, %v404
  %v406 = vadd.f32 %v402, %v405
  %vm407 = vweird.f32 %v400
  %vm408 = vweird.f32 %v402
  %vm409 = vmor %vm407, %vm408
  %v410 = vsel %vm409, %v402, %v406
  %v411 = vand.u32 2147483647, %v400
  %vm412 = vcmp.eq.f32.partialorder %v411, 8.507059e+37
  %v413 = vand.u32 %v400, 2147483648
  %v414 = vor.u32 1.1754944e-38, %v413
  %v415 = vsel %vm412, %v414, %v410
  %v416 = vmul.f32 1.0, %v415
  %v417 = vrcp.pop %v401
  %v418 = vmul.f32 %v401, %v417
  %v419 = vsub.f32 1.0, %v418
  %v420 = vmul.f32 %v417, %v419
  %v421 = vadd.f32 %v417, %v420
  %vm422 = vweird.f32 %v401
  %vm423 = vweird.f32 %v417
  %vm424 = vmor %vm422, %vm423
  %v425 = vsel %vm424, %v417, %v421
  %v426 = vand.u32 2147483647, %v401
  %vm427 = vcmp.eq.f32.partialorder %v426, 8.507059e+37
  %v428 = vand.u32 %v401, 2147483648
  %v429 = vor.u32 1.1754944e-38, %v428
  %v430 = vsel %vm427, %v429, %v425
  %v431 = vmul.f32 1.0, %v430
  %v432 = vtanh.pop %v371
  %v433 = vtanh.pop %v372
  %436 = vrot.lane.b32.xlu0 %v432, 64
  %v437 = vpop.permute.xlu0 %436
  %438 = vrot.lane.b32.xlu0 %v433, 64
  %v439 = vpop.permute.xlu0 %438
  %v442 = vmul.f32 %v416, %v437
  %v443 = vmul.f32 %v431, %v439
  %446 = vrot.lane.b32.xlu0 %v442, 32
  %v447 = vpop.permute.xlu0 %446
  %448 = vrot.lane.b32.xlu0 %v443, 32
  %v449 = vpop.permute.xlu0 %448
  %452 = vst.msk [vmem:[#allocation4] sm:$0xff] %vm227, %v447
  %453 = vst.msk [vmem:[#allocation4 + $0x8] sm:$0xff] %vm227, %v449
  %v454 = vld [vmem:[#allocation2 + $0x10] sm:$0xff]
  %v455 = vld [vmem:[#allocation2 + $0x18] sm:$0xff]
  %v456 = vsel %vm227, %v447, 0
  %v458 = vsel %vm227, %v449, 0
  %460 = vmatpush.msra.mxu0 0.0
  %461 = vmatpush.msra.mxu0 0.0
  %462 = vmatpush.msra.mxu0 0.0
  %463 = vmatpush.msra.mxu0 0.0
  %464 = vmatpush.msra.mxu0 0.0
  %465 = vmatpush.msra.mxu0 0.0
  %466 = vmatpush.msra.mxu0 0.0
  %467 = vmatpush.msra.mxu0 0.0
  %468 = vmatpush.msra.mxu0 0.0
  %469 = vmatpush.msra.mxu0 0.0
  %470 = vmatpush.msra.mxu0 0.0
  %471 = vmatpush.msra.mxu0 0.0
  %472 = vmatpush.msra.mxu0 %v222
  %473 = vmatpush.msra.mxu0 %v221
  %474 = vmatpush.msra.mxu0 %v220
  %475 = vmatpush.msra.mxu0 %v219
  %476 = vmatmul.f32.gmra.mxu0 %v456
  %v477 = vpop.f32.mrf.mxu0
  %v478 = vadd.f32 0.0, %v477
  %479 = vmatmul.f32.gmra.mxu0 %v458
  %v480 = vpop.f32.mrf.mxu0
  %v481 = vadd.f32 0.0, %v480
  %482 = vdwg.mxu0
  %v483 = vadd.f32 %v454, %v478
  %v484 = vadd.f32 %v455, %v481
  %v485 = vadd.f32 %v483, %v257
  %v486 = vadd.f32 %v484, %v257
  %v487 = vmul.f32 %v261, %v377
  %v488 = vmul.f32 %v261, %v379
  %v489 = vadd.f32 %v485, %v487
  %v490 = vadd.f32 %v486, %v488
  %v491 = vxor.u32 %v489, 2147483648
  %v492 = vxor.u32 %v490, 2147483648
  %v493 = vmul.f32 %v491, 1.442695
  %v494 = vpow.pop %v493
  %v495 = vmul.f32 %v492, 1.442695
  %v496 = vpow.pop %v495
  %v497 = vadd.f32 %v494, 1.0
  %v498 = vadd.f32 %v496, 1.0
  %v499 = vrcp.pop %v497
  %v500 = vmul.f32 %v497, %v499
  %v501 = vsub.f32 1.0, %v500
  %v502 = vmul.f32 %v499, %v501
  %v503 = vadd.f32 %v499, %v502
  %vm504 = vweird.f32 %v497
  %vm505 = vweird.f32 %v499
  %vm506 = vmor %vm504, %vm505
  %v507 = vsel %vm506, %v499, %v503
  %v508 = vand.u32 2147483647, %v497
  %vm509 = vcmp.eq.f32.partialorder %v508, 8.507059e+37
  %v510 = vand.u32 %v497, 2147483648
  %v511 = vor.u32 1.1754944e-38, %v510
  %v512 = vsel %vm509, %v511, %v507
  %v513 = vmul.f32 1.0, %v512
  %v514 = vrcp.pop %v498
  %v515 = vmul.f32 %v498, %v514
  %v516 = vsub.f32 1.0, %v515
  %v517 = vmul.f32 %v514, %v516
  %v518 = vadd.f32 %v514, %v517
  %vm519 = vweird.f32 %v498
  %vm520 = vweird.f32 %v514
  %vm521 = vmor %vm519, %vm520
  %v522 = vsel %vm521, %v514, %v518
  %v523 = vand.u32 2147483647, %v498
  %vm524 = vcmp.eq.f32.partialorder %v523, 8.507059e+37
  %v525 = vand.u32 %v498, 2147483648
  %v526 = vor.u32 1.1754944e-38, %v525
  %v527 = vsel %vm524, %v526, %v522
  %v528 = vmul.f32 1.0, %v527
  %v529 = vmul.f32 %v303, %v377
  %v530 = vmul.f32 %v303, %v379
  %533 = vrot.lane.b32.xlu0 %v529, 32
  %v534 = vpop.permute.xlu0 %533
  %535 = vrot.lane.b32.xlu0 %v530, 32
  %v536 = vpop.permute.xlu0 %535
  %v539 = vadd.f32 %v485, %v534
  %v540 = vadd.f32 %v486, %v536
  %v541 = vxor.u32 %v539, 2147483648
  %v542 = vxor.u32 %v540, 2147483648
  %v543 = vmul.f32 %v541, 1.442695
  %v544 = vpow.pop %v543
  %v545 = vmul.f32 %v542, 1.442695
  %v546 = vpow.pop %v545
  %v547 = vadd.f32 %v544, 1.0
  %v548 = vadd.f32 %v546, 1.0
  %v549 = vrcp.pop %v547
  %v550 = vmul.f32 %v547, %v549
  %v551 = vsub.f32 1.0, %v550
  %v552 = vmul.f32 %v549, %v551
  %v553 = vadd.f32 %v549, %v552
  %vm554 = vweird.f32 %v547
  %vm555 = vweird.f32 %v549
  %vm556 = vmor %vm554, %vm555
  %v557 = vsel %vm556, %v549, %v553
  %v558 = vand.u32 2147483647, %v547
  %vm559 = vcmp.eq.f32.partialorder %v558, 8.507059e+37
  %v560 = vand.u32 %v547, 2147483648
  %v561 = vor.u32 1.1754944e-38, %v560
  %v562 = vsel %vm559, %v561, %v557
  %v563 = vmul.f32 1.0, %v562
  %v564 = vrcp.pop %v548
  %v565 = vmul.f32 %v548, %v564
  %v566 = vsub.f32 1.0, %v565
  %v567 = vmul.f32 %v564, %v566
  %v568 = vadd.f32 %v564, %v567
  %vm569 = vweird.f32 %v548
  %vm570 = vweird.f32 %v564
  %vm571 = vmor %vm569, %vm570
  %v572 = vsel %vm571, %v564, %v568
  %v573 = vand.u32 2147483647, %v548
  %vm574 = vcmp.eq.f32.partialorder %v573, 8.507059e+37
  %v575 = vand.u32 %v548, 2147483648
  %v576 = vor.u32 1.1754944e-38, %v575
  %v577 = vsel %vm574, %v576, %v572
  %v578 = vmul.f32 1.0, %v577
  %v579 = vtanh.pop %v485
  %v580 = vtanh.pop %v486
  %v581 = vmul.f32 %v563, %v371
  %v582 = vmul.f32 %v578, %v372
  %585 = vrot.lane.b32.xlu0 %v579, 64
  %v586 = vpop.permute.xlu0 %585
  %587 = vrot.lane.b32.xlu0 %v580, 64
  %v588 = vpop.permute.xlu0 %587
  %v591 = vmul.f32 %v513, %v586
  %v592 = vmul.f32 %v528, %v588
  %595 = vrot.lane.b32.xlu0 %v591, 32
  %v596 = vpop.permute.xlu0 %595
  %597 = vrot.lane.b32.xlu0 %v592, 32
  %v598 = vpop.permute.xlu0 %597
  %v601 = vadd.f32 %v581, %v596
  %v602 = vadd.f32 %v582, %v598
  %605 = vrot.lane.b32.xlu0 %v601, 96
  %v606 = vpop.permute.xlu0 %605
  %607 = vrot.lane.b32.xlu0 %v602, 96
  %v608 = vpop.permute.xlu0 %607
  %v611 = vmul.f32 %v373, %v606
  %v612 = vmul.f32 %v373, %v608
  %615 = vrot.lane.b32.xlu0 %v611, 96
  %v616 = vpop.permute.xlu0 %615
  %617 = vrot.lane.b32.xlu0 %v612, 96
  %v618 = vpop.permute.xlu0 %617
  %v621 = vadd.f32 %v485, %v616
  %v622 = vadd.f32 %v486, %v618
  %v623 = vxor.u32 %v621, 2147483648
  %v624 = vxor.u32 %v622, 2147483648
  %v625 = vmul.f32 %v623, 1.442695
  %v626 = vpow.pop %v625
  %v627 = vmul.f32 %v624, 1.442695
  %v628 = vpow.pop %v627
  %v629 = vadd.f32 %v626, 1.0
  %v630 = vadd.f32 %v628, 1.0
  %v631 = vrcp.pop %v629
  %v632 = vmul.f32 %v629, %v631
  %v633 = vsub.f32 1.0, %v632
  %v634 = vmul.f32 %v631, %v633
  %v635 = vadd.f32 %v631, %v634
  %vm636 = vweird.f32 %v629
  %vm637 = vweird.f32 %v631
  %vm638 = vmor %vm636, %vm637
  %v639 = vsel %vm638, %v631, %v635
  %v640 = vand.u32 2147483647, %v629
  %vm641 = vcmp.eq.f32.partialorder %v640, 8.507059e+37
  %v642 = vand.u32 %v629, 2147483648
  %v643 = vor.u32 1.1754944e-38, %v642
  %v644 = vsel %vm641, %v643, %v639
  %v645 = vmul.f32 1.0, %v644
  %v646 = vrcp.pop %v630
  %v647 = vmul.f32 %v630, %v646
  %v648 = vsub.f32 1.0, %v647
  %v649 = vmul.f32 %v646, %v648
  %v650 = vadd.f32 %v646, %v649
  %vm651 = vweird.f32 %v630
  %vm652 = vweird.f32 %v646
  %vm653 = vmor %vm651, %vm652
  %v654 = vsel %vm653, %v646, %v650
  %v655 = vand.u32 2147483647, %v630
  %vm656 = vcmp.eq.f32.partialorder %v655, 8.507059e+37
  %v657 = vand.u32 %v630, 2147483648
  %v658 = vor.u32 1.1754944e-38, %v657
  %v659 = vsel %vm656, %v658, %v654
  %v660 = vmul.f32 1.0, %v659
  %v661 = vtanh.pop %v601
  %v662 = vtanh.pop %v602
  %665 = vrot.lane.b32.xlu0 %v661, 64
  %v666 = vpop.permute.xlu0 %665
  %667 = vrot.lane.b32.xlu0 %v662, 64
  %v668 = vpop.permute.xlu0 %667
  %v671 = vmul.f32 %v645, %v666
  %v672 = vmul.f32 %v660, %v668
  %675 = vrot.lane.b32.xlu0 %v671, 32
  %v676 = vpop.permute.xlu0 %675
  %677 = vrot.lane.b32.xlu0 %v672, 32
  %v678 = vpop.permute.xlu0 %677
  %681 = vst.msk [vmem:[#allocation4 + $0x10] sm:$0xff] %vm227, %v676
  %682 = vst.msk [vmem:[#allocation4 + $0x18] sm:$0xff] %vm227, %v678
  %v683 = vld [vmem:[#allocation2 + $0x20] sm:$0xff]
  %v684 = vld [vmem:[#allocation2 + $0x28] sm:$0xff]
  %v685 = vsel %vm227, %v676, 0
  %v687 = vsel %vm227, %v678, 0
  %689 = vmatpush.msra.mxu0 0.0
  %690 = vmatpush.msra.mxu0 0.0
  %691 = vmatpush.msra.mxu0 0.0
  %692 = vmatpush.msra.mxu0 0.0
  %693 = vmatpush.msra.mxu0 0.0
  %694 = vmatpush.msra.mxu0 0.0
  %695 = vmatpush.msra.mxu0 0.0
  %696 = vmatpush.msra.mxu0 0.0
  %697 = vmatpush.msra.mxu0 0.0
  %698 = vmatpush.msra.mxu0 0.0
  %699 = vmatpush.msra.mxu0 0.0
  %700 = vmatpush.msra.mxu0 0.0
  %701 = vmatpush.msra.mxu0 %v222
  %702 = vmatpush.msra.mxu0 %v221
  %703 = vmatpush.msra.mxu0 %v220
  %704 = vmatpush.msra.mxu0 %v219
  %705 = vmatmul.f32.gmra.mxu0 %v685
  %v706 = vpop.f32.mrf.mxu0
  %v707 = vadd.f32 0.0, %v706
  %708 = vmatmul.f32.gmra.mxu0 %v687
  %v709 = vpop.f32.mrf.mxu0
  %v710 = vadd.f32 0.0, %v709
  %711 = vdwg.mxu0
  %v712 = vadd.f32 %v683, %v707
  %v713 = vadd.f32 %v684, %v710
  %v714 = vadd.f32 %v712, %v257
  %v715 = vadd.f32 %v713, %v257
  %v716 = vmul.f32 %v261, %v606
  %v717 = vmul.f32 %v261, %v608
  %v718 = vadd.f32 %v714, %v716
  %v719 = vadd.f32 %v715, %v717
  %v720 = vxor.u32 %v718, 2147483648
  %v721 = vxor.u32 %v719, 2147483648
  %v722 = vmul.f32 %v720, 1.442695
  %v723 = vpow.pop %v722
  %v724 = vmul.f32 %v721, 1.442695
  %v725 = vpow.pop %v724
  %v726 = vadd.f32 %v723, 1.0
  %v727 = vadd.f32 %v725, 1.0
  %v728 = vrcp.pop %v726
  %v729 = vmul.f32 %v726, %v728
  %v730 = vsub.f32 1.0, %v729
  %v731 = vmul.f32 %v728, %v730
  %v732 = vadd.f32 %v728, %v731
  %vm733 = vweird.f32 %v726
  %vm734 = vweird.f32 %v728
  %vm735 = vmor %vm733, %vm734
  %v736 = vsel %vm735, %v728, %v732
  %v737 = vand.u32 2147483647, %v726
  %vm738 = vcmp.eq.f32.partialorder %v737, 8.507059e+37
  %v739 = vand.u32 %v726, 2147483648
  %v740 = vor.u32 1.1754944e-38, %v739
  %v741 = vsel %vm738, %v740, %v736
  %v742 = vmul.f32 1.0, %v741
  %v743 = vrcp.pop %v727
  %v744 = vmul.f32 %v727, %v743
  %v745 = vsub.f32 1.0, %v744
  %v746 = vmul.f32 %v743, %v745
  %v747 = vadd.f32 %v743, %v746
  %vm748 = vweird.f32 %v727
  %vm749 = vweird.f32 %v743
  %vm750 = vmor %vm748, %vm749
  %v751 = vsel %vm750, %v743, %v747
  %v752 = vand.u32 2147483647, %v727
  %vm753 = vcmp.eq.f32.partialorder %v752, 8.507059e+37
  %v754 = vand.u32 %v727, 2147483648
  %v755 = vor.u32 1.1754944e-38, %v754
  %v756 = vsel %vm753, %v755, %v751
  %v757 = vmul.f32 1.0, %v756
  %v758 = vmul.f32 %v303, %v606
  %v759 = vmul.f32 %v303, %v608
  %762 = vrot.lane.b32.xlu0 %v758, 32
  %v763 = vpop.permute.xlu0 %762
  %764 = vrot.lane.b32.xlu0 %v759, 32
  %v765 = vpop.permute.xlu0 %764
  %v768 = vadd.f32 %v714, %v763
  %v769 = vadd.f32 %v715, %v765
  %v770 = vxor.u32 %v768, 2147483648
  %v771 = vxor.u32 %v769, 2147483648
  %v772 = vmul.f32 %v770, 1.442695
  %v773 = vpow.pop %v772
  %v774 = vmul.f32 %v771, 1.442695
  %v775 = vpow.pop %v774
  %v776 = vadd.f32 %v773, 1.0
  %v777 = vadd.f32 %v775, 1.0
  %v778 = vrcp.pop %v776
  %v779 = vmul.f32 %v776, %v778
  %v780 = vsub.f32 1.0, %v779
  %v781 = vmul.f32 %v778, %v780
  %v782 = vadd.f32 %v778, %v781
  %vm783 = vweird.f32 %v776
  %vm784 = vweird.f32 %v778
  %vm785 = vmor %vm783, %vm784
  %v786 = vsel %vm785, %v778, %v782
  %v787 = vand.u32 2147483647, %v776
  %vm788 = vcmp.eq.f32.partialorder %v787, 8.507059e+37
  %v789 = vand.u32 %v776, 2147483648
  %v790 = vor.u32 1.1754944e-38, %v789
  %v791 = vsel %vm788, %v790, %v786
  %v792 = vmul.f32 1.0, %v791
  %v793 = vrcp.pop %v777
  %v794 = vmul.f32 %v777, %v793
  %v795 = vsub.f32 1.0, %v794
  %v796 = vmul.f32 %v793, %v795
  %v797 = vadd.f32 %v793, %v796
  %vm798 = vweird.f32 %v777
  %vm799 = vweird.f32 %v793
  %vm800 = vmor %vm798, %vm799
  %v801 = vsel %vm800, %v793, %v797
  %v802 = vand.u32 2147483647, %v777
  %vm803 = vcmp.eq.f32.partialorder %v802, 8.507059e+37
  %v804 = vand.u32 %v777, 2147483648
  %v805 = vor.u32 1.1754944e-38, %v804
  %v806 = vsel %vm803, %v805, %v801
  %v807 = vmul.f32 1.0, %v806
  %v808 = vtanh.pop %v714
  %v809 = vtanh.pop %v715
  %v810 = vmul.f32 %v792, %v601
  %v811 = vmul.f32 %v807, %v602
  %814 = vrot.lane.b32.xlu0 %v808, 64
  %v815 = vpop.permute.xlu0 %814
  %816 = vrot.lane.b32.xlu0 %v809, 64
  %v817 = vpop.permute.xlu0 %816
  %v820 = vmul.f32 %v742, %v815
  %v821 = vmul.f32 %v757, %v817
  %824 = vrot.lane.b32.xlu0 %v820, 32
  %v825 = vpop.permute.xlu0 %824
  %826 = vrot.lane.b32.xlu0 %v821, 32
  %v827 = vpop.permute.xlu0 %826
  %v830 = vadd.f32 %v810, %v825
  %v831 = vadd.f32 %v811, %v827
  %834 = vrot.lane.b32.xlu0 %v830, 96
  %v835 = vpop.permute.xlu0 %834
  %836 = vrot.lane.b32.xlu0 %v831, 96
  %v837 = vpop.permute.xlu0 %836
  %v840 = vmul.f32 %v373, %v835
  %v841 = vmul.f32 %v373, %v837
  %844 = vrot.lane.b32.xlu0 %v840, 96
  %v845 = vpop.permute.xlu0 %844
  %846 = vrot.lane.b32.xlu0 %v841, 96
  %v847 = vpop.permute.xlu0 %846
  %v850 = vadd.f32 %v714, %v845
  %v851 = vadd.f32 %v715, %v847
  %v852 = vxor.u32 %v850, 2147483648
  %v853 = vxor.u32 %v851, 2147483648
  %v854 = vmul.f32 %v852, 1.442695
  %v855 = vpow.pop %v854
  %v856 = vmul.f32 %v853, 1.442695
  %v857 = vpow.pop %v856
  %v858 = vadd.f32 %v855, 1.0
  %v859 = vadd.f32 %v857, 1.0
  %v860 = vrcp.pop %v858
  %v861 = vmul.f32 %v858, %v860
  %v862 = vsub.f32 1.0, %v861
  %v863 = vmul.f32 %v860, %v862
  %v864 = vadd.f32 %v860, %v863
  %vm865 = vweird.f32 %v858
  %vm866 = vweird.f32 %v860
  %vm867 = vmor %vm865, %vm866
  %v868 = vsel %vm867, %v860, %v864
  %v869 = vand.u32 2147483647, %v858
  %vm870 = vcmp.eq.f32.partialorder %v869, 8.507059e+37
  %v871 = vand.u32 %v858, 2147483648
  %v872 = vor.u32 1.1754944e-38, %v871
  %v873 = vsel %vm870, %v872, %v868
  %v874 = vmul.f32 1.0, %v873
  %v875 = vrcp.pop %v859
  %v876 = vmul.f32 %v859, %v875
  %v877 = vsub.f32 1.0, %v876
  %v878 = vmul.f32 %v875, %v877
  %v879 = vadd.f32 %v875, %v878
  %vm880 = vweird.f32 %v859
  %vm881 = vweird.f32 %v875
  %vm882 = vmor %vm880, %vm881
  %v883 = vsel %vm882, %v875, %v879
  %v884 = vand.u32 2147483647, %v859
  %vm885 = vcmp.eq.f32.partialorder %v884, 8.507059e+37
  %v886 = vand.u32 %v859, 2147483648
  %v887 = vor.u32 1.1754944e-38, %v886
  %v888 = vsel %vm885, %v887, %v883
  %v889 = vmul.f32 1.0, %v888
  %v890 = vtanh.pop %v830
  %v891 = vtanh.pop %v831
  %894 = vrot.lane.b32.xlu0 %v890, 64
  %v895 = vpop.permute.xlu0 %894
  %896 = vrot.lane.b32.xlu0 %v891, 64
  %v897 = vpop.permute.xlu0 %896
  %v900 = vmul.f32 %v874, %v895
  %v901 = vmul.f32 %v889, %v897
  %904 = vrot.lane.b32.xlu0 %v900, 32
  %v905 = vpop.permute.xlu0 %904
  %906 = vrot.lane.b32.xlu0 %v901, 32
  %v907 = vpop.permute.xlu0 %906
  %910 = vst.msk [vmem:[#allocation4 + $0x20] sm:$0xff] %vm227, %v905
  %911 = vst.msk [vmem:[#allocation4 + $0x28] sm:$0xff] %vm227, %v907
  %v912 = vld [vmem:[#allocation2 + $0x30] sm:$0xff]
  %v913 = vld [vmem:[#allocation2 + $0x38] sm:$0xff]
  %v914 = vsel %vm227, %v905, 0
  %v916 = vsel %vm227, %v907, 0
  %918 = vmatpush.msra.mxu0 0.0
  %919 = vmatpush.msra.mxu0 0.0
  %920 = vmatpush.msra.mxu0 0.0
  %921 = vmatpush.msra.mxu0 0.0
  %922 = vmatpush.msra.mxu0 0.0
  %923 = vmatpush.msra.mxu0 0.0
  %924 = vmatpush.msra.mxu0 0.0
  %925 = vmatpush.msra.mxu0 0.0
  %926 = vmatpush.msra.mxu0 0.0
  %927 = vmatpush.msra.mxu0 0.0
  %928 = vmatpush.msra.mxu0 0.0
  %929 = vmatpush.msra.mxu0 0.0
  %930 = vmatpush.msra.mxu0 %v222
  %931 = vmatpush.msra.mxu0 %v221
  %932 = vmatpush.msra.mxu0 %v220
  %933 = vmatpush.msra.mxu0 %v219
  %934 = vmatmul.f32.gmra.mxu0 %v914
  %v935 = vpop.f32.mrf.mxu0
  %v936 = vadd.f32 0.0, %v935
  %937 = vmatmul.f32.gmra.mxu0 %v916
  %v938 = vpop.f32.mrf.mxu0
  %v939 = vadd.f32 0.0, %v938
  %940 = vdwg.mxu0
  %v941 = vadd.f32 %v912, %v936
  %v942 = vadd.f32 %v913, %v939
  %v943 = vadd.f32 %v941, %v257
  %v944 = vadd.f32 %v942, %v257
  %v945 = vmul.f32 %v261, %v835
  %v946 = vmul.f32 %v261, %v837
  %v947 = vadd.f32 %v943, %v945
  %v948 = vadd.f32 %v944, %v946
  %v949 = vxor.u32 %v947, 2147483648
  %v950 = vxor.u32 %v948, 2147483648
  %v951 = vmul.f32 %v949, 1.442695
  %v952 = vpow.pop %v951
  %v953 = vmul.f32 %v950, 1.442695
  %v954 = vpow.pop %v953
  %v955 = vadd.f32 %v952, 1.0
  %v956 = vadd.f32 %v954, 1.0
  %v957 = vrcp.pop %v955
  %v958 = vmul.f32 %v955, %v957
  %v959 = vsub.f32 1.0, %v958
  %v960 = vmul.f32 %v957, %v959
  %v961 = vadd.f32 %v957, %v960
  %vm962 = vweird.f32 %v955
  %vm963 = vweird.f32 %v957
  %vm964 = vmor %vm962, %vm963
  %v965 = vsel %vm964, %v957, %v961
  %v966 = vand.u32 2147483647, %v955
  %vm967 = vcmp.eq.f32.partialorder %v966, 8.507059e+37
  %v968 = vand.u32 %v955, 2147483648
  %v969 = vor.u32 1.1754944e-38, %v968
  %v970 = vsel %vm967, %v969, %v965
  %v971 = vmul.f32 1.0, %v970
  %v972 = vrcp.pop %v956
  %v973 = vmul.f32 %v956, %v972
  %v974 = vsub.f32 1.0, %v973
  %v975 = vmul.f32 %v972, %v974
  %v976 = vadd.f32 %v972, %v975
  %vm977 = vweird.f32 %v956
  %vm978 = vweird.f32 %v972
  %vm979 = vmor %vm977, %vm978
  %v980 = vsel %vm979, %v972, %v976
  %v981 = vand.u32 2147483647, %v956
  %vm982 = vcmp.eq.f32.partialorder %v981, 8.507059e+37
  %v983 = vand.u32 %v956, 2147483648
  %v984 = vor.u32 1.1754944e-38, %v983
  %v985 = vsel %vm982, %v984, %v980
  %v986 = vmul.f32 1.0, %v985
  %v987 = vmul.f32 %v303, %v835
  %v988 = vmul.f32 %v303, %v837
  %991 = vrot.lane.b32.xlu0 %v987, 32
  %v992 = vpop.permute.xlu0 %991
  %993 = vrot.lane.b32.xlu0 %v988, 32
  %v994 = vpop.permute.xlu0 %993
  %v997 = vadd.f32 %v943, %v992
  %v998 = vadd.f32 %v944, %v994
  %v999 = vxor.u32 %v997, 2147483648
  %v1000 = vxor.u32 %v998, 2147483648
  %v1001 = vmul.f32 %v999, 1.442695
  %v1002 = vpow.pop %v1001
  %v1003 = vmul.f32 %v1000, 1.442695
  %v1004 = vpow.pop %v1003
  %v1005 = vadd.f32 %v1002, 1.0
  %v1006 = vadd.f32 %v1004, 1.0
  %v1007 = vrcp.pop %v1005
  %v1008 = vmul.f32 %v1005, %v1007
  %v1009 = vsub.f32 1.0, %v1008
  %v1010 = vmul.f32 %v1007, %v1009
  %v1011 = vadd.f32 %v1007, %v1010
  %vm1012 = vweird.f32 %v1005
  %vm1013 = vweird.f32 %v1007
  %vm1014 = vmor %vm1012, %vm1013
  %v1015 = vsel %vm1014, %v1007, %v1011
  %v1016 = vand.u32 2147483647, %v1005
  %vm1017 = vcmp.eq.f32.partialorder %v1016, 8.507059e+37
  %v1018 = vand.u32 %v1005, 2147483648
  %v1019 = vor.u32 1.1754944e-38, %v1018
  %v1020 = vsel %vm1017, %v1019, %v1015
  %v1021 = vmul.f32 1.0, %v1020
  %v1022 = vrcp.pop %v1006
  %v1023 = vmul.f32 %v1006, %v1022
  %v1024 = vsub.f32 1.0, %v1023
  %v1025 = vmul.f32 %v1022, %v1024
  %v1026 = vadd.f32 %v1022, %v1025
  %vm1027 = vweird.f32 %v1006
  %vm1028 = vweird.f32 %v1022
  %vm1029 = vmor %vm1027, %vm1028
  %v1030 = vsel %vm1029, %v1022, %v1026
  %v1031 = vand.u32 2147483647, %v1006
  %vm1032 = vcmp.eq.f32.partialorder %v1031, 8.507059e+37
  %v1033 = vand.u32 %v1006, 2147483648
  %v1034 = vor.u32 1.1754944e-38, %v1033
  %v1035 = vsel %vm1032, %v1034, %v1030
  %v1036 = vmul.f32 1.0, %v1035
  %v1037 = vtanh.pop %v943
  %v1038 = vtanh.pop %v944
  %v1039 = vmul.f32 %v1021, %v830
  %v1040 = vmul.f32 %v1036, %v831
  %1043 = vrot.lane.b32.xlu0 %v1037, 64
  %v1044 = vpop.permute.xlu0 %1043
  %1045 = vrot.lane.b32.xlu0 %v1038, 64
  %v1046 = vpop.permute.xlu0 %1045
  %v1049 = vmul.f32 %v971, %v1044
  %v1050 = vmul.f32 %v986, %v1046
  %1053 = vrot.lane.b32.xlu0 %v1049, 32
  %v1054 = vpop.permute.xlu0 %1053
  %1055 = vrot.lane.b32.xlu0 %v1050, 32
  %v1056 = vpop.permute.xlu0 %1055
  %v1059 = vadd.f32 %v1039, %v1054
  %v1060 = vadd.f32 %v1040, %v1056
  %1063 = vrot.lane.b32.xlu0 %v1059, 96
  %v1064 = vpop.permute.xlu0 %1063
  %1065 = vrot.lane.b32.xlu0 %v1060, 96
  %v1066 = vpop.permute.xlu0 %1065
  %v1069 = vmul.f32 %v373, %v1064
  %v1070 = vmul.f32 %v373, %v1066
  %1073 = vrot.lane.b32.xlu0 %v1069, 96
  %v1074 = vpop.permute.xlu0 %1073
  %1075 = vrot.lane.b32.xlu0 %v1070, 96
  %v1076 = vpop.permute.xlu0 %1075
  %v1079 = vadd.f32 %v943, %v1074
  %v1080 = vadd.f32 %v944, %v1076
  %v1081 = vxor.u32 %v1079, 2147483648
  %v1082 = vxor.u32 %v1080, 2147483648
  %v1083 = vmul.f32 %v1081, 1.442695
  %v1084 = vpow.pop %v1083
  %v1085 = vmul.f32 %v1082, 1.442695
  %v1086 = vpow.pop %v1085
  %v1087 = vadd.f32 %v1084, 1.0
  %v1088 = vadd.f32 %v1086, 1.0
  %v1089 = vrcp.pop %v1087
  %v1090 = vmul.f32 %v1087, %v1089
  %v1091 = vsub.f32 1.0, %v1090
  %v1092 = vmul.f32 %v1089, %v1091
  %v1093 = vadd.f32 %v1089, %v1092
  %vm1094 = vweird.f32 %v1087
  %vm1095 = vweird.f32 %v1089
  %vm1096 = vmor %vm1094, %vm1095
  %v1097 = vsel %vm1096, %v1089, %v1093
  %v1098 = vand.u32 2147483647, %v1087
  %vm1099 = vcmp.eq.f32.partialorder %v1098, 8.507059e+37
  %v1100 = vand.u32 %v1087, 2147483648
  %v1101 = vor.u32 1.1754944e-38, %v1100
  %v1102 = vsel %vm1099, %v1101, %v1097
  %v1103 = vmul.f32 1.0, %v1102
  %v1104 = vrcp.pop %v1088
  %v1105 = vmul.f32 %v1088, %v1104
  %v1106 = vsub.f32 1.0, %v1105
  %v1107 = vmul.f32 %v1104, %v1106
  %v1108 = vadd.f32 %v1104, %v1107
  %vm1109 = vweird.f32 %v1088
  %vm1110 = vweird.f32 %v1104
  %vm1111 = vmor %vm1109, %vm1110
  %v1112 = vsel %vm1111, %v1104, %v1108
  %v1113 = vand.u32 2147483647, %v1088
  %vm1114 = vcmp.eq.f32.partialorder %v1113, 8.507059e+37
  %v1115 = vand.u32 %v1088, 2147483648
  %v1116 = vor.u32 1.1754944e-38, %v1115
  %v1117 = vsel %vm1114, %v1116, %v1112
  %v1118 = vmul.f32 1.0, %v1117
  %v1119 = vtanh.pop %v1059
  %v1120 = vtanh.pop %v1060
  %1123 = vrot.lane.b32.xlu0 %v1119, 64
  %v1124 = vpop.permute.xlu0 %1123
  %1125 = vrot.lane.b32.xlu0 %v1120, 64
  %v1126 = vpop.permute.xlu0 %1125
  %v1129 = vmul.f32 %v1103, %v1124
  %v1130 = vmul.f32 %v1118, %v1126
  %1133 = vrot.lane.b32.xlu0 %v1129, 32
  %v1134 = vpop.permute.xlu0 %1133
  %1135 = vrot.lane.b32.xlu0 %v1130, 32
  %v1136 = vpop.permute.xlu0 %1135
  %1139 = vst.msk [vmem:[#allocation4 + $0x30] sm:$0xff] %vm227, %v1134
  %1140 = vst.msk [vmem:[#allocation4 + $0x38] sm:$0xff] %vm227, %v1136
  %v1141 = vld [vmem:[#allocation2 + $0x40] sm:$0xff]
  %v1142 = vld [vmem:[#allocation2 + $0x48] sm:$0xff]
  %v1143 = vsel %vm227, %v1134, 0
  %v1145 = vsel %vm227, %v1136, 0
  %1147 = vmatpush.msra.mxu0 0.0
  %1148 = vmatpush.msra.mxu0 0.0
  %1149 = vmatpush.msra.mxu0 0.0
  %1150 = vmatpush.msra.mxu0 0.0
  %1151 = vmatpush.msra.mxu0 0.0
  %1152 = vmatpush.msra.mxu0 0.0
  %1153 = vmatpush.msra.mxu0 0.0
  %1154 = vmatpush.msra.mxu0 0.0
  %1155 = vmatpush.msra.mxu0 0.0
  %1156 = vmatpush.msra.mxu0 0.0
  %1157 = vmatpush.msra.mxu0 0.0
  %1158 = vmatpush.msra.mxu0 0.0
  %1159 = vmatpush.msra.mxu0 %v222
  %1160 = vmatpush.msra.mxu0 %v221
  %1161 = vmatpush.msra.mxu0 %v220
  %1162 = vmatpush.msra.mxu0 %v219
  %1163 = vmatmul.f32.gmra.mxu0 %v1143
  %v1164 = vpop.f32.mrf.mxu0
  %v1165 = vadd.f32 0.0, %v1164
  %1166 = vmatmul.f32.gmra.mxu0 %v1145
  %v1167 = vpop.f32.mrf.mxu0
  %v1168 = vadd.f32 0.0, %v1167
  %1169 = vdwg.mxu0
  %v1170 = vadd.f32 %v1141, %v1165
  %v1171 = vadd.f32 %v1142, %v1168
  %v1172 = vadd.f32 %v1170, %v257
  %v1173 = vadd.f32 %v1171, %v257
  %v1174 = vmul.f32 %v261, %v1064
  %v1175 = vmul.f32 %v261, %v1066
  %v1176 = vadd.f32 %v1172, %v1174
  %v1177 = vadd.f32 %v1173, %v1175
  %v1178 = vxor.u32 %v1176, 2147483648
  %v1179 = vxor.u32 %v1177, 2147483648
  %v1180 = vmul.f32 %v1178, 1.442695
  %v1181 = vpow.pop %v1180
  %v1182 = vmul.f32 %v1179, 1.442695
  %v1183 = vpow.pop %v1182
  %v1184 = vadd.f32 %v1181, 1.0
  %v1185 = vadd.f32 %v1183, 1.0
  %v1186 = vrcp.pop %v1184
  %v1187 = vmul.f32 %v1184, %v1186
  %v1188 = vsub.f32 1.0, %v1187
  %v1189 = vmul.f32 %v1186, %v1188
  %v1190 = vadd.f32 %v1186, %v1189
  %vm1191 = vweird.f32 %v1184
  %vm1192 = vweird.f32 %v1186
  %vm1193 = vmor %vm1191, %vm1192
  %v1194 = vsel %vm1193, %v1186, %v1190
  %v1195 = vand.u32 2147483647, %v1184
  %vm1196 = vcmp.eq.f32.partialorder %v1195, 8.507059e+37
  %v1197 = vand.u32 %v1184, 2147483648
  %v1198 = vor.u32 1.1754944e-38, %v1197
  %v1199 = vsel %vm1196, %v1198, %v1194
  %v1200 = vmul.f32 1.0, %v1199
  %v1201 = vrcp.pop %v1185
  %v1202 = vmul.f32 %v1185, %v1201
  %v1203 = vsub.f32 1.0, %v1202
  %v1204 = vmul.f32 %v1201, %v1203
  %v1205 = vadd.f32 %v1201, %v1204
  %vm1206 = vweird.f32 %v1185
  %vm1207 = vweird.f32 %v1201
  %vm1208 = vmor %vm1206, %vm1207
  %v1209 = vsel %vm1208, %v1201, %v1205
  %v1210 = vand.u32 2147483647, %v1185
  %vm1211 = vcmp.eq.f32.partialorder %v1210, 8.507059e+37
  %v1212 = vand.u32 %v1185, 2147483648
  %v1213 = vor.u32 1.1754944e-38, %v1212
  %v1214 = vsel %vm1211, %v1213, %v1209
  %v1215 = vmul.f32 1.0, %v1214
  %v1216 = vmul.f32 %v303, %v1064
  %v1217 = vmul.f32 %v303, %v1066
  %1220 = vrot.lane.b32.xlu0 %v1216, 32
  %v1221 = vpop.permute.xlu0 %1220
  %1222 = vrot.lane.b32.xlu0 %v1217, 32
  %v1223 = vpop.permute.xlu0 %1222
  %v1226 = vadd.f32 %v1172, %v1221
  %v1227 = vadd.f32 %v1173, %v1223
  %v1228 = vxor.u32 %v1226, 2147483648
  %v1229 = vxor.u32 %v1227, 2147483648
  %v1230 = vmul.f32 %v1228, 1.442695
  %v1231 = vpow.pop %v1230
  %v1232 = vmul.f32 %v1229, 1.442695
  %v1233 = vpow.pop %v1232
  %v1234 = vadd.f32 %v1231, 1.0
  %v1235 = vadd.f32 %v1233, 1.0
  %v1236 = vrcp.pop %v1234
  %v1237 = vmul.f32 %v1234, %v1236
  %v1238 = vsub.f32 1.0, %v1237
  %v1239 = vmul.f32 %v1236, %v1238
  %v1240 = vadd.f32 %v1236, %v1239
  %vm1241 = vweird.f32 %v1234
  %vm1242 = vweird.f32 %v1236
  %vm1243 = vmor %vm1241, %vm1242
  %v1244 = vsel %vm1243, %v1236, %v1240
  %v1245 = vand.u32 2147483647, %v1234
  %vm1246 = vcmp.eq.f32.partialorder %v1245, 8.507059e+37
  %v1247 = vand.u32 %v1234, 2147483648
  %v1248 = vor.u32 1.1754944e-38, %v1247
  %v1249 = vsel %vm1246, %v1248, %v1244
  %v1250 = vmul.f32 1.0, %v1249
  %v1251 = vrcp.pop %v1235
  %v1252 = vmul.f32 %v1235, %v1251
  %v1253 = vsub.f32 1.0, %v1252
  %v1254 = vmul.f32 %v1251, %v1253
  %v1255 = vadd.f32 %v1251, %v1254
  %vm1256 = vweird.f32 %v1235
  %vm1257 = vweird.f32 %v1251
  %vm1258 = vmor %vm1256, %vm1257
  %v1259 = vsel %vm1258, %v1251, %v1255
  %v1260 = vand.u32 2147483647, %v1235
  %vm1261 = vcmp.eq.f32.partialorder %v1260, 8.507059e+37
  %v1262 = vand.u32 %v1235, 2147483648
  %v1263 = vor.u32 1.1754944e-38, %v1262
  %v1264 = vsel %vm1261, %v1263, %v1259
  %v1265 = vmul.f32 1.0, %v1264
  %v1266 = vtanh.pop %v1172
  %v1267 = vtanh.pop %v1173
  %v1268 = vmul.f32 %v1250, %v1059
  %v1269 = vmul.f32 %v1265, %v1060
  %1272 = vrot.lane.b32.xlu0 %v1266, 64
  %v1273 = vpop.permute.xlu0 %1272
  %1274 = vrot.lane.b32.xlu0 %v1267, 64
  %v1275 = vpop.permute.xlu0 %1274
  %v1278 = vmul.f32 %v1200, %v1273
  %v1279 = vmul.f32 %v1215, %v1275
  %1282 = vrot.lane.b32.xlu0 %v1278, 32
  %v1283 = vpop.permute.xlu0 %1282
  %1284 = vrot.lane.b32.xlu0 %v1279, 32
  %v1285 = vpop.permute.xlu0 %1284
  %v1288 = vadd.f32 %v1268, %v1283
  %v1289 = vadd.f32 %v1269, %v1285
  %1292 = vrot.lane.b32.xlu0 %v1288, 96
  %v1293 = vpop.permute.xlu0 %1292
  %1294 = vrot.lane.b32.xlu0 %v1289, 96
  %v1295 = vpop.permute.xlu0 %1294
  %v1298 = vmul.f32 %v373, %v1293
  %v1299 = vmul.f32 %v373, %v1295
  %1302 = vrot.lane.b32.xlu0 %v1298, 96
  %v1303 = vpop.permute.xlu0 %1302
  %1304 = vrot.lane.b32.xlu0 %v1299, 96
  %v1305 = vpop.permute.xlu0 %1304
  %v1308 = vadd.f32 %v1172, %v1303
  %v1309 = vadd.f32 %v1173, %v1305
  %v1310 = vxor.u32 %v1308, 2147483648
  %v1311 = vxor.u32 %v1309, 2147483648
  %v1312 = vmul.f32 %v1310, 1.442695
  %v1313 = vpow.pop %v1312
  %v1314 = vmul.f32 %v1311, 1.442695
  %v1315 = vpow.pop %v1314
  %v1316 = vadd.f32 %v1313, 1.0
  %v1317 = vadd.f32 %v1315, 1.0
  %v1318 = vrcp.pop %v1316
  %v1319 = vmul.f32 %v1316, %v1318
  %v1320 = vsub.f32 1.0, %v1319
  %v1321 = vmul.f32 %v1318, %v1320
  %v1322 = vadd.f32 %v1318, %v1321
  %vm1323 = vweird.f32 %v1316
  %vm1324 = vweird.f32 %v1318
  %vm1325 = vmor %vm1323, %vm1324
  %v1326 = vsel %vm1325, %v1318, %v1322
  %v1327 = vand.u32 2147483647, %v1316
  %vm1328 = vcmp.eq.f32.partialorder %v1327, 8.507059e+37
  %v1329 = vand.u32 %v1316, 2147483648
  %v1330 = vor.u32 1.1754944e-38, %v1329
  %v1331 = vsel %vm1328, %v1330, %v1326
  %v1332 = vmul.f32 1.0, %v1331
  %v1333 = vrcp.pop %v1317
  %v1334 = vmul.f32 %v1317, %v1333
  %v1335 = vsub.f32 1.0, %v1334
  %v1336 = vmul.f32 %v1333, %v1335
  %v1337 = vadd.f32 %v1333, %v1336
  %vm1338 = vweird.f32 %v1317
  %vm1339 = vweird.f32 %v1333
  %vm1340 = vmor %vm1338, %vm1339
  %v1341 = vsel %vm1340, %v1333, %v1337
  %v1342 = vand.u32 2147483647, %v1317
  %vm1343 = vcmp.eq.f32.partialorder %v1342, 8.507059e+37
  %v1344 = vand.u32 %v1317, 2147483648
  %v1345 = vor.u32 1.1754944e-38, %v1344
  %v1346 = vsel %vm1343, %v1345, %v1341
  %v1347 = vmul.f32 1.0, %v1346
  %v1348 = vtanh.pop %v1288
  %v1349 = vtanh.pop %v1289
  %1352 = vrot.lane.b32.xlu0 %v1348, 64
  %v1353 = vpop.permute.xlu0 %1352
  %1354 = vrot.lane.b32.xlu0 %v1349, 64
  %v1355 = vpop.permute.xlu0 %1354
  %v1358 = vmul.f32 %v1332, %v1353
  %v1359 = vmul.f32 %v1347, %v1355
  %1362 = vrot.lane.b32.xlu0 %v1358, 32
  %v1363 = vpop.permute.xlu0 %1362
  %1364 = vrot.lane.b32.xlu0 %v1359, 32
  %v1365 = vpop.permute.xlu0 %1364
  %1368 = vst.msk [vmem:[#allocation4 + $0x40] sm:$0xff] %vm227, %v1363
  %1369 = vst.msk [vmem:[#allocation4 + $0x48] sm:$0xff] %vm227, %v1365
  %v1370 = vld [vmem:[#allocation2 + $0x50] sm:$0xff]
  %v1371 = vld [vmem:[#allocation2 + $0x58] sm:$0xff]
  %v1372 = vsel %vm227, %v1363, 0
  %v1374 = vsel %vm227, %v1365, 0
  %1376 = vmatpush.msra.mxu0 0.0
  %1377 = vmatpush.msra.mxu0 0.0
  %1378 = vmatpush.msra.mxu0 0.0
  %1379 = vmatpush.msra.mxu0 0.0
  %1380 = vmatpush.msra.mxu0 0.0
  %1381 = vmatpush.msra.mxu0 0.0
  %1382 = vmatpush.msra.mxu0 0.0
  %1383 = vmatpush.msra.mxu0 0.0
  %1384 = vmatpush.msra.mxu0 0.0
  %1385 = vmatpush.msra.mxu0 0.0
  %1386 = vmatpush.msra.mxu0 0.0
  %1387 = vmatpush.msra.mxu0 0.0
  %1388 = vmatpush.msra.mxu0 %v222
  %1389 = vmatpush.msra.mxu0 %v221
  %1390 = vmatpush.msra.mxu0 %v220
  %1391 = vmatpush.msra.mxu0 %v219
  %1392 = vmatmul.f32.gmra.mxu0 %v1372
  %v1393 = vpop.f32.mrf.mxu0
  %v1394 = vadd.f32 0.0, %v1393
  %1395 = vmatmul.f32.gmra.mxu0 %v1374
  %v1396 = vpop.f32.mrf.mxu0
  %v1397 = vadd.f32 0.0, %v1396
  %1398 = vdwg.mxu0
  %v1399 = vadd.f32 %v1370, %v1394
  %v1400 = vadd.f32 %v1371, %v1397
  %v1401 = vadd.f32 %v1399, %v257
  %v1402 = vadd.f32 %v1400, %v257
  %v1403 = vmul.f32 %v261, %v1293
  %v1404 = vmul.f32 %v261, %v1295
  %v1405 = vadd.f32 %v1401, %v1403
  %v1406 = vadd.f32 %v1402, %v1404
  %v1407 = vxor.u32 %v1405, 2147483648
  %v1408 = vxor.u32 %v1406, 2147483648
  %v1409 = vmul.f32 %v1407, 1.442695
  %v1410 = vpow.pop %v1409
  %v1411 = vmul.f32 %v1408, 1.442695
  %v1412 = vpow.pop %v1411
  %v1413 = vadd.f32 %v1410, 1.0
  %v1414 = vadd.f32 %v1412, 1.0
  %v1415 = vrcp.pop %v1413
  %v1416 = vmul.f32 %v1413, %v1415
  %v1417 = vsub.f32 1.0, %v1416
  %v1418 = vmul.f32 %v1415, %v1417
  %v1419 = vadd.f32 %v1415, %v1418
  %vm1420 = vweird.f32 %v1413
  %vm1421 = vweird.f32 %v1415
  %vm1422 = vmor %vm1420, %vm1421
  %v1423 = vsel %vm1422, %v1415, %v1419
  %v1424 = vand.u32 2147483647, %v1413
  %vm1425 = vcmp.eq.f32.partialorder %v1424, 8.507059e+37
  %v1426 = vand.u32 %v1413, 2147483648
  %v1427 = vor.u32 1.1754944e-38, %v1426
  %v1428 = vsel %vm1425, %v1427, %v1423
  %v1429 = vmul.f32 1.0, %v1428
  %v1430 = vrcp.pop %v1414
  %v1431 = vmul.f32 %v1414, %v1430
  %v1432 = vsub.f32 1.0, %v1431
  %v1433 = vmul.f32 %v1430, %v1432
  %v1434 = vadd.f32 %v1430, %v1433
  %vm1435 = vweird.f32 %v1414
  %vm1436 = vweird.f32 %v1430
  %vm1437 = vmor %vm1435, %vm1436
  %v1438 = vsel %vm1437, %v1430, %v1434
  %v1439 = vand.u32 2147483647, %v1414
  %vm1440 = vcmp.eq.f32.partialorder %v1439, 8.507059e+37
  %v1441 = vand.u32 %v1414, 2147483648
  %v1442 = vor.u32 1.1754944e-38, %v1441
  %v1443 = vsel %vm1440, %v1442, %v1438
  %v1444 = vmul.f32 1.0, %v1443
  %v1445 = vmul.f32 %v303, %v1293
  %v1446 = vmul.f32 %v303, %v1295
  %1449 = vrot.lane.b32.xlu0 %v1445, 32
  %v1450 = vpop.permute.xlu0 %1449
  %1451 = vrot.lane.b32.xlu0 %v1446, 32
  %v1452 = vpop.permute.xlu0 %1451
  %v1455 = vadd.f32 %v1401, %v1450
  %v1456 = vadd.f32 %v1402, %v1452
  %v1457 = vxor.u32 %v1455, 2147483648
  %v1458 = vxor.u32 %v1456, 2147483648
  %v1459 = vmul.f32 %v1457, 1.442695
  %v1460 = vpow.pop %v1459
  %v1461 = vmul.f32 %v1458, 1.442695
  %v1462 = vpow.pop %v1461
  %v1463 = vadd.f32 %v1460, 1.0
  %v1464 = vadd.f32 %v1462, 1.0
  %v1465 = vrcp.pop %v1463
  %v1466 = vmul.f32 %v1463, %v1465
  %v1467 = vsub.f32 1.0, %v1466
  %v1468 = vmul.f32 %v1465, %v1467
  %v1469 = vadd.f32 %v1465, %v1468
  %vm1470 = vweird.f32 %v1463
  %vm1471 = vweird.f32 %v1465
  %vm1472 = vmor %vm1470, %vm1471
  %v1473 = vsel %vm1472, %v1465, %v1469
  %v1474 = vand.u32 2147483647, %v1463
  %vm1475 = vcmp.eq.f32.partialorder %v1474, 8.507059e+37
  %v1476 = vand.u32 %v1463, 2147483648
  %v1477 = vor.u32 1.1754944e-38, %v1476
  %v1478 = vsel %vm1475, %v1477, %v1473
  %v1479 = vmul.f32 1.0, %v1478
  %v1480 = vrcp.pop %v1464
  %v1481 = vmul.f32 %v1464, %v1480
  %v1482 = vsub.f32 1.0, %v1481
  %v1483 = vmul.f32 %v1480, %v1482
  %v1484 = vadd.f32 %v1480, %v1483
  %vm1485 = vweird.f32 %v1464
  %vm1486 = vweird.f32 %v1480
  %vm1487 = vmor %vm1485, %vm1486
  %v1488 = vsel %vm1487, %v1480, %v1484
  %v1489 = vand.u32 2147483647, %v1464
  %vm1490 = vcmp.eq.f32.partialorder %v1489, 8.507059e+37
  %v1491 = vand.u32 %v1464, 2147483648
  %v1492 = vor.u32 1.1754944e-38, %v1491
  %v1493 = vsel %vm1490, %v1492, %v1488
  %v1494 = vmul.f32 1.0, %v1493
  %v1495 = vtanh.pop %v1401
  %v1496 = vtanh.pop %v1402
  %v1497 = vmul.f32 %v1479, %v1288
  %v1498 = vmul.f32 %v1494, %v1289
  %1501 = vrot.lane.b32.xlu0 %v1495, 64
  %v1502 = vpop.permute.xlu0 %1501
  %1503 = vrot.lane.b32.xlu0 %v1496, 64
  %v1504 = vpop.permute.xlu0 %1503
  %v1507 = vmul.f32 %v1429, %v1502
  %v1508 = vmul.f32 %v1444, %v1504
  %1511 = vrot.lane.b32.xlu0 %v1507, 32
  %v1512 = vpop.permute.xlu0 %1511
  %1513 = vrot.lane.b32.xlu0 %v1508, 32
  %v1514 = vpop.permute.xlu0 %1513
  %v1517 = vadd.f32 %v1497, %v1512
  %v1518 = vadd.f32 %v1498, %v1514
  %1521 = vrot.lane.b32.xlu0 %v1517, 96
  %v1522 = vpop.permute.xlu0 %1521
  %1523 = vrot.lane.b32.xlu0 %v1518, 96
  %v1524 = vpop.permute.xlu0 %1523
  %v1527 = vmul.f32 %v373, %v1522
  %v1528 = vmul.f32 %v373, %v1524
  %1531 = vrot.lane.b32.xlu0 %v1527, 96
  %v1532 = vpop.permute.xlu0 %1531
  %1533 = vrot.lane.b32.xlu0 %v1528, 96
  %v1534 = vpop.permute.xlu0 %1533
  %v1537 = vadd.f32 %v1401, %v1532
  %v1538 = vadd.f32 %v1402, %v1534
  %v1539 = vxor.u32 %v1537, 2147483648
  %v1540 = vxor.u32 %v1538, 2147483648
  %v1541 = vmul.f32 %v1539, 1.442695
  %v1542 = vpow.pop %v1541
  %v1543 = vmul.f32 %v1540, 1.442695
  %v1544 = vpow.pop %v1543
  %v1545 = vadd.f32 %v1542, 1.0
  %v1546 = vadd.f32 %v1544, 1.0
  %v1547 = vrcp.pop %v1545
  %v1548 = vmul.f32 %v1545, %v1547
  %v1549 = vsub.f32 1.0, %v1548
  %v1550 = vmul.f32 %v1547, %v1549
  %v1551 = vadd.f32 %v1547, %v1550
  %vm1552 = vweird.f32 %v1545
  %vm1553 = vweird.f32 %v1547
  %vm1554 = vmor %vm1552, %vm1553
  %v1555 = vsel %vm1554, %v1547, %v1551
  %v1556 = vand.u32 2147483647, %v1545
  %vm1557 = vcmp.eq.f32.partialorder %v1556, 8.507059e+37
  %v1558 = vand.u32 %v1545, 2147483648
  %v1559 = vor.u32 1.1754944e-38, %v1558
  %v1560 = vsel %vm1557, %v1559, %v1555
  %v1561 = vmul.f32 1.0, %v1560
  %v1562 = vrcp.pop %v1546
  %v1563 = vmul.f32 %v1546, %v1562
  %v1564 = vsub.f32 1.0, %v1563
  %v1565 = vmul.f32 %v1562, %v1564
  %v1566 = vadd.f32 %v1562, %v1565
  %vm1567 = vweird.f32 %v1546
  %vm1568 = vweird.f32 %v1562
  %vm1569 = vmor %vm1567, %vm1568
  %v1570 = vsel %vm1569, %v1562, %v1566
  %v1571 = vand.u32 2147483647, %v1546
  %vm1572 = vcmp.eq.f32.partialorder %v1571, 8.507059e+37
  %v1573 = vand.u32 %v1546, 2147483648
  %v1574 = vor.u32 1.1754944e-38, %v1573
  %v1575 = vsel %vm1572, %v1574, %v1570
  %v1576 = vmul.f32 1.0, %v1575
  %v1577 = vtanh.pop %v1517
  %v1578 = vtanh.pop %v1518
  %1581 = vrot.lane.b32.xlu0 %v1577, 64
  %v1582 = vpop.permute.xlu0 %1581
  %1583 = vrot.lane.b32.xlu0 %v1578, 64
  %v1584 = vpop.permute.xlu0 %1583
  %v1587 = vmul.f32 %v1561, %v1582
  %v1588 = vmul.f32 %v1576, %v1584
  %1591 = vrot.lane.b32.xlu0 %v1587, 32
  %v1592 = vpop.permute.xlu0 %1591
  %1593 = vrot.lane.b32.xlu0 %v1588, 32
  %v1594 = vpop.permute.xlu0 %1593
  %1597 = vst.msk [vmem:[#allocation4 + $0x50] sm:$0xff] %vm227, %v1592
  %1598 = vst.msk [vmem:[#allocation4 + $0x58] sm:$0xff] %vm227, %v1594
  %v1599 = vld [vmem:[#allocation2 + $0x60] sm:$0xff]
  %v1600 = vld [vmem:[#allocation2 + $0x68] sm:$0xff]
  %v1601 = vsel %vm227, %v1592, 0
  %v1603 = vsel %vm227, %v1594, 0
  %1605 = vmatpush.msra.mxu0 0.0
  %1606 = vmatpush.msra.mxu0 0.0
  %1607 = vmatpush.msra.mxu0 0.0
  %1608 = vmatpush.msra.mxu0 0.0
  %1609 = vmatpush.msra.mxu0 0.0
  %1610 = vmatpush.msra.mxu0 0.0
  %1611 = vmatpush.msra.mxu0 0.0
  %1612 = vmatpush.msra.mxu0 0.0
  %1613 = vmatpush.msra.mxu0 0.0
  %1614 = vmatpush.msra.mxu0 0.0
  %1615 = vmatpush.msra.mxu0 0.0
  %1616 = vmatpush.msra.mxu0 0.0
  %1617 = vmatpush.msra.mxu0 %v222
  %1618 = vmatpush.msra.mxu0 %v221
  %1619 = vmatpush.msra.mxu0 %v220
  %1620 = vmatpush.msra.mxu0 %v219
  %1621 = vmatmul.f32.gmra.mxu0 %v1601
  %v1622 = vpop.f32.mrf.mxu0
  %v1623 = vadd.f32 0.0, %v1622
  %1624 = vmatmul.f32.gmra.mxu0 %v1603
  %v1625 = vpop.f32.mrf.mxu0
  %v1626 = vadd.f32 0.0, %v1625
  %1627 = vdwg.mxu0
  %v1628 = vadd.f32 %v1599, %v1623
  %v1629 = vadd.f32 %v1600, %v1626
  %v1630 = vadd.f32 %v1628, %v257
  %v1631 = vadd.f32 %v1629, %v257
  %v1632 = vmul.f32 %v261, %v1522
  %v1633 = vmul.f32 %v261, %v1524
  %v1634 = vadd.f32 %v1630, %v1632
  %v1635 = vadd.f32 %v1631, %v1633
  %v1636 = vxor.u32 %v1634, 2147483648
  %v1637 = vxor.u32 %v1635, 2147483648
  %v1638 = vmul.f32 %v1636, 1.442695
  %v1639 = vpow.pop %v1638
  %v1640 = vmul.f32 %v1637, 1.442695
  %v1641 = vpow.pop %v1640
  %v1642 = vadd.f32 %v1639, 1.0
  %v1643 = vadd.f32 %v1641, 1.0
  %v1644 = vrcp.pop %v1642
  %v1645 = vmul.f32 %v1642, %v1644
  %v1646 = vsub.f32 1.0, %v1645
  %v1647 = vmul.f32 %v1644, %v1646
  %v1648 = vadd.f32 %v1644, %v1647
  %vm1649 = vweird.f32 %v1642
  %vm1650 = vweird.f32 %v1644
  %vm1651 = vmor %vm1649, %vm1650
  %v1652 = vsel %vm1651, %v1644, %v1648
  %v1653 = vand.u32 2147483647, %v1642
  %vm1654 = vcmp.eq.f32.partialorder %v1653, 8.507059e+37
  %v1655 = vand.u32 %v1642, 2147483648
  %v1656 = vor.u32 1.1754944e-38, %v1655
  %v1657 = vsel %vm1654, %v1656, %v1652
  %v1658 = vmul.f32 1.0, %v1657
  %v1659 = vrcp.pop %v1643
  %v1660 = vmul.f32 %v1643, %v1659
  %v1661 = vsub.f32 1.0, %v1660
  %v1662 = vmul.f32 %v1659, %v1661
  %v1663 = vadd.f32 %v1659, %v1662
  %vm1664 = vweird.f32 %v1643
  %vm1665 = vweird.f32 %v1659
  %vm1666 = vmor %vm1664, %vm1665
  %v1667 = vsel %vm1666, %v1659, %v1663
  %v1668 = vand.u32 2147483647, %v1643
  %vm1669 = vcmp.eq.f32.partialorder %v1668, 8.507059e+37
  %v1670 = vand.u32 %v1643, 2147483648
  %v1671 = vor.u32 1.1754944e-38, %v1670
  %v1672 = vsel %vm1669, %v1671, %v1667
  %v1673 = vmul.f32 1.0, %v1672
  %v1674 = vmul.f32 %v303, %v1522
  %v1675 = vmul.f32 %v303, %v1524
  %1678 = vrot.lane.b32.xlu0 %v1674, 32
  %v1679 = vpop.permute.xlu0 %1678
  %1680 = vrot.lane.b32.xlu0 %v1675, 32
  %v1681 = vpop.permute.xlu0 %1680
  %v1684 = vadd.f32 %v1630, %v1679
  %v1685 = vadd.f32 %v1631, %v1681
  %v1686 = vxor.u32 %v1684, 2147483648
  %v1687 = vxor.u32 %v1685, 2147483648
  %v1688 = vmul.f32 %v1686, 1.442695
  %v1689 = vpow.pop %v1688
  %v1690 = vmul.f32 %v1687, 1.442695
  %v1691 = vpow.pop %v1690
  %v1692 = vadd.f32 %v1689, 1.0
  %v1693 = vadd.f32 %v1691, 1.0
  %v1694 = vrcp.pop %v1692
  %v1695 = vmul.f32 %v1692, %v1694
  %v1696 = vsub.f32 1.0, %v1695
  %v1697 = vmul.f32 %v1694, %v1696
  %v1698 = vadd.f32 %v1694, %v1697
  %vm1699 = vweird.f32 %v1692
  %vm1700 = vweird.f32 %v1694
  %vm1701 = vmor %vm1699, %vm1700
  %v1702 = vsel %vm1701, %v1694, %v1698
  %v1703 = vand.u32 2147483647, %v1692
  %vm1704 = vcmp.eq.f32.partialorder %v1703, 8.507059e+37
  %v1705 = vand.u32 %v1692, 2147483648
  %v1706 = vor.u32 1.1754944e-38, %v1705
  %v1707 = vsel %vm1704, %v1706, %v1702
  %v1708 = vmul.f32 1.0, %v1707
  %v1709 = vrcp.pop %v1693
  %v1710 = vmul.f32 %v1693, %v1709
  %v1711 = vsub.f32 1.0, %v1710
  %v1712 = vmul.f32 %v1709, %v1711
  %v1713 = vadd.f32 %v1709, %v1712
  %vm1714 = vweird.f32 %v1693
  %vm1715 = vweird.f32 %v1709
  %vm1716 = vmor %vm1714, %vm1715
  %v1717 = vsel %vm1716, %v1709, %v1713
  %v1718 = vand.u32 2147483647, %v1693
  %vm1719 = vcmp.eq.f32.partialorder %v1718, 8.507059e+37
  %v1720 = vand.u32 %v1693, 2147483648
  %v1721 = vor.u32 1.1754944e-38, %v1720
  %v1722 = vsel %vm1719, %v1721, %v1717
  %v1723 = vmul.f32 1.0, %v1722
  %v1724 = vtanh.pop %v1630
  %v1725 = vtanh.pop %v1631
  %v1726 = vmul.f32 %v1708, %v1517
  %v1727 = vmul.f32 %v1723, %v1518
  %1730 = vrot.lane.b32.xlu0 %v1724, 64
  %v1731 = vpop.permute.xlu0 %1730
  %1732 = vrot.lane.b32.xlu0 %v1725, 64
  %v1733 = vpop.permute.xlu0 %1732
  %v1736 = vmul.f32 %v1658, %v1731
  %v1737 = vmul.f32 %v1673, %v1733
  %1740 = vrot.lane.b32.xlu0 %v1736, 32
  %v1741 = vpop.permute.xlu0 %1740
  %1742 = vrot.lane.b32.xlu0 %v1737, 32
  %v1743 = vpop.permute.xlu0 %1742
  %v1746 = vadd.f32 %v1726, %v1741
  %v1747 = vadd.f32 %v1727, %v1743
  %1750 = vrot.lane.b32.xlu0 %v1746, 96
  %v1751 = vpop.permute.xlu0 %1750
  %1752 = vrot.lane.b32.xlu0 %v1747, 96
  %v1753 = vpop.permute.xlu0 %1752
  %v1756 = vmul.f32 %v373, %v1751
  %v1757 = vmul.f32 %v373, %v1753
  %1760 = vrot.lane.b32.xlu0 %v1756, 96
  %v1761 = vpop.permute.xlu0 %1760
  %1762 = vrot.lane.b32.xlu0 %v1757, 96
  %v1763 = vpop.permute.xlu0 %1762
  %v1766 = vadd.f32 %v1630, %v1761
  %v1767 = vadd.f32 %v1631, %v1763
  %v1768 = vxor.u32 %v1766, 2147483648
  %v1769 = vxor.u32 %v1767, 2147483648
  %v1770 = vmul.f32 %v1768, 1.442695
  %v1771 = vpow.pop %v1770
  %v1772 = vmul.f32 %v1769, 1.442695
  %v1773 = vpow.pop %v1772
  %v1774 = vadd.f32 %v1771, 1.0
  %v1775 = vadd.f32 %v1773, 1.0
  %v1776 = vrcp.pop %v1774
  %v1777 = vmul.f32 %v1774, %v1776
  %v1778 = vsub.f32 1.0, %v1777
  %v1779 = vmul.f32 %v1776, %v1778
  %v1780 = vadd.f32 %v1776, %v1779
  %vm1781 = vweird.f32 %v1774
  %vm1782 = vweird.f32 %v1776
  %vm1783 = vmor %vm1781, %vm1782
  %v1784 = vsel %vm1783, %v1776, %v1780
  %v1785 = vand.u32 2147483647, %v1774
  %vm1786 = vcmp.eq.f32.partialorder %v1785, 8.507059e+37
  %v1787 = vand.u32 %v1774, 2147483648
  %v1788 = vor.u32 1.1754944e-38, %v1787
  %v1789 = vsel %vm1786, %v1788, %v1784
  %v1790 = vmul.f32 1.0, %v1789
  %v1791 = vrcp.pop %v1775
  %v1792 = vmul.f32 %v1775, %v1791
  %v1793 = vsub.f32 1.0, %v1792
  %v1794 = vmul.f32 %v1791, %v1793
  %v1795 = vadd.f32 %v1791, %v1794
  %vm1796 = vweird.f32 %v1775
  %vm1797 = vweird.f32 %v1791
  %vm1798 = vmor %vm1796, %vm1797
  %v1799 = vsel %vm1798, %v1791, %v1795
  %v1800 = vand.u32 2147483647, %v1775
  %vm1801 = vcmp.eq.f32.partialorder %v1800, 8.507059e+37
  %v1802 = vand.u32 %v1775, 2147483648
  %v1803 = vor.u32 1.1754944e-38, %v1802
  %v1804 = vsel %vm1801, %v1803, %v1799
  %v1805 = vmul.f32 1.0, %v1804
  %v1806 = vtanh.pop %v1746
  %v1807 = vtanh.pop %v1747
  %1810 = vrot.lane.b32.xlu0 %v1806, 64
  %v1811 = vpop.permute.xlu0 %1810
  %1812 = vrot.lane.b32.xlu0 %v1807, 64
  %v1813 = vpop.permute.xlu0 %1812
  %v1816 = vmul.f32 %v1790, %v1811
  %v1817 = vmul.f32 %v1805, %v1813
  %1820 = vrot.lane.b32.xlu0 %v1816, 32
  %v1821 = vpop.permute.xlu0 %1820
  %1822 = vrot.lane.b32.xlu0 %v1817, 32
  %v1823 = vpop.permute.xlu0 %1822
  %1826 = vst.msk [vmem:[#allocation4 + $0x60] sm:$0xff] %vm227, %v1821
  %1827 = vst.msk [vmem:[#allocation4 + $0x68] sm:$0xff] %vm227, %v1823
  %v1828 = vld [vmem:[#allocation2 + $0x70] sm:$0xff]
  %v1829 = vld [vmem:[#allocation2 + $0x78] sm:$0xff]
  %v1830 = vsel %vm227, %v1821, 0
  %v1832 = vsel %vm227, %v1823, 0
  %1834 = vmatpush.msra.mxu0 0.0
  %1835 = vmatpush.msra.mxu0 0.0
  %1836 = vmatpush.msra.mxu0 0.0
  %1837 = vmatpush.msra.mxu0 0.0
  %1838 = vmatpush.msra.mxu0 0.0
  %1839 = vmatpush.msra.mxu0 0.0
  %1840 = vmatpush.msra.mxu0 0.0
  %1841 = vmatpush.msra.mxu0 0.0
  %1842 = vmatpush.msra.mxu0 0.0
  %1843 = vmatpush.msra.mxu0 0.0
  %1844 = vmatpush.msra.mxu0 0.0
  %1845 = vmatpush.msra.mxu0 0.0
  %1846 = vmatpush.msra.mxu0 %v222
  %1847 = vmatpush.msra.mxu0 %v221
  %1848 = vmatpush.msra.mxu0 %v220
  %1849 = vmatpush.msra.mxu0 %v219
  %1850 = vmatmul.f32.gmra.mxu0 %v1830
  %v1851 = vpop.f32.mrf.mxu0
  %v1852 = vadd.f32 0.0, %v1851
  %1853 = vmatmul.f32.gmra.mxu0 %v1832
  %v1854 = vpop.f32.mrf.mxu0
  %v1855 = vadd.f32 0.0, %v1854
  %1856 = vdwg.mxu0
  %v1857 = vadd.f32 %v1828, %v1852
  %v1858 = vadd.f32 %v1829, %v1855
  %v1859 = vadd.f32 %v1857, %v257
  %v1860 = vadd.f32 %v1858, %v257
  %v1861 = vmul.f32 %v261, %v1751
  %v1862 = vmul.f32 %v261, %v1753
  %v1863 = vadd.f32 %v1859, %v1861
  %v1864 = vadd.f32 %v1860, %v1862
  %v1865 = vxor.u32 %v1863, 2147483648
  %v1866 = vxor.u32 %v1864, 2147483648
  %v1867 = vmul.f32 %v1865, 1.442695
  %v1868 = vpow.pop %v1867
  %v1869 = vmul.f32 %v1866, 1.442695
  %v1870 = vpow.pop %v1869
  %v1871 = vadd.f32 %v1868, 1.0
  %v1872 = vadd.f32 %v1870, 1.0
  %v1873 = vrcp.pop %v1871
  %v1874 = vmul.f32 %v1871, %v1873
  %v1875 = vsub.f32 1.0, %v1874
  %v1876 = vmul.f32 %v1873, %v1875
  %v1877 = vadd.f32 %v1873, %v1876
  %vm1878 = vweird.f32 %v1871
  %vm1879 = vweird.f32 %v1873
  %vm1880 = vmor %vm1878, %vm1879
  %v1881 = vsel %vm1880, %v1873, %v1877
  %v1882 = vand.u32 2147483647, %v1871
  %vm1883 = vcmp.eq.f32.partialorder %v1882, 8.507059e+37
  %v1884 = vand.u32 %v1871, 2147483648
  %v1885 = vor.u32 1.1754944e-38, %v1884
  %v1886 = vsel %vm1883, %v1885, %v1881
  %v1887 = vmul.f32 1.0, %v1886
  %v1888 = vrcp.pop %v1872
  %v1889 = vmul.f32 %v1872, %v1888
  %v1890 = vsub.f32 1.0, %v1889
  %v1891 = vmul.f32 %v1888, %v1890
  %v1892 = vadd.f32 %v1888, %v1891
  %vm1893 = vweird.f32 %v1872
  %vm1894 = vweird.f32 %v1888
  %vm1895 = vmor %vm1893, %vm1894
  %v1896 = vsel %vm1895, %v1888, %v1892
  %v1897 = vand.u32 2147483647, %v1872
  %vm1898 = vcmp.eq.f32.partialorder %v1897, 8.507059e+37
  %v1899 = vand.u32 %v1872, 2147483648
  %v1900 = vor.u32 1.1754944e-38, %v1899
  %v1901 = vsel %vm1898, %v1900, %v1896
  %v1902 = vmul.f32 1.0, %v1901
  %v1903 = vmul.f32 %v303, %v1751
  %v1904 = vmul.f32 %v303, %v1753
  %1907 = vrot.lane.b32.xlu0 %v1903, 32
  %v1908 = vpop.permute.xlu0 %1907
  %1909 = vrot.lane.b32.xlu0 %v1904, 32
  %v1910 = vpop.permute.xlu0 %1909
  %v1913 = vadd.f32 %v1859, %v1908
  %v1914 = vadd.f32 %v1860, %v1910
  %v1915 = vxor.u32 %v1913, 2147483648
  %v1916 = vxor.u32 %v1914, 2147483648
  %v1917 = vmul.f32 %v1915, 1.442695
  %v1918 = vpow.pop %v1917
  %v1919 = vmul.f32 %v1916, 1.442695
  %v1920 = vpow.pop %v1919
  %v1921 = vadd.f32 %v1918, 1.0
  %v1922 = vadd.f32 %v1920, 1.0
  %v1923 = vrcp.pop %v1921
  %v1924 = vmul.f32 %v1921, %v1923
  %v1925 = vsub.f32 1.0, %v1924
  %v1926 = vmul.f32 %v1923, %v1925
  %v1927 = vadd.f32 %v1923, %v1926
  %vm1928 = vweird.f32 %v1921
  %vm1929 = vweird.f32 %v1923
  %vm1930 = vmor %vm1928, %vm1929
  %v1931 = vsel %vm1930, %v1923, %v1927
  %v1932 = vand.u32 2147483647, %v1921
  %vm1933 = vcmp.eq.f32.partialorder %v1932, 8.507059e+37
  %v1934 = vand.u32 %v1921, 2147483648
  %v1935 = vor.u32 1.1754944e-38, %v1934
  %v1936 = vsel %vm1933, %v1935, %v1931
  %v1937 = vmul.f32 1.0, %v1936
  %v1938 = vrcp.pop %v1922
  %v1939 = vmul.f32 %v1922, %v1938
  %v1940 = vsub.f32 1.0, %v1939
  %v1941 = vmul.f32 %v1938, %v1940
  %v1942 = vadd.f32 %v1938, %v1941
  %vm1943 = vweird.f32 %v1922
  %vm1944 = vweird.f32 %v1938
  %vm1945 = vmor %vm1943, %vm1944
  %v1946 = vsel %vm1945, %v1938, %v1942
  %v1947 = vand.u32 2147483647, %v1922
  %vm1948 = vcmp.eq.f32.partialorder %v1947, 8.507059e+37
  %v1949 = vand.u32 %v1922, 2147483648
  %v1950 = vor.u32 1.1754944e-38, %v1949
  %v1951 = vsel %vm1948, %v1950, %v1946
  %v1952 = vmul.f32 1.0, %v1951
  %v1953 = vtanh.pop %v1859
  %v1954 = vtanh.pop %v1860
  %v1955 = vmul.f32 %v1937, %v1746
  %v1956 = vmul.f32 %v1952, %v1747
  %1959 = vrot.lane.b32.xlu0 %v1953, 64
  %v1960 = vpop.permute.xlu0 %1959
  %1961 = vrot.lane.b32.xlu0 %v1954, 64
  %v1962 = vpop.permute.xlu0 %1961
  %v1965 = vmul.f32 %v1887, %v1960
  %v1966 = vmul.f32 %v1902, %v1962
  %1969 = vrot.lane.b32.xlu0 %v1965, 32
  %v1970 = vpop.permute.xlu0 %1969
  %1971 = vrot.lane.b32.xlu0 %v1966, 32
  %v1972 = vpop.permute.xlu0 %1971
  %v1975 = vadd.f32 %v1955, %v1970
  %v1976 = vadd.f32 %v1956, %v1972
  %1979 = vrot.lane.b32.xlu0 %v1975, 96
  %v1980 = vpop.permute.xlu0 %1979
  %1981 = vrot.lane.b32.xlu0 %v1976, 96
  %v1982 = vpop.permute.xlu0 %1981
  %v1985 = vmul.f32 %v373, %v1980
  %v1986 = vmul.f32 %v373, %v1982
  %1989 = vrot.lane.b32.xlu0 %v1985, 96
  %v1990 = vpop.permute.xlu0 %1989
  %1991 = vrot.lane.b32.xlu0 %v1986, 96
  %v1992 = vpop.permute.xlu0 %1991
  %v1995 = vadd.f32 %v1859, %v1990
  %v1996 = vadd.f32 %v1860, %v1992
  %v1997 = vxor.u32 %v1995, 2147483648
  %v1998 = vxor.u32 %v1996, 2147483648
  %v1999 = vmul.f32 %v1997, 1.442695
  %v2000 = vpow.pop %v1999
  %v2001 = vmul.f32 %v1998, 1.442695
  %v2002 = vpow.pop %v2001
  %v2003 = vadd.f32 %v2000, 1.0
  %v2004 = vadd.f32 %v2002, 1.0
  %v2005 = vrcp.pop %v2003
  %v2006 = vmul.f32 %v2003, %v2005
  %v2007 = vsub.f32 1.0, %v2006
  %v2008 = vmul.f32 %v2005, %v2007
  %v2009 = vadd.f32 %v2005, %v2008
  %vm2010 = vweird.f32 %v2003
  %vm2011 = vweird.f32 %v2005
  %vm2012 = vmor %vm2010, %vm2011
  %v2013 = vsel %vm2012, %v2005, %v2009
  %v2014 = vand.u32 2147483647, %v2003
  %vm2015 = vcmp.eq.f32.partialorder %v2014, 8.507059e+37
  %v2016 = vand.u32 %v2003, 2147483648
  %v2017 = vor.u32 1.1754944e-38, %v2016
  %v2018 = vsel %vm2015, %v2017, %v2013
  %v2019 = vmul.f32 1.0, %v2018
  %v2020 = vrcp.pop %v2004
  %v2021 = vmul.f32 %v2004, %v2020
  %v2022 = vsub.f32 1.0, %v2021
  %v2023 = vmul.f32 %v2020, %v2022
  %v2024 = vadd.f32 %v2020, %v2023
  %vm2025 = vweird.f32 %v2004
  %vm2026 = vweird.f32 %v2020
  %vm2027 = vmor %vm2025, %vm2026
  %v2028 = vsel %vm2027, %v2020, %v2024
  %v2029 = vand.u32 2147483647, %v2004
  %vm2030 = vcmp.eq.f32.partialorder %v2029, 8.507059e+37
  %v2031 = vand.u32 %v2004, 2147483648
  %v2032 = vor.u32 1.1754944e-38, %v2031
  %v2033 = vsel %vm2030, %v2032, %v2028
  %v2034 = vmul.f32 1.0, %v2033
  %v2035 = vtanh.pop %v1975
  %v2036 = vtanh.pop %v1976
  %2039 = vrot.lane.b32.xlu0 %v2035, 64
  %v2040 = vpop.permute.xlu0 %2039
  %2041 = vrot.lane.b32.xlu0 %v2036, 64
  %v2042 = vpop.permute.xlu0 %2041
  %v2045 = vmul.f32 %v2019, %v2040
  %v2046 = vmul.f32 %v2034, %v2042
  %2049 = vrot.lane.b32.xlu0 %v2045, 32
  %v2050 = vpop.permute.xlu0 %2049
  %2051 = vrot.lane.b32.xlu0 %v2046, 32
  %v2052 = vpop.permute.xlu0 %2051
  %2055 = vst.msk [vmem:[#allocation4 + $0x70] sm:$0xff] %vm227, %v2050
  %2056 = vst.msk [vmem:[#allocation4 + $0x78] sm:$0xff] %vm227, %v2052
  %v2057 = vld [vmem:[#allocation4] sm:$0xff]
  %v2058 = vld [vmem:[#allocation4 + $0x8] sm:$0xff]
  %v2059 = vld [vmem:[#allocation4 + $0x10] sm:$0xff]
  %v2060 = vld [vmem:[#allocation4 + $0x18] sm:$0xff]
  %v2061 = vld [vmem:[#allocation4 + $0x20] sm:$0xff]
  %v2062 = vld [vmem:[#allocation4 + $0x28] sm:$0xff]
  %v2063 = vld [vmem:[#allocation4 + $0x30] sm:$0xff]
  %v2064 = vld [vmem:[#allocation4 + $0x38] sm:$0xff]
  %v2065 = vld [vmem:[#allocation4 + $0x40] sm:$0xff]
  %v2066 = vld [vmem:[#allocation4 + $0x48] sm:$0xff]
  %v2067 = vld [vmem:[#allocation4 + $0x50] sm:$0xff]
  %v2068 = vld [vmem:[#allocation4 + $0x58] sm:$0xff]
  %v2069 = vld [vmem:[#allocation4 + $0x60] sm:$0xff]
  %v2070 = vld [vmem:[#allocation4 + $0x68] sm:$0xff]
  %v2071 = vld [vmem:[#allocation4 + $0x70] sm:$0xff]
  %v2072 = vld [vmem:[#allocation4 + $0x78] sm:$0xff]
  %v2073 = vld [vmem:[%s5] sm:$0x1]
  %v2074 = vld [vmem:[%s6] sm:$0x1]
  %v2075 = vld [vmem:[%s7] sm:$0xff]
  %v2076 = vld [vmem:[%s7 + $0x8] sm:$0xff]
  %v2077 = vld [vmem:[%s7 + $0x10] sm:$0xff]
  %v2078 = vld [vmem:[%s7 + $0x18] sm:$0xff]
  %v2079 = vld [vmem:[%s8] sm:$0x1]
  %v2080 = vld [vmem:[%s9] sm:$0xff]
  %v2081 = vld [vmem:[%s9 + $0x8] sm:$0xff]
  %v2082 = vld [vmem:[%s9 + $0x10] sm:$0xff]
  %v2083 = vld [vmem:[%s10] sm:$0x1]
  %v2084 = vtanh.pop %v2057
  %v2085 = vtanh.pop %v2058
  %v2086 = vtanh.pop %v2059
  %v2087 = vtanh.pop %v2060
  %v2088 = vtanh.pop %v2061
  %v2089 = vtanh.pop %v2062
  %v2090 = vtanh.pop %v2063
  %v2091 = vtanh.pop %v2064
  %v2092 = vtanh.pop %v2065
  %v2093 = vtanh.pop %v2066
  %v2094 = vtanh.pop %v2067
  %v2095 = vtanh.pop %v2068
  %v2096 = vtanh.pop %v2069
  %v2097 = vtanh.pop %v2070
  %v2098 = vtanh.pop %v2071
  %v2099 = vtanh.pop %v2072
  %v2101 = vperm.slane %v2073, 0
  %v2103 = vmul.f32 %v2084, %v2101
  %v2104 = vmul.f32 %v2085, %v2101
  %v2105 = vmul.f32 %v2086, %v2101
  %v2106 = vmul.f32 %v2087, %v2101
  %v2107 = vmul.f32 %v2088, %v2101
  %v2108 = vmul.f32 %v2089, %v2101
  %v2109 = vmul.f32 %v2090, %v2101
  %v2110 = vmul.f32 %v2091, %v2101
  %v2111 = vmul.f32 %v2092, %v2101
  %v2112 = vmul.f32 %v2093, %v2101
  %v2113 = vmul.f32 %v2094, %v2101
  %v2114 = vmul.f32 %v2095, %v2101
  %v2115 = vmul.f32 %v2096, %v2101
  %v2116 = vmul.f32 %v2097, %v2101
  %v2117 = vmul.f32 %v2098, %v2101
  %v2118 = vmul.f32 %v2099, %v2101
  %v2120 = vperm.slane %v2074, 0
  %v2122 = vadd.f32 %v2103, %v2120
  %v2123 = vadd.f32 %v2104, %v2120
  %v2124 = vadd.f32 %v2105, %v2120
  %v2125 = vadd.f32 %v2106, %v2120
  %v2126 = vadd.f32 %v2107, %v2120
  %v2127 = vadd.f32 %v2108, %v2120
  %v2128 = vadd.f32 %v2109, %v2120
  %v2129 = vadd.f32 %v2110, %v2120
  %v2130 = vadd.f32 %v2111, %v2120
  %v2131 = vadd.f32 %v2112, %v2120
  %v2132 = vadd.f32 %v2113, %v2120
  %v2133 = vadd.f32 %v2114, %v2120
  %v2134 = vadd.f32 %v2115, %v2120
  %v2135 = vadd.f32 %v2116, %v2120
  %v2136 = vadd.f32 %v2117, %v2120
  %v2137 = vadd.f32 %v2118, %v2120
  %v2139 = vperm.slane %v2079, 0
  %v2142 = vsel %vm227, %v2122, 0
  %v2145 = vsel %vm227, %v2123, 0
  %v2148 = vsel %vm227, %v2124, 0
  %v2151 = vsel %vm227, %v2125, 0
  %v2154 = vsel %vm227, %v2126, 0
  %v2157 = vsel %vm227, %v2127, 0
  %v2160 = vsel %vm227, %v2128, 0
  %v2163 = vsel %vm227, %v2129, 0
  %v2166 = vsel %vm227, %v2130, 0
  %v2169 = vsel %vm227, %v2131, 0
  %v2172 = vsel %vm227, %v2132, 0
  %v2175 = vsel %vm227, %v2133, 0
  %v2178 = vsel %vm227, %v2134, 0
  %v2181 = vsel %vm227, %v2135, 0
  %v2184 = vsel %vm227, %v2136, 0
  %v2187 = vsel %vm227, %v2137, 0
  %2189 = vmatpush.msra.mxu0 0.0
  %2190 = vmatpush.msra.mxu0 0.0
  %2191 = vmatpush.msra.mxu0 0.0
  %2192 = vmatpush.msra.mxu0 0.0
  %2193 = vmatpush.msra.mxu0 0.0
  %2194 = vmatpush.msra.mxu0 0.0
  %2195 = vmatpush.msra.mxu0 0.0
  %2196 = vmatpush.msra.mxu0 0.0
  %2197 = vmatpush.msra.mxu0 0.0
  %2198 = vmatpush.msra.mxu0 0.0
  %2199 = vmatpush.msra.mxu0 0.0
  %2200 = vmatpush.msra.mxu0 0.0
  %2201 = vmatpush.msra.mxu0 %v2078
  %2202 = vmatpush.msra.mxu0 %v2077
  %2203 = vmatpush.msra.mxu0 %v2076
  %2204 = vmatpush.msra.mxu0 %v2075
  %2205 = vmatmul.f32.gmra.mxu0 %v2142
  %v2206 = vpop.f32.mrf.mxu0
  %v2207 = vadd.f32 %v2139, %v2206
  %2208 = vmatmul.f32.gmra.mxu0 %v2145
  %v2209 = vpop.f32.mrf.mxu0
  %v2210 = vadd.f32 %v2139, %v2209
  %2211 = vmatmul.f32.gmra.mxu0 %v2148
  %v2212 = vpop.f32.mrf.mxu0
  %v2213 = vadd.f32 %v2139, %v2212
  %2214 = vmatmul.f32.gmra.mxu0 %v2151
  %v2215 = vpop.f32.mrf.mxu0
  %v2216 = vadd.f32 %v2139, %v2215
  %2217 = vmatmul.f32.gmra.mxu0 %v2154
  %v2218 = vpop.f32.mrf.mxu0
  %v2219 = vadd.f32 %v2139, %v2218
  %2220 = vmatmul.f32.gmra.mxu0 %v2157
  %v2221 = vpop.f32.mrf.mxu0
  %v2222 = vadd.f32 %v2139, %v2221
  %2223 = vmatmul.f32.gmra.mxu0 %v2160
  %v2224 = vpop.f32.mrf.mxu0
  %v2225 = vadd.f32 %v2139, %v2224
  %2226 = vmatmul.f32.gmra.mxu0 %v2163
  %v2227 = vpop.f32.mrf.mxu0
  %v2228 = vadd.f32 %v2139, %v2227
  %2229 = vmatmul.f32.gmra.mxu0 %v2166
  %v2230 = vpop.f32.mrf.mxu0
  %v2231 = vadd.f32 %v2139, %v2230
  %2232 = vmatmul.f32.gmra.mxu0 %v2169
  %v2233 = vpop.f32.mrf.mxu0
  %v2234 = vadd.f32 %v2139, %v2233
  %2235 = vmatmul.f32.gmra.mxu0 %v2172
  %v2236 = vpop.f32.mrf.mxu0
  %v2237 = vadd.f32 %v2139, %v2236
  %2238 = vmatmul.f32.gmra.mxu0 %v2175
  %v2239 = vpop.f32.mrf.mxu0
  %v2240 = vadd.f32 %v2139, %v2239
  %2241 = vmatmul.f32.gmra.mxu0 %v2178
  %v2242 = vpop.f32.mrf.mxu0
  %v2243 = vadd.f32 %v2139, %v2242
  %2244 = vmatmul.f32.gmra.mxu0 %v2181
  %v2245 = vpop.f32.mrf.mxu0
  %v2246 = vadd.f32 %v2139, %v2245
  %2247 = vmatmul.f32.gmra.mxu0 %v2184
  %v2248 = vpop.f32.mrf.mxu0
  %v2249 = vadd.f32 %v2139, %v2248
  %2250 = vmatmul.f32.gmra.mxu0 %v2187
  %v2251 = vpop.f32.mrf.mxu0
  %v2252 = vadd.f32 %v2139, %v2251
  %2253 = vdwg.mxu0
  %v2254 = vmax.f32 %v2207, 0.0
  %v2255 = vmax.f32 %v2210, 0.0
  %v2256 = vmax.f32 %v2213, 0.0
  %v2257 = vmax.f32 %v2216, 0.0
  %v2258 = vmax.f32 %v2219, 0.0
  %v2259 = vmax.f32 %v2222, 0.0
  %v2260 = vmax.f32 %v2225, 0.0
  %v2261 = vmax.f32 %v2228, 0.0
  %v2262 = vmax.f32 %v2231, 0.0
  %v2263 = vmax.f32 %v2234, 0.0
  %v2264 = vmax.f32 %v2237, 0.0
  %v2265 = vmax.f32 %v2240, 0.0
  %v2266 = vmax.f32 %v2243, 0.0
  %v2267 = vmax.f32 %v2246, 0.0
  %v2268 = vmax.f32 %v2249, 0.0
  %v2269 = vmax.f32 %v2252, 0.0
  %v2271 = vperm.slane %v2083, 0
  %vm2273 = vcmask 195584
  %v2275 = vsel %vm2273, %v2254, 0
  %v2278 = vsel %vm2273, %v2255, 0
  %v2281 = vsel %vm2273, %v2256, 0
  %v2284 = vsel %vm2273, %v2257, 0
  %v2287 = vsel %vm2273, %v2258, 0
  %v2290 = vsel %vm2273, %v2259, 0
  %v2293 = vsel %vm2273, %v2260, 0
  %v2296 = vsel %vm2273, %v2261, 0
  %v2299 = vsel %vm2273, %v2262, 0
  %v2302 = vsel %vm2273, %v2263, 0
  %v2305 = vsel %vm2273, %v2264, 0
  %v2308 = vsel %vm2273, %v2265, 0
  %v2311 = vsel %vm2273, %v2266, 0
  %v2314 = vsel %vm2273, %v2267, 0
  %v2317 = vsel %vm2273, %v2268, 0
  %v2320 = vsel %vm2273, %v2269, 0
  %2322 = vmatpush.msra.mxu0 0.0
  %2323 = vmatpush.msra.mxu0 0.0
  %2324 = vmatpush.msra.mxu0 0.0
  %2325 = vmatpush.msra.mxu0 0.0
  %2326 = vmatpush.msra.mxu0 0.0
  %2327 = vmatpush.msra.mxu0 0.0
  %2328 = vmatpush.msra.mxu0 0.0
  %2329 = vmatpush.msra.mxu0 0.0
  %2330 = vmatpush.msra.mxu0 0.0
  %2331 = vmatpush.msra.mxu0 0.0
  %2332 = vmatpush.msra.mxu0 0.0
  %2333 = vmatpush.msra.mxu0 0.0
  %2334 = vmatpush.msra.mxu0 0.0
  %2335 = vmatpush.msra.mxu0 %v2082
  %2336 = vmatpush.msra.mxu0 %v2081
  %2337 = vmatpush.msra.mxu0 %v2080
  %2338 = vmatmul.f32.gmra.mxu0 %v2275
  %v2339 = vpop.f32.mrf.mxu0
  %v2340 = vadd.f32 %v2271, %v2339
  %2341 = vmatmul.f32.gmra.mxu0 %v2278
  %v2342 = vpop.f32.mrf.mxu0
  %v2343 = vadd.f32 %v2271, %v2342
  %2344 = vmatmul.f32.gmra.mxu0 %v2281
  %v2345 = vpop.f32.mrf.mxu0
  %v2346 = vadd.f32 %v2271, %v2345
  %2347 = vmatmul.f32.gmra.mxu0 %v2284
  %v2348 = vpop.f32.mrf.mxu0
  %v2349 = vadd.f32 %v2271, %v2348
  %2350 = vmatmul.f32.gmra.mxu0 %v2287
  %v2351 = vpop.f32.mrf.mxu0
  %v2352 = vadd.f32 %v2271, %v2351
  %2353 = vmatmul.f32.gmra.mxu0 %v2290
  %v2354 = vpop.f32.mrf.mxu0
  %v2355 = vadd.f32 %v2271, %v2354
  %2356 = vmatmul.f32.gmra.mxu0 %v2293
  %v2357 = vpop.f32.mrf.mxu0
  %v2358 = vadd.f32 %v2271, %v2357
  %2359 = vmatmul.f32.gmra.mxu0 %v2296
  %v2360 = vpop.f32.mrf.mxu0
  %v2361 = vadd.f32 %v2271, %v2360
  %2362 = vmatmul.f32.gmra.mxu0 %v2299
  %v2363 = vpop.f32.mrf.mxu0
  %v2364 = vadd.f32 %v2271, %v2363
  %2365 = vmatmul.f32.gmra.mxu0 %v2302
  %v2366 = vpop.f32.mrf.mxu0
  %v2367 = vadd.f32 %v2271, %v2366
  %2368 = vmatmul.f32.gmra.mxu0 %v2305
  %v2369 = vpop.f32.mrf.mxu0
  %v2370 = vadd.f32 %v2271, %v2369
  %2371 = vmatmul.f32.gmra.mxu0 %v2308
  %v2372 = vpop.f32.mrf.mxu0
  %v2373 = vadd.f32 %v2271, %v2372
  %2374 = vmatmul.f32.gmra.mxu0 %v2311
  %v2375 = vpop.f32.mrf.mxu0
  %v2376 = vadd.f32 %v2271, %v2375
  %2377 = vmatmul.f32.gmra.mxu0 %v2314
  %v2378 = vpop.f32.mrf.mxu0
  %v2379 = vadd.f32 %v2271, %v2378
  %2380 = vmatmul.f32.gmra.mxu0 %v2317
  %v2381 = vpop.f32.mrf.mxu0
  %v2382 = vadd.f32 %v2271, %v2381
  %2383 = vmatmul.f32.gmra.mxu0 %v2320
  %v2384 = vpop.f32.mrf.mxu0
  %v2385 = vadd.f32 %v2271, %v2384
  %2386 = vdwg.mxu0
  %v2387 = vld [vmem:[%s11] sm:$0xff]
  %v2388 = vld [vmem:[%s11 + $0x8] sm:$0xff]
  %vm2389 = vcmask 130048
  %v2391 = vsel %vm2389, %v2340, 0
  %v2394 = vsel %vm2389, %v2343, 0
  %v2397 = vsel %vm2389, %v2346, 0
  %v2400 = vsel %vm2389, %v2349, 0
  %v2403 = vsel %vm2389, %v2352, 0
  %v2406 = vsel %vm2389, %v2355, 0
  %v2409 = vsel %vm2389, %v2358, 0
  %v2412 = vsel %vm2389, %v2361, 0
  %v2415 = vsel %vm2389, %v2364, 0
  %v2418 = vsel %vm2389, %v2367, 0
  %v2421 = vsel %vm2389, %v2370, 0
  %v2424 = vsel %vm2389, %v2373, 0
  %v2427 = vsel %vm2389, %v2376, 0
  %v2430 = vsel %vm2389, %v2379, 0
  %v2433 = vsel %vm2389, %v2382, 0
  %v2436 = vsel %vm2389, %v2385, 0
  %2438 = vmatpush.msra.mxu0 0.0
  %2439 = vmatpush.msra.mxu0 0.0
  %2440 = vmatpush.msra.mxu0 0.0
  %2441 = vmatpush.msra.mxu0 0.0
  %2442 = vmatpush.msra.mxu0 0.0
  %2443 = vmatpush.msra.mxu0 0.0
  %2444 = vmatpush.msra.mxu0 0.0
  %2445 = vmatpush.msra.mxu0 0.0
  %2446 = vmatpush.msra.mxu0 0.0
  %2447 = vmatpush.msra.mxu0 0.0
  %2448 = vmatpush.msra.mxu0 0.0
  %2449 = vmatpush.msra.mxu0 0.0
  %2450 = vmatpush.msra.mxu0 0.0
  %2451 = vmatpush.msra.mxu0 0.0
  %2452 = vmatpush.msra.mxu0 %v2388
  %2453 = vmatpush.msra.mxu0 %v2387
  %2454 = vmatmul.f32.gmra.mxu0 %v2391
  %v2455 = vpop.f32.mrf.mxu0
  %v2456 = vadd.f32 0.0, %v2455
  %2457 = vmatmul.f32.gmra.mxu0 %v2394
  %v2458 = vpop.f32.mrf.mxu0
  %v2459 = vadd.f32 0.0, %v2458
  %2460 = vmatmul.f32.gmra.mxu0 %v2397
  %v2461 = vpop.f32.mrf.mxu0
  %v2462 = vadd.f32 0.0, %v2461
  %2463 = vmatmul.f32.gmra.mxu0 %v2400
  %v2464 = vpop.f32.mrf.mxu0
  %v2465 = vadd.f32 0.0, %v2464
  %2466 = vmatmul.f32.gmra.mxu0 %v2403
  %v2467 = vpop.f32.mrf.mxu0
  %v2468 = vadd.f32 0.0, %v2467
  %2469 = vmatmul.f32.gmra.mxu0 %v2406
  %v2470 = vpop.f32.mrf.mxu0
  %v2471 = vadd.f32 0.0, %v2470
  %2472 = vmatmul.f32.gmra.mxu0 %v2409
  %v2473 = vpop.f32.mrf.mxu0
  %v2474 = vadd.f32 0.0, %v2473
  %2475 = vmatmul.f32.gmra.mxu0 %v2412
  %v2476 = vpop.f32.mrf.mxu0
  %v2477 = vadd.f32 0.0, %v2476
  %2478 = vmatmul.f32.gmra.mxu0 %v2415
  %v2479 = vpop.f32.mrf.mxu0
  %v2480 = vadd.f32 0.0, %v2479
  %2481 = vmatmul.f32.gmra.mxu0 %v2418
  %v2482 = vpop.f32.mrf.mxu0
  %v2483 = vadd.f32 0.0, %v2482
  %2484 = vmatmul.f32.gmra.mxu0 %v2421
  %v2485 = vpop.f32.mrf.mxu0
  %v2486 = vadd.f32 0.0, %v2485
  %2487 = vmatmul.f32.gmra.mxu0 %v2424
  %v2488 = vpop.f32.mrf.mxu0
  %v2489 = vadd.f32 0.0, %v2488
  %2490 = vmatmul.f32.gmra.mxu0 %v2427
  %v2491 = vpop.f32.mrf.mxu0
  %v2492 = vadd.f32 0.0, %v2491
  %2493 = vmatmul.f32.gmra.mxu0 %v2430
  %v2494 = vpop.f32.mrf.mxu0
  %v2495 = vadd.f32 0.0, %v2494
  %2496 = vmatmul.f32.gmra.mxu0 %v2433
  %v2497 = vpop.f32.mrf.mxu0
  %v2498 = vadd.f32 0.0, %v2497
  %2499 = vmatmul.f32.gmra.mxu0 %v2436
  %v2500 = vpop.f32.mrf.mxu0
  %v2501 = vadd.f32 0.0, %v2500
  %2502 = vdwg.mxu0
  %2503 = vst [vmem:[#allocation3] sm:$0xff] %v2456
  %2504 = vst [vmem:[#allocation3 + $0x8] sm:$0xff] %v2459
  %2505 = vst [vmem:[#allocation3 + $0x10] sm:$0xff] %v2462
  %2506 = vst [vmem:[#allocation3 + $0x18] sm:$0xff] %v2465
  %2507 = vst [vmem:[#allocation3 + $0x20] sm:$0xff] %v2468
  %2508 = vst [vmem:[#allocation3 + $0x28] sm:$0xff] %v2471
  %2509 = vst [vmem:[#allocation3 + $0x30] sm:$0xff] %v2474
  %2510 = vst [vmem:[#allocation3 + $0x38] sm:$0xff] %v2477
  %2511 = vst [vmem:[#allocation3 + $0x40] sm:$0xff] %v2480
  %2512 = vst [vmem:[#allocation3 + $0x48] sm:$0xff] %v2483
  %2513 = vst [vmem:[#allocation3 + $0x50] sm:$0xff] %v2486
  %2514 = vst [vmem:[#allocation3 + $0x58] sm:$0xff] %v2489
  %2515 = vst [vmem:[#allocation3 + $0x60] sm:$0xff] %v2492
  %2516 = vst [vmem:[#allocation3 + $0x68] sm:$0xff] %v2495
  %2517 = vst [vmem:[#allocation3 + $0x70] sm:$0xff] %v2498
  %2518 = vst [vmem:[#allocation3 + $0x78] sm:$0xff] %v2501
  %v2519 = vld [vmem:[%s12] sm:$0xff]
  %v2520 = vld [vmem:[%s12 + $0x8] sm:$0xff]
  %v2521 = vld [vmem:[%s12 + $0x10] sm:$0xff]
  %v2522 = vld [vmem:[%s12 + $0x18] sm:$0xff]
  %v2523 = vld [vmem:[%s13] sm:$0x1]
  %v2524 = vld [vmem:[%s14] sm:$0x7]
  %v2525 = vld [vmem:[#allocation3] sm:$0xff]
  %v2526 = vld [vmem:[#allocation3 + $0x8] sm:$0xff]
  %2527 = vmatpush.msra.mxu0 0.0
  %2528 = vmatpush.msra.mxu0 0.0
  %2529 = vmatpush.msra.mxu0 0.0
  %2530 = vmatpush.msra.mxu0 0.0
  %2531 = vmatpush.msra.mxu0 0.0
  %2532 = vmatpush.msra.mxu0 0.0
  %2533 = vmatpush.msra.mxu0 0.0
  %2534 = vmatpush.msra.mxu0 0.0
  %2535 = vmatpush.msra.mxu0 0.0
  %2536 = vmatpush.msra.mxu0 0.0
  %2537 = vmatpush.msra.mxu0 0.0
  %2538 = vmatpush.msra.mxu0 0.0
  %2539 = vmatpush.msra.mxu0 %v2522
  %2540 = vmatpush.msra.mxu0 %v2521
  %2541 = vmatpush.msra.mxu0 %v2520
  %2542 = vmatpush.msra.mxu0 %v2519
  %2543 = vmatmul.f32.gmra.mxu0 %v229
  %v2544 = vpop.f32.mrf.mxu0
  %v2545 = vadd.f32 0.0, %v2544
  %2546 = vmatmul.f32.gmra.mxu0 %v229
  %v2547 = vpop.f32.mrf.mxu0
  %v2548 = vadd.f32 0.0, %v2547
  %2549 = vdwg.mxu0
  %v2550 = vadd.f32 %v2525, %v2545
  %v2551 = vadd.f32 %v2526, %v2548
  %v2553 = vperm.slane %v2523, 0
  %v2555 = vadd.f32 %v2550, %v2553
  %v2556 = vadd.f32 %v2551, %v2553
  %v2557 = vperm.slane %v2524, 0
  %v2558 = vmul.f32 %v2557, 0.0
  %v2559 = vadd.f32 %v2555, %v2558
  %v2560 = vadd.f32 %v2556, %v2558
  %v2561 = vxor.u32 %v2559, 2147483648
  %v2562 = vxor.u32 %v2560, 2147483648
  %v2563 = vmul.f32 %v2561, 1.442695
  %v2564 = vpow.pop %v2563
  %v2565 = vmul.f32 %v2562, 1.442695
  %v2566 = vpow.pop %v2565
  %v2567 = vadd.f32 %v2564, 1.0
  %v2568 = vadd.f32 %v2566, 1.0
  %v2569 = vrcp.pop %v2567
  %v2570 = vmul.f32 %v2567, %v2569
  %v2571 = vsub.f32 1.0, %v2570
  %v2572 = vmul.f32 %v2569, %v2571
  %v2573 = vadd.f32 %v2569, %v2572
  %vm2574 = vweird.f32 %v2567
  %vm2575 = vweird.f32 %v2569
  %vm2576 = vmor %vm2574, %vm2575
  %v2577 = vsel %vm2576, %v2569, %v2573
  %v2578 = vand.u32 2147483647, %v2567
  %vm2579 = vcmp.eq.f32.partialorder %v2578, 8.507059e+37
  %v2580 = vand.u32 %v2567, 2147483648
  %v2581 = vor.u32 1.1754944e-38, %v2580
  %v2582 = vsel %vm2579, %v2581, %v2577
  %v2583 = vmul.f32 1.0, %v2582
  %v2584 = vrcp.pop %v2568
  %v2585 = vmul.f32 %v2568, %v2584
  %v2586 = vsub.f32 1.0, %v2585
  %v2587 = vmul.f32 %v2584, %v2586
  %v2588 = vadd.f32 %v2584, %v2587
  %vm2589 = vweird.f32 %v2568
  %vm2590 = vweird.f32 %v2584
  %vm2591 = vmor %vm2589, %vm2590
  %v2592 = vsel %vm2591, %v2584, %v2588
  %v2593 = vand.u32 2147483647, %v2568
  %vm2594 = vcmp.eq.f32.partialorder %v2593, 8.507059e+37
  %v2595 = vand.u32 %v2568, 2147483648
  %v2596 = vor.u32 1.1754944e-38, %v2595
  %v2597 = vsel %vm2594, %v2596, %v2592
  %v2598 = vmul.f32 1.0, %v2597
  %v2599 = vperm.slane %v2524, 1
  %v2600 = vmul.f32 %v2599, 0.0
  %2602 = vrot.lane.b32.xlu0 %v2600, 32
  %v2603 = vpop.permute.xlu0 %2602
  %v2605 = vadd.f32 %v2555, %v2603
  %v2606 = vadd.f32 %v2556, %v2603
  %v2607 = vxor.u32 %v2605, 2147483648
  %v2608 = vxor.u32 %v2606, 2147483648
  %v2609 = vmul.f32 %v2607, 1.442695
  %v2610 = vpow.pop %v2609
  %v2611 = vmul.f32 %v2608, 1.442695
  %v2612 = vpow.pop %v2611
  %v2613 = vadd.f32 %v2610, 1.0
  %v2614 = vadd.f32 %v2612, 1.0
  %v2615 = vrcp.pop %v2613
  %v2616 = vmul.f32 %v2613, %v2615
  %v2617 = vsub.f32 1.0, %v2616
  %v2618 = vmul.f32 %v2615, %v2617
  %v2619 = vadd.f32 %v2615, %v2618
  %vm2620 = vweird.f32 %v2613
  %vm2621 = vweird.f32 %v2615
  %vm2622 = vmor %vm2620, %vm2621
  %v2623 = vsel %vm2622, %v2615, %v2619
  %v2624 = vand.u32 2147483647, %v2613
  %vm2625 = vcmp.eq.f32.partialorder %v2624, 8.507059e+37
  %v2626 = vand.u32 %v2613, 2147483648
  %v2627 = vor.u32 1.1754944e-38, %v2626
  %v2628 = vsel %vm2625, %v2627, %v2623
  %v2629 = vmul.f32 1.0, %v2628
  %v2630 = vrcp.pop %v2614
  %v2631 = vmul.f32 %v2614, %v2630
  %v2632 = vsub.f32 1.0, %v2631
  %v2633 = vmul.f32 %v2630, %v2632
  %v2634 = vadd.f32 %v2630, %v2633
  %vm2635 = vweird.f32 %v2614
  %vm2636 = vweird.f32 %v2630
  %vm2637 = vmor %vm2635, %vm2636
  %v2638 = vsel %vm2637, %v2630, %v2634
  %v2639 = vand.u32 2147483647, %v2614
  %vm2640 = vcmp.eq.f32.partialorder %v2639, 8.507059e+37
  %v2641 = vand.u32 %v2614, 2147483648
  %v2642 = vor.u32 1.1754944e-38, %v2641
  %v2643 = vsel %vm2640, %v2642, %v2638
  %v2644 = vmul.f32 1.0, %v2643
  %v2645 = vtanh.pop %v2555
  %v2646 = vtanh.pop %v2556
  %v2647 = vmul.f32 %v2629, 0.0
  %v2648 = vmul.f32 %v2644, 0.0
  %2651 = vrot.lane.b32.xlu0 %v2645, 64
  %v2652 = vpop.permute.xlu0 %2651
  %2653 = vrot.lane.b32.xlu0 %v2646, 64
  %v2654 = vpop.permute.xlu0 %2653
  %v2657 = vmul.f32 %v2583, %v2652
  %v2658 = vmul.f32 %v2598, %v2654
  %2661 = vrot.lane.b32.xlu0 %v2657, 32
  %v2662 = vpop.permute.xlu0 %2661
  %2663 = vrot.lane.b32.xlu0 %v2658, 32
  %v2664 = vpop.permute.xlu0 %2663
  %v2667 = vadd.f32 %v2647, %v2662
  %v2668 = vadd.f32 %v2648, %v2664
  %v2669 = vperm.slane %v2524, 2
  %2672 = vrot.lane.b32.xlu0 %v2667, 96
  %v2673 = vpop.permute.xlu0 %2672
  %2674 = vrot.lane.b32.xlu0 %v2668, 96
  %v2675 = vpop.permute.xlu0 %2674
  %v2678 = vmul.f32 %v2669, %v2673
  %v2679 = vmul.f32 %v2669, %v2675
  %2682 = vrot.lane.b32.xlu0 %v2678, 96
  %v2683 = vpop.permute.xlu0 %2682
  %2684 = vrot.lane.b32.xlu0 %v2679, 96
  %v2685 = vpop.permute.xlu0 %2684
  %v2688 = vadd.f32 %v2555, %v2683
  %v2689 = vadd.f32 %v2556, %v2685
  %v2690 = vxor.u32 %v2688, 2147483648
  %v2691 = vxor.u32 %v2689, 2147483648
  %v2692 = vmul.f32 %v2690, 1.442695
  %v2693 = vpow.pop %v2692
  %v2694 = vmul.f32 %v2691, 1.442695
  %v2695 = vpow.pop %v2694
  %v2696 = vadd.f32 %v2693, 1.0
  %v2697 = vadd.f32 %v2695, 1.0
  %v2698 = vrcp.pop %v2696
  %v2699 = vmul.f32 %v2696, %v2698
  %v2700 = vsub.f32 1.0, %v2699
  %v2701 = vmul.f32 %v2698, %v2700
  %v2702 = vadd.f32 %v2698, %v2701
  %vm2703 = vweird.f32 %v2696
  %vm2704 = vweird.f32 %v2698
  %vm2705 = vmor %vm2703, %vm2704
  %v2706 = vsel %vm2705, %v2698, %v2702
  %v2707 = vand.u32 2147483647, %v2696
  %vm2708 = vcmp.eq.f32.partialorder %v2707, 8.507059e+37
  %v2709 = vand.u32 %v2696, 2147483648
  %v2710 = vor.u32 1.1754944e-38, %v2709
  %v2711 = vsel %vm2708, %v2710, %v2706
  %v2712 = vmul.f32 1.0, %v2711
  %v2713 = vrcp.pop %v2697
  %v2714 = vmul.f32 %v2697, %v2713
  %v2715 = vsub.f32 1.0, %v2714
  %v2716 = vmul.f32 %v2713, %v2715
  %v2717 = vadd.f32 %v2713, %v2716
  %vm2718 = vweird.f32 %v2697
  %vm2719 = vweird.f32 %v2713
  %vm2720 = vmor %vm2718, %vm2719
  %v2721 = vsel %vm2720, %v2713, %v2717
  %v2722 = vand.u32 2147483647, %v2697
  %vm2723 = vcmp.eq.f32.partialorder %v2722, 8.507059e+37
  %v2724 = vand.u32 %v2697, 2147483648
  %v2725 = vor.u32 1.1754944e-38, %v2724
  %v2726 = vsel %vm2723, %v2725, %v2721
  %v2727 = vmul.f32 1.0, %v2726
  %v2728 = vtanh.pop %v2667
  %v2729 = vtanh.pop %v2668
  %2732 = vrot.lane.b32.xlu0 %v2728, 64
  %v2733 = vpop.permute.xlu0 %2732
  %2734 = vrot.lane.b32.xlu0 %v2729, 64
  %v2735 = vpop.permute.xlu0 %2734
  %v2738 = vmul.f32 %v2712, %v2733
  %v2739 = vmul.f32 %v2727, %v2735
  %2742 = vrot.lane.b32.xlu0 %v2738, 32
  %v2743 = vpop.permute.xlu0 %2742
  %2744 = vrot.lane.b32.xlu0 %v2739, 32
  %v2745 = vpop.permute.xlu0 %2744
  %2748 = vst.msk [vmem:[#allocation5] sm:$0xff] %vm227, %v2743
  %2749 = vst.msk [vmem:[#allocation5 + $0x8] sm:$0xff] %vm227, %v2745
  %v2750 = vld [vmem:[#allocation3 + $0x10] sm:$0xff]
  %v2751 = vld [vmem:[#allocation3 + $0x18] sm:$0xff]
  %v2752 = vsel %vm227, %v2743, 0
  %v2754 = vsel %vm227, %v2745, 0
  %2756 = vmatpush.msra.mxu0 0.0
  %2757 = vmatpush.msra.mxu0 0.0
  %2758 = vmatpush.msra.mxu0 0.0
  %2759 = vmatpush.msra.mxu0 0.0
  %2760 = vmatpush.msra.mxu0 0.0
  %2761 = vmatpush.msra.mxu0 0.0
  %2762 = vmatpush.msra.mxu0 0.0
  %2763 = vmatpush.msra.mxu0 0.0
  %2764 = vmatpush.msra.mxu0 0.0
  %2765 = vmatpush.msra.mxu0 0.0
  %2766 = vmatpush.msra.mxu0 0.0
  %2767 = vmatpush.msra.mxu0 0.0
  %2768 = vmatpush.msra.mxu0 %v2522
  %2769 = vmatpush.msra.mxu0 %v2521
  %2770 = vmatpush.msra.mxu0 %v2520
  %2771 = vmatpush.msra.mxu0 %v2519
  %2772 = vmatmul.f32.gmra.mxu0 %v2752
  %v2773 = vpop.f32.mrf.mxu0
  %v2774 = vadd.f32 0.0, %v2773
  %2775 = vmatmul.f32.gmra.mxu0 %v2754
  %v2776 = vpop.f32.mrf.mxu0
  %v2777 = vadd.f32 0.0, %v2776
  %2778 = vdwg.mxu0
  %v2779 = vadd.f32 %v2750, %v2774
  %v2780 = vadd.f32 %v2751, %v2777
  %v2781 = vadd.f32 %v2779, %v2553
  %v2782 = vadd.f32 %v2780, %v2553
  %v2783 = vmul.f32 %v2557, %v2673
  %v2784 = vmul.f32 %v2557, %v2675
  %v2785 = vadd.f32 %v2781, %v2783
  %v2786 = vadd.f32 %v2782, %v2784
  %v2787 = vxor.u32 %v2785, 2147483648
  %v2788 = vxor.u32 %v2786, 2147483648
  %v2789 = vmul.f32 %v2787, 1.442695
  %v2790 = vpow.pop %v2789
  %v2791 = vmul.f32 %v2788, 1.442695
  %v2792 = vpow.pop %v2791
  %v2793 = vadd.f32 %v2790, 1.0
  %v2794 = vadd.f32 %v2792, 1.0
  %v2795 = vrcp.pop %v2793
  %v2796 = vmul.f32 %v2793, %v2795
  %v2797 = vsub.f32 1.0, %v2796
  %v2798 = vmul.f32 %v2795, %v2797
  %v2799 = vadd.f32 %v2795, %v2798
  %vm2800 = vweird.f32 %v2793
  %vm2801 = vweird.f32 %v2795
  %vm2802 = vmor %vm2800, %vm2801
  %v2803 = vsel %vm2802, %v2795, %v2799
  %v2804 = vand.u32 2147483647, %v2793
  %vm2805 = vcmp.eq.f32.partialorder %v2804, 8.507059e+37
  %v2806 = vand.u32 %v2793, 2147483648
  %v2807 = vor.u32 1.1754944e-38, %v2806
  %v2808 = vsel %vm2805, %v2807, %v2803
  %v2809 = vmul.f32 1.0, %v2808
  %v2810 = vrcp.pop %v2794
  %v2811 = vmul.f32 %v2794, %v2810
  %v2812 = vsub.f32 1.0, %v2811
  %v2813 = vmul.f32 %v2810, %v2812
  %v2814 = vadd.f32 %v2810, %v2813
  %vm2815 = vweird.f32 %v2794
  %vm2816 = vweird.f32 %v2810
  %vm2817 = vmor %vm2815, %vm2816
  %v2818 = vsel %vm2817, %v2810, %v2814
  %v2819 = vand.u32 2147483647, %v2794
  %vm2820 = vcmp.eq.f32.partialorder %v2819, 8.507059e+37
  %v2821 = vand.u32 %v2794, 2147483648
  %v2822 = vor.u32 1.1754944e-38, %v2821
  %v2823 = vsel %vm2820, %v2822, %v2818
  %v2824 = vmul.f32 1.0, %v2823
  %v2825 = vmul.f32 %v2599, %v2673
  %v2826 = vmul.f32 %v2599, %v2675
  %2829 = vrot.lane.b32.xlu0 %v2825, 32
  %v2830 = vpop.permute.xlu0 %2829
  %2831 = vrot.lane.b32.xlu0 %v2826, 32
  %v2832 = vpop.permute.xlu0 %2831
  %v2835 = vadd.f32 %v2781, %v2830
  %v2836 = vadd.f32 %v2782, %v2832
  %v2837 = vxor.u32 %v2835, 2147483648
  %v2838 = vxor.u32 %v2836, 2147483648
  %v2839 = vmul.f32 %v2837, 1.442695
  %v2840 = vpow.pop %v2839
  %v2841 = vmul.f32 %v2838, 1.442695
  %v2842 = vpow.pop %v2841
  %v2843 = vadd.f32 %v2840, 1.0
  %v2844 = vadd.f32 %v2842, 1.0
  %v2845 = vrcp.pop %v2843
  %v2846 = vmul.f32 %v2843, %v2845
  %v2847 = vsub.f32 1.0, %v2846
  %v2848 = vmul.f32 %v2845, %v2847
  %v2849 = vadd.f32 %v2845, %v2848
  %vm2850 = vweird.f32 %v2843
  %vm2851 = vweird.f32 %v2845
  %vm2852 = vmor %vm2850, %vm2851
  %v2853 = vsel %vm2852, %v2845, %v2849
  %v2854 = vand.u32 2147483647, %v2843
  %vm2855 = vcmp.eq.f32.partialorder %v2854, 8.507059e+37
  %v2856 = vand.u32 %v2843, 2147483648
  %v2857 = vor.u32 1.1754944e-38, %v2856
  %v2858 = vsel %vm2855, %v2857, %v2853
  %v2859 = vmul.f32 1.0, %v2858
  %v2860 = vrcp.pop %v2844
  %v2861 = vmul.f32 %v2844, %v2860
  %v2862 = vsub.f32 1.0, %v2861
  %v2863 = vmul.f32 %v2860, %v2862
  %v2864 = vadd.f32 %v2860, %v2863
  %vm2865 = vweird.f32 %v2844
  %vm2866 = vweird.f32 %v2860
  %vm2867 = vmor %vm2865, %vm2866
  %v2868 = vsel %vm2867, %v2860, %v2864
  %v2869 = vand.u32 2147483647, %v2844
  %vm2870 = vcmp.eq.f32.partialorder %v2869, 8.507059e+37
  %v2871 = vand.u32 %v2844, 2147483648
  %v2872 = vor.u32 1.1754944e-38, %v2871
  %v2873 = vsel %vm2870, %v2872, %v2868
  %v2874 = vmul.f32 1.0, %v2873
  %v2875 = vtanh.pop %v2781
  %v2876 = vtanh.pop %v2782
  %v2877 = vmul.f32 %v2859, %v2667
  %v2878 = vmul.f32 %v2874, %v2668
  %2881 = vrot.lane.b32.xlu0 %v2875, 64
  %v2882 = vpop.permute.xlu0 %2881
  %2883 = vrot.lane.b32.xlu0 %v2876, 64
  %v2884 = vpop.permute.xlu0 %2883
  %v2887 = vmul.f32 %v2809, %v2882
  %v2888 = vmul.f32 %v2824, %v2884
  %2891 = vrot.lane.b32.xlu0 %v2887, 32
  %v2892 = vpop.permute.xlu0 %2891
  %2893 = vrot.lane.b32.xlu0 %v2888, 32
  %v2894 = vpop.permute.xlu0 %2893
  %v2897 = vadd.f32 %v2877, %v2892
  %v2898 = vadd.f32 %v2878, %v2894
  %2901 = vrot.lane.b32.xlu0 %v2897, 96
  %v2902 = vpop.permute.xlu0 %2901
  %2903 = vrot.lane.b32.xlu0 %v2898, 96
  %v2904 = vpop.permute.xlu0 %2903
  %v2907 = vmul.f32 %v2669, %v2902
  %v2908 = vmul.f32 %v2669, %v2904
  %2911 = vrot.lane.b32.xlu0 %v2907, 96
  %v2912 = vpop.permute.xlu0 %2911
  %2913 = vrot.lane.b32.xlu0 %v2908, 96
  %v2914 = vpop.permute.xlu0 %2913
  %v2917 = vadd.f32 %v2781, %v2912
  %v2918 = vadd.f32 %v2782, %v2914
  %v2919 = vxor.u32 %v2917, 2147483648
  %v2920 = vxor.u32 %v2918, 2147483648
  %v2921 = vmul.f32 %v2919, 1.442695
  %v2922 = vpow.pop %v2921
  %v2923 = vmul.f32 %v2920, 1.442695
  %v2924 = vpow.pop %v2923
  %v2925 = vadd.f32 %v2922, 1.0
  %v2926 = vadd.f32 %v2924, 1.0
  %v2927 = vrcp.pop %v2925
  %v2928 = vmul.f32 %v2925, %v2927
  %v2929 = vsub.f32 1.0, %v2928
  %v2930 = vmul.f32 %v2927, %v2929
  %v2931 = vadd.f32 %v2927, %v2930
  %vm2932 = vweird.f32 %v2925
  %vm2933 = vweird.f32 %v2927
  %vm2934 = vmor %vm2932, %vm2933
  %v2935 = vsel %vm2934, %v2927, %v2931
  %v2936 = vand.u32 2147483647, %v2925
  %vm2937 = vcmp.eq.f32.partialorder %v2936, 8.507059e+37
  %v2938 = vand.u32 %v2925, 2147483648
  %v2939 = vor.u32 1.1754944e-38, %v2938
  %v2940 = vsel %vm2937, %v2939, %v2935
  %v2941 = vmul.f32 1.0, %v2940
  %v2942 = vrcp.pop %v2926
  %v2943 = vmul.f32 %v2926, %v2942
  %v2944 = vsub.f32 1.0, %v2943
  %v2945 = vmul.f32 %v2942, %v2944
  %v2946 = vadd.f32 %v2942, %v2945
  %vm2947 = vweird.f32 %v2926
  %vm2948 = vweird.f32 %v2942
  %vm2949 = vmor %vm2947, %vm2948
  %v2950 = vsel %vm2949, %v2942, %v2946
  %v2951 = vand.u32 2147483647, %v2926
  %vm2952 = vcmp.eq.f32.partialorder %v2951, 8.507059e+37
  %v2953 = vand.u32 %v2926, 2147483648
  %v2954 = vor.u32 1.1754944e-38, %v2953
  %v2955 = vsel %vm2952, %v2954, %v2950
  %v2956 = vmul.f32 1.0, %v2955
  %v2957 = vtanh.pop %v2897
  %v2958 = vtanh.pop %v2898
  %2961 = vrot.lane.b32.xlu0 %v2957, 64
  %v2962 = vpop.permute.xlu0 %2961
  %2963 = vrot.lane.b32.xlu0 %v2958, 64
  %v2964 = vpop.permute.xlu0 %2963
  %v2967 = vmul.f32 %v2941, %v2962
  %v2968 = vmul.f32 %v2956, %v2964
  %2971 = vrot.lane.b32.xlu0 %v2967, 32
  %v2972 = vpop.permute.xlu0 %2971
  %2973 = vrot.lane.b32.xlu0 %v2968, 32
  %v2974 = vpop.permute.xlu0 %2973
  %2977 = vst.msk [vmem:[#allocation5 + $0x10] sm:$0xff] %vm227, %v2972
  %2978 = vst.msk [vmem:[#allocation5 + $0x18] sm:$0xff] %vm227, %v2974
  %v2979 = vld [vmem:[#allocation3 + $0x20] sm:$0xff]
  %v2980 = vld [vmem:[#allocation3 + $0x28] sm:$0xff]
  %v2981 = vsel %vm227, %v2972, 0
  %v2983 = vsel %vm227, %v2974, 0
  %2985 = vmatpush.msra.mxu0 0.0
  %2986 = vmatpush.msra.mxu0 0.0
  %2987 = vmatpush.msra.mxu0 0.0
  %2988 = vmatpush.msra.mxu0 0.0
  %2989 = vmatpush.msra.mxu0 0.0
  %2990 = vmatpush.msra.mxu0 0.0
  %2991 = vmatpush.msra.mxu0 0.0
  %2992 = vmatpush.msra.mxu0 0.0
  %2993 = vmatpush.msra.mxu0 0.0
  %2994 = vmatpush.msra.mxu0 0.0
  %2995 = vmatpush.msra.mxu0 0.0
  %2996 = vmatpush.msra.mxu0 0.0
  %2997 = vmatpush.msra.mxu0 %v2522
  %2998 = vmatpush.msra.mxu0 %v2521
  %2999 = vmatpush.msra.mxu0 %v2520
  %3000 = vmatpush.msra.mxu0 %v2519
  %3001 = vmatmul.f32.gmra.mxu0 %v2981
  %v3002 = vpop.f32.mrf.mxu0
  %v3003 = vadd.f32 0.0, %v3002
  %3004 = vmatmul.f32.gmra.mxu0 %v2983
  %v3005 = vpop.f32.mrf.mxu0
  %v3006 = vadd.f32 0.0, %v3005
  %3007 = vdwg.mxu0
  %v3008 = vadd.f32 %v2979, %v3003
  %v3009 = vadd.f32 %v2980, %v3006
  %v3010 = vadd.f32 %v3008, %v2553
  %v3011 = vadd.f32 %v3009, %v2553
  %v3012 = vmul.f32 %v2557, %v2902
  %v3013 = vmul.f32 %v2557, %v2904
  %v3014 = vadd.f32 %v3010, %v3012
  %v3015 = vadd.f32 %v3011, %v3013
  %v3016 = vxor.u32 %v3014, 2147483648
  %v3017 = vxor.u32 %v3015, 2147483648
  %v3018 = vmul.f32 %v3016, 1.442695
  %v3019 = vpow.pop %v3018
  %v3020 = vmul.f32 %v3017, 1.442695
  %v3021 = vpow.pop %v3020
  %v3022 = vadd.f32 %v3019, 1.0
  %v3023 = vadd.f32 %v3021, 1.0
  %v3024 = vrcp.pop %v3022
  %v3025 = vmul.f32 %v3022, %v3024
  %v3026 = vsub.f32 1.0, %v3025
  %v3027 = vmul.f32 %v3024, %v3026
  %v3028 = vadd.f32 %v3024, %v3027
  %vm3029 = vweird.f32 %v3022
  %vm3030 = vweird.f32 %v3024
  %vm3031 = vmor %vm3029, %vm3030
  %v3032 = vsel %vm3031, %v3024, %v3028
  %v3033 = vand.u32 2147483647, %v3022
  %vm3034 = vcmp.eq.f32.partialorder %v3033, 8.507059e+37
  %v3035 = vand.u32 %v3022, 2147483648
  %v3036 = vor.u32 1.1754944e-38, %v3035
  %v3037 = vsel %vm3034, %v3036, %v3032
  %v3038 = vmul.f32 1.0, %v3037
  %v3039 = vrcp.pop %v3023
  %v3040 = vmul.f32 %v3023, %v3039
  %v3041 = vsub.f32 1.0, %v3040
  %v3042 = vmul.f32 %v3039, %v3041
  %v3043 = vadd.f32 %v3039, %v3042
  %vm3044 = vweird.f32 %v3023
  %vm3045 = vweird.f32 %v3039
  %vm3046 = vmor %vm3044, %vm3045
  %v3047 = vsel %vm3046, %v3039, %v3043
  %v3048 = vand.u32 2147483647, %v3023
  %vm3049 = vcmp.eq.f32.partialorder %v3048, 8.507059e+37
  %v3050 = vand.u32 %v3023, 2147483648
  %v3051 = vor.u32 1.1754944e-38, %v3050
  %v3052 = vsel %vm3049, %v3051, %v3047
  %v3053 = vmul.f32 1.0, %v3052
  %v3054 = vmul.f32 %v2599, %v2902
  %v3055 = vmul.f32 %v2599, %v2904
  %3058 = vrot.lane.b32.xlu0 %v3054, 32
  %v3059 = vpop.permute.xlu0 %3058
  %3060 = vrot.lane.b32.xlu0 %v3055, 32
  %v3061 = vpop.permute.xlu0 %3060
  %v3064 = vadd.f32 %v3010, %v3059
  %v3065 = vadd.f32 %v3011, %v3061
  %v3066 = vxor.u32 %v3064, 2147483648
  %v3067 = vxor.u32 %v3065, 2147483648
  %v3068 = vmul.f32 %v3066, 1.442695
  %v3069 = vpow.pop %v3068
  %v3070 = vmul.f32 %v3067, 1.442695
  %v3071 = vpow.pop %v3070
  %v3072 = vadd.f32 %v3069, 1.0
  %v3073 = vadd.f32 %v3071, 1.0
  %v3074 = vrcp.pop %v3072
  %v3075 = vmul.f32 %v3072, %v3074
  %v3076 = vsub.f32 1.0, %v3075
  %v3077 = vmul.f32 %v3074, %v3076
  %v3078 = vadd.f32 %v3074, %v3077
  %vm3079 = vweird.f32 %v3072
  %vm3080 = vweird.f32 %v3074
  %vm3081 = vmor %vm3079, %vm3080
  %v3082 = vsel %vm3081, %v3074, %v3078
  %v3083 = vand.u32 2147483647, %v3072
  %vm3084 = vcmp.eq.f32.partialorder %v3083, 8.507059e+37
  %v3085 = vand.u32 %v3072, 2147483648
  %v3086 = vor.u32 1.1754944e-38, %v3085
  %v3087 = vsel %vm3084, %v3086, %v3082
  %v3088 = vmul.f32 1.0, %v3087
  %v3089 = vrcp.pop %v3073
  %v3090 = vmul.f32 %v3073, %v3089
  %v3091 = vsub.f32 1.0, %v3090
  %v3092 = vmul.f32 %v3089, %v3091
  %v3093 = vadd.f32 %v3089, %v3092
  %vm3094 = vweird.f32 %v3073
  %vm3095 = vweird.f32 %v3089
  %vm3096 = vmor %vm3094, %vm3095
  %v3097 = vsel %vm3096, %v3089, %v3093
  %v3098 = vand.u32 2147483647, %v3073
  %vm3099 = vcmp.eq.f32.partialorder %v3098, 8.507059e+37
  %v3100 = vand.u32 %v3073, 2147483648
  %v3101 = vor.u32 1.1754944e-38, %v3100
  %v3102 = vsel %vm3099, %v3101, %v3097
  %v3103 = vmul.f32 1.0, %v3102
  %v3104 = vtanh.pop %v3010
  %v3105 = vtanh.pop %v3011
  %v3106 = vmul.f32 %v3088, %v2897
  %v3107 = vmul.f32 %v3103, %v2898
  %3110 = vrot.lane.b32.xlu0 %v3104, 64
  %v3111 = vpop.permute.xlu0 %3110
  %3112 = vrot.lane.b32.xlu0 %v3105, 64
  %v3113 = vpop.permute.xlu0 %3112
  %v3116 = vmul.f32 %v3038, %v3111
  %v3117 = vmul.f32 %v3053, %v3113
  %3120 = vrot.lane.b32.xlu0 %v3116, 32
  %v3121 = vpop.permute.xlu0 %3120
  %3122 = vrot.lane.b32.xlu0 %v3117, 32
  %v3123 = vpop.permute.xlu0 %3122
  %v3126 = vadd.f32 %v3106, %v3121
  %v3127 = vadd.f32 %v3107, %v3123
  %3130 = vrot.lane.b32.xlu0 %v3126, 96
  %v3131 = vpop.permute.xlu0 %3130
  %3132 = vrot.lane.b32.xlu0 %v3127, 96
  %v3133 = vpop.permute.xlu0 %3132
  %v3136 = vmul.f32 %v2669, %v3131
  %v3137 = vmul.f32 %v2669, %v3133
  %3140 = vrot.lane.b32.xlu0 %v3136, 96
  %v3141 = vpop.permute.xlu0 %3140
  %3142 = vrot.lane.b32.xlu0 %v3137, 96
  %v3143 = vpop.permute.xlu0 %3142
  %v3146 = vadd.f32 %v3010, %v3141
  %v3147 = vadd.f32 %v3011, %v3143
  %v3148 = vxor.u32 %v3146, 2147483648
  %v3149 = vxor.u32 %v3147, 2147483648
  %v3150 = vmul.f32 %v3148, 1.442695
  %v3151 = vpow.pop %v3150
  %v3152 = vmul.f32 %v3149, 1.442695
  %v3153 = vpow.pop %v3152
  %v3154 = vadd.f32 %v3151, 1.0
  %v3155 = vadd.f32 %v3153, 1.0
  %v3156 = vrcp.pop %v3154
  %v3157 = vmul.f32 %v3154, %v3156
  %v3158 = vsub.f32 1.0, %v3157
  %v3159 = vmul.f32 %v3156, %v3158
  %v3160 = vadd.f32 %v3156, %v3159
  %vm3161 = vweird.f32 %v3154
  %vm3162 = vweird.f32 %v3156
  %vm3163 = vmor %vm3161, %vm3162
  %v3164 = vsel %vm3163, %v3156, %v3160
  %v3165 = vand.u32 2147483647, %v3154
  %vm3166 = vcmp.eq.f32.partialorder %v3165, 8.507059e+37
  %v3167 = vand.u32 %v3154, 2147483648
  %v3168 = vor.u32 1.1754944e-38, %v3167
  %v3169 = vsel %vm3166, %v3168, %v3164
  %v3170 = vmul.f32 1.0, %v3169
  %v3171 = vrcp.pop %v3155
  %v3172 = vmul.f32 %v3155, %v3171
  %v3173 = vsub.f32 1.0, %v3172
  %v3174 = vmul.f32 %v3171, %v3173
  %v3175 = vadd.f32 %v3171, %v3174
  %vm3176 = vweird.f32 %v3155
  %vm3177 = vweird.f32 %v3171
  %vm3178 = vmor %vm3176, %vm3177
  %v3179 = vsel %vm3178, %v3171, %v3175
  %v3180 = vand.u32 2147483647, %v3155
  %vm3181 = vcmp.eq.f32.partialorder %v3180, 8.507059e+37
  %v3182 = vand.u32 %v3155, 2147483648
  %v3183 = vor.u32 1.1754944e-38, %v3182
  %v3184 = vsel %vm3181, %v3183, %v3179
  %v3185 = vmul.f32 1.0, %v3184
  %v3186 = vtanh.pop %v3126
  %v3187 = vtanh.pop %v3127
  %3190 = vrot.lane.b32.xlu0 %v3186, 64
  %v3191 = vpop.permute.xlu0 %3190
  %3192 = vrot.lane.b32.xlu0 %v3187, 64
  %v3193 = vpop.permute.xlu0 %3192
  %v3196 = vmul.f32 %v3170, %v3191
  %v3197 = vmul.f32 %v3185, %v3193
  %3200 = vrot.lane.b32.xlu0 %v3196, 32
  %v3201 = vpop.permute.xlu0 %3200
  %3202 = vrot.lane.b32.xlu0 %v3197, 32
  %v3203 = vpop.permute.xlu0 %3202
  %3206 = vst.msk [vmem:[#allocation5 + $0x20] sm:$0xff] %vm227, %v3201
  %3207 = vst.msk [vmem:[#allocation5 + $0x28] sm:$0xff] %vm227, %v3203
  %v3208 = vld [vmem:[#allocation3 + $0x30] sm:$0xff]
  %v3209 = vld [vmem:[#allocation3 + $0x38] sm:$0xff]
  %v3210 = vsel %vm227, %v3201, 0
  %v3212 = vsel %vm227, %v3203, 0
  %3214 = vmatpush.msra.mxu0 0.0
  %3215 = vmatpush.msra.mxu0 0.0
  %3216 = vmatpush.msra.mxu0 0.0
  %3217 = vmatpush.msra.mxu0 0.0
  %3218 = vmatpush.msra.mxu0 0.0
  %3219 = vmatpush.msra.mxu0 0.0
  %3220 = vmatpush.msra.mxu0 0.0
  %3221 = vmatpush.msra.mxu0 0.0
  %3222 = vmatpush.msra.mxu0 0.0
  %3223 = vmatpush.msra.mxu0 0.0
  %3224 = vmatpush.msra.mxu0 0.0
  %3225 = vmatpush.msra.mxu0 0.0
  %3226 = vmatpush.msra.mxu0 %v2522
  %3227 = vmatpush.msra.mxu0 %v2521
  %3228 = vmatpush.msra.mxu0 %v2520
  %3229 = vmatpush.msra.mxu0 %v2519
  %3230 = vmatmul.f32.gmra.mxu0 %v3210
  %v3231 = vpop.f32.mrf.mxu0
  %v3232 = vadd.f32 0.0, %v3231
  %3233 = vmatmul.f32.gmra.mxu0 %v3212
  %v3234 = vpop.f32.mrf.mxu0
  %v3235 = vadd.f32 0.0, %v3234
  %3236 = vdwg.mxu0
  %v3237 = vadd.f32 %v3208, %v3232
  %v3238 = vadd.f32 %v3209, %v3235
  %v3239 = vadd.f32 %v3237, %v2553
  %v3240 = vadd.f32 %v3238, %v2553
  %v3241 = vmul.f32 %v2557, %v3131
  %v3242 = vmul.f32 %v2557, %v3133
  %v3243 = vadd.f32 %v3239, %v3241
  %v3244 = vadd.f32 %v3240, %v3242
  %v3245 = vxor.u32 %v3243, 2147483648
  %v3246 = vxor.u32 %v3244, 2147483648
  %v3247 = vmul.f32 %v3245, 1.442695
  %v3248 = vpow.pop %v3247
  %v3249 = vmul.f32 %v3246, 1.442695
  %v3250 = vpow.pop %v3249
  %v3251 = vadd.f32 %v3248, 1.0
  %v3252 = vadd.f32 %v3250, 1.0
  %v3253 = vrcp.pop %v3251
  %v3254 = vmul.f32 %v3251, %v3253
  %v3255 = vsub.f32 1.0, %v3254
  %v3256 = vmul.f32 %v3253, %v3255
  %v3257 = vadd.f32 %v3253, %v3256
  %vm3258 = vweird.f32 %v3251
  %vm3259 = vweird.f32 %v3253
  %vm3260 = vmor %vm3258, %vm3259
  %v3261 = vsel %vm3260, %v3253, %v3257
  %v3262 = vand.u32 2147483647, %v3251
  %vm3263 = vcmp.eq.f32.partialorder %v3262, 8.507059e+37
  %v3264 = vand.u32 %v3251, 2147483648
  %v3265 = vor.u32 1.1754944e-38, %v3264
  %v3266 = vsel %vm3263, %v3265, %v3261
  %v3267 = vmul.f32 1.0, %v3266
  %v3268 = vrcp.pop %v3252
  %v3269 = vmul.f32 %v3252, %v3268
  %v3270 = vsub.f32 1.0, %v3269
  %v3271 = vmul.f32 %v3268, %v3270
  %v3272 = vadd.f32 %v3268, %v3271
  %vm3273 = vweird.f32 %v3252
  %vm3274 = vweird.f32 %v3268
  %vm3275 = vmor %vm3273, %vm3274
  %v3276 = vsel %vm3275, %v3268, %v3272
  %v3277 = vand.u32 2147483647, %v3252
  %vm3278 = vcmp.eq.f32.partialorder %v3277, 8.507059e+37
  %v3279 = vand.u32 %v3252, 2147483648
  %v3280 = vor.u32 1.1754944e-38, %v3279
  %v3281 = vsel %vm3278, %v3280, %v3276
  %v3282 = vmul.f32 1.0, %v3281
  %v3283 = vmul.f32 %v2599, %v3131
  %v3284 = vmul.f32 %v2599, %v3133
  %3287 = vrot.lane.b32.xlu0 %v3283, 32
  %v3288 = vpop.permute.xlu0 %3287
  %3289 = vrot.lane.b32.xlu0 %v3284, 32
  %v3290 = vpop.permute.xlu0 %3289
  %v3293 = vadd.f32 %v3239, %v3288
  %v3294 = vadd.f32 %v3240, %v3290
  %v3295 = vxor.u32 %v3293, 2147483648
  %v3296 = vxor.u32 %v3294, 2147483648
  %v3297 = vmul.f32 %v3295, 1.442695
  %v3298 = vpow.pop %v3297
  %v3299 = vmul.f32 %v3296, 1.442695
  %v3300 = vpow.pop %v3299
  %v3301 = vadd.f32 %v3298, 1.0
  %v3302 = vadd.f32 %v3300, 1.0
  %v3303 = vrcp.pop %v3301
  %v3304 = vmul.f32 %v3301, %v3303
  %v3305 = vsub.f32 1.0, %v3304
  %v3306 = vmul.f32 %v3303, %v3305
  %v3307 = vadd.f32 %v3303, %v3306
  %vm3308 = vweird.f32 %v3301
  %vm3309 = vweird.f32 %v3303
  %vm3310 = vmor %vm3308, %vm3309
  %v3311 = vsel %vm3310, %v3303, %v3307
  %v3312 = vand.u32 2147483647, %v3301
  %vm3313 = vcmp.eq.f32.partialorder %v3312, 8.507059e+37
  %v3314 = vand.u32 %v3301, 2147483648
  %v3315 = vor.u32 1.1754944e-38, %v3314
  %v3316 = vsel %vm3313, %v3315, %v3311
  %v3317 = vmul.f32 1.0, %v3316
  %v3318 = vrcp.pop %v3302
  %v3319 = vmul.f32 %v3302, %v3318
  %v3320 = vsub.f32 1.0, %v3319
  %v3321 = vmul.f32 %v3318, %v3320
  %v3322 = vadd.f32 %v3318, %v3321
  %vm3323 = vweird.f32 %v3302
  %vm3324 = vweird.f32 %v3318
  %vm3325 = vmor %vm3323, %vm3324
  %v3326 = vsel %vm3325, %v3318, %v3322
  %v3327 = vand.u32 2147483647, %v3302
  %vm3328 = vcmp.eq.f32.partialorder %v3327, 8.507059e+37
  %v3329 = vand.u32 %v3302, 2147483648
  %v3330 = vor.u32 1.1754944e-38, %v3329
  %v3331 = vsel %vm3328, %v3330, %v3326
  %v3332 = vmul.f32 1.0, %v3331
  %v3333 = vtanh.pop %v3239
  %v3334 = vtanh.pop %v3240
  %v3335 = vmul.f32 %v3317, %v3126
  %v3336 = vmul.f32 %v3332, %v3127
  %3339 = vrot.lane.b32.xlu0 %v3333, 64
  %v3340 = vpop.permute.xlu0 %3339
  %3341 = vrot.lane.b32.xlu0 %v3334, 64
  %v3342 = vpop.permute.xlu0 %3341
  %v3345 = vmul.f32 %v3267, %v3340
  %v3346 = vmul.f32 %v3282, %v3342
  %3349 = vrot.lane.b32.xlu0 %v3345, 32
  %v3350 = vpop.permute.xlu0 %3349
  %3351 = vrot.lane.b32.xlu0 %v3346, 32
  %v3352 = vpop.permute.xlu0 %3351
  %v3355 = vadd.f32 %v3335, %v3350
  %v3356 = vadd.f32 %v3336, %v3352
  %3359 = vrot.lane.b32.xlu0 %v3355, 96
  %v3360 = vpop.permute.xlu0 %3359
  %3361 = vrot.lane.b32.xlu0 %v3356, 96
  %v3362 = vpop.permute.xlu0 %3361
  %v3365 = vmul.f32 %v2669, %v3360
  %v3366 = vmul.f32 %v2669, %v3362
  %3369 = vrot.lane.b32.xlu0 %v3365, 96
  %v3370 = vpop.permute.xlu0 %3369
  %3371 = vrot.lane.b32.xlu0 %v3366, 96
  %v3372 = vpop.permute.xlu0 %3371
  %v3375 = vadd.f32 %v3239, %v3370
  %v3376 = vadd.f32 %v3240, %v3372
  %v3377 = vxor.u32 %v3375, 2147483648
  %v3378 = vxor.u32 %v3376, 2147483648
  %v3379 = vmul.f32 %v3377, 1.442695
  %v3380 = vpow.pop %v3379
  %v3381 = vmul.f32 %v3378, 1.442695
  %v3382 = vpow.pop %v3381
  %v3383 = vadd.f32 %v3380, 1.0
  %v3384 = vadd.f32 %v3382, 1.0
  %v3385 = vrcp.pop %v3383
  %v3386 = vmul.f32 %v3383, %v3385
  %v3387 = vsub.f32 1.0, %v3386
  %v3388 = vmul.f32 %v3385, %v3387
  %v3389 = vadd.f32 %v3385, %v3388
  %vm3390 = vweird.f32 %v3383
  %vm3391 = vweird.f32 %v3385
  %vm3392 = vmor %vm3390, %vm3391
  %v3393 = vsel %vm3392, %v3385, %v3389
  %v3394 = vand.u32 2147483647, %v3383
  %vm3395 = vcmp.eq.f32.partialorder %v3394, 8.507059e+37
  %v3396 = vand.u32 %v3383, 2147483648
  %v3397 = vor.u32 1.1754944e-38, %v3396
  %v3398 = vsel %vm3395, %v3397, %v3393
  %v3399 = vmul.f32 1.0, %v3398
  %v3400 = vrcp.pop %v3384
  %v3401 = vmul.f32 %v3384, %v3400
  %v3402 = vsub.f32 1.0, %v3401
  %v3403 = vmul.f32 %v3400, %v3402
  %v3404 = vadd.f32 %v3400, %v3403
  %vm3405 = vweird.f32 %v3384
  %vm3406 = vweird.f32 %v3400
  %vm3407 = vmor %vm3405, %vm3406
  %v3408 = vsel %vm3407, %v3400, %v3404
  %v3409 = vand.u32 2147483647, %v3384
  %vm3410 = vcmp.eq.f32.partialorder %v3409, 8.507059e+37
  %v3411 = vand.u32 %v3384, 2147483648
  %v3412 = vor.u32 1.1754944e-38, %v3411
  %v3413 = vsel %vm3410, %v3412, %v3408
  %v3414 = vmul.f32 1.0, %v3413
  %v3415 = vtanh.pop %v3355
  %v3416 = vtanh.pop %v3356
  %3419 = vrot.lane.b32.xlu0 %v3415, 64
  %v3420 = vpop.permute.xlu0 %3419
  %3421 = vrot.lane.b32.xlu0 %v3416, 64
  %v3422 = vpop.permute.xlu0 %3421
  %v3425 = vmul.f32 %v3399, %v3420
  %v3426 = vmul.f32 %v3414, %v3422
  %3429 = vrot.lane.b32.xlu0 %v3425, 32
  %v3430 = vpop.permute.xlu0 %3429
  %3431 = vrot.lane.b32.xlu0 %v3426, 32
  %v3432 = vpop.permute.xlu0 %3431
  %3435 = vst.msk [vmem:[#allocation5 + $0x30] sm:$0xff] %vm227, %v3430
  %3436 = vst.msk [vmem:[#allocation5 + $0x38] sm:$0xff] %vm227, %v3432
  %v3437 = vld [vmem:[#allocation3 + $0x40] sm:$0xff]
  %v3438 = vld [vmem:[#allocation3 + $0x48] sm:$0xff]
  %v3439 = vsel %vm227, %v3430, 0
  %v3441 = vsel %vm227, %v3432, 0
  %3443 = vmatpush.msra.mxu0 0.0
  %3444 = vmatpush.msra.mxu0 0.0
  %3445 = vmatpush.msra.mxu0 0.0
  %3446 = vmatpush.msra.mxu0 0.0
  %3447 = vmatpush.msra.mxu0 0.0
  %3448 = vmatpush.msra.mxu0 0.0
  %3449 = vmatpush.msra.mxu0 0.0
  %3450 = vmatpush.msra.mxu0 0.0
  %3451 = vmatpush.msra.mxu0 0.0
  %3452 = vmatpush.msra.mxu0 0.0
  %3453 = vmatpush.msra.mxu0 0.0
  %3454 = vmatpush.msra.mxu0 0.0
  %3455 = vmatpush.msra.mxu0 %v2522
  %3456 = vmatpush.msra.mxu0 %v2521
  %3457 = vmatpush.msra.mxu0 %v2520
  %3458 = vmatpush.msra.mxu0 %v2519
  %3459 = vmatmul.f32.gmra.mxu0 %v3439
  %v3460 = vpop.f32.mrf.mxu0
  %v3461 = vadd.f32 0.0, %v3460
  %3462 = vmatmul.f32.gmra.mxu0 %v3441
  %v3463 = vpop.f32.mrf.mxu0
  %v3464 = vadd.f32 0.0, %v3463
  %3465 = vdwg.mxu0
  %v3466 = vadd.f32 %v3437, %v3461
  %v3467 = vadd.f32 %v3438, %v3464
  %v3468 = vadd.f32 %v3466, %v2553
  %v3469 = vadd.f32 %v3467, %v2553
  %v3470 = vmul.f32 %v2557, %v3360
  %v3471 = vmul.f32 %v2557, %v3362
  %v3472 = vadd.f32 %v3468, %v3470
  %v3473 = vadd.f32 %v3469, %v3471
  %v3474 = vxor.u32 %v3472, 2147483648
  %v3475 = vxor.u32 %v3473, 2147483648
  %v3476 = vmul.f32 %v3474, 1.442695
  %v3477 = vpow.pop %v3476
  %v3478 = vmul.f32 %v3475, 1.442695
  %v3479 = vpow.pop %v3478
  %v3480 = vadd.f32 %v3477, 1.0
  %v3481 = vadd.f32 %v3479, 1.0
  %v3482 = vrcp.pop %v3480
  %v3483 = vmul.f32 %v3480, %v3482
  %v3484 = vsub.f32 1.0, %v3483
  %v3485 = vmul.f32 %v3482, %v3484
  %v3486 = vadd.f32 %v3482, %v3485
  %vm3487 = vweird.f32 %v3480
  %vm3488 = vweird.f32 %v3482
  %vm3489 = vmor %vm3487, %vm3488
  %v3490 = vsel %vm3489, %v3482, %v3486
  %v3491 = vand.u32 2147483647, %v3480
  %vm3492 = vcmp.eq.f32.partialorder %v3491, 8.507059e+37
  %v3493 = vand.u32 %v3480, 2147483648
  %v3494 = vor.u32 1.1754944e-38, %v3493
  %v3495 = vsel %vm3492, %v3494, %v3490
  %v3496 = vmul.f32 1.0, %v3495
  %v3497 = vrcp.pop %v3481
  %v3498 = vmul.f32 %v3481, %v3497
  %v3499 = vsub.f32 1.0, %v3498
  %v3500 = vmul.f32 %v3497, %v3499
  %v3501 = vadd.f32 %v3497, %v3500
  %vm3502 = vweird.f32 %v3481
  %vm3503 = vweird.f32 %v3497
  %vm3504 = vmor %vm3502, %vm3503
  %v3505 = vsel %vm3504, %v3497, %v3501
  %v3506 = vand.u32 2147483647, %v3481
  %vm3507 = vcmp.eq.f32.partialorder %v3506, 8.507059e+37
  %v3508 = vand.u32 %v3481, 2147483648
  %v3509 = vor.u32 1.1754944e-38, %v3508
  %v3510 = vsel %vm3507, %v3509, %v3505
  %v3511 = vmul.f32 1.0, %v3510
  %v3512 = vmul.f32 %v2599, %v3360
  %v3513 = vmul.f32 %v2599, %v3362
  %3516 = vrot.lane.b32.xlu0 %v3512, 32
  %v3517 = vpop.permute.xlu0 %3516
  %3518 = vrot.lane.b32.xlu0 %v3513, 32
  %v3519 = vpop.permute.xlu0 %3518
  %v3522 = vadd.f32 %v3468, %v3517
  %v3523 = vadd.f32 %v3469, %v3519
  %v3524 = vxor.u32 %v3522, 2147483648
  %v3525 = vxor.u32 %v3523, 2147483648
  %v3526 = vmul.f32 %v3524, 1.442695
  %v3527 = vpow.pop %v3526
  %v3528 = vmul.f32 %v3525, 1.442695
  %v3529 = vpow.pop %v3528
  %v3530 = vadd.f32 %v3527, 1.0
  %v3531 = vadd.f32 %v3529, 1.0
  %v3532 = vrcp.pop %v3530
  %v3533 = vmul.f32 %v3530, %v3532
  %v3534 = vsub.f32 1.0, %v3533
  %v3535 = vmul.f32 %v3532, %v3534
  %v3536 = vadd.f32 %v3532, %v3535
  %vm3537 = vweird.f32 %v3530
  %vm3538 = vweird.f32 %v3532
  %vm3539 = vmor %vm3537, %vm3538
  %v3540 = vsel %vm3539, %v3532, %v3536
  %v3541 = vand.u32 2147483647, %v3530
  %vm3542 = vcmp.eq.f32.partialorder %v3541, 8.507059e+37
  %v3543 = vand.u32 %v3530, 2147483648
  %v3544 = vor.u32 1.1754944e-38, %v3543
  %v3545 = vsel %vm3542, %v3544, %v3540
  %v3546 = vmul.f32 1.0, %v3545
  %v3547 = vrcp.pop %v3531
  %v3548 = vmul.f32 %v3531, %v3547
  %v3549 = vsub.f32 1.0, %v3548
  %v3550 = vmul.f32 %v3547, %v3549
  %v3551 = vadd.f32 %v3547, %v3550
  %vm3552 = vweird.f32 %v3531
  %vm3553 = vweird.f32 %v3547
  %vm3554 = vmor %vm3552, %vm3553
  %v3555 = vsel %vm3554, %v3547, %v3551
  %v3556 = vand.u32 2147483647, %v3531
  %vm3557 = vcmp.eq.f32.partialorder %v3556, 8.507059e+37
  %v3558 = vand.u32 %v3531, 2147483648
  %v3559 = vor.u32 1.1754944e-38, %v3558
  %v3560 = vsel %vm3557, %v3559, %v3555
  %v3561 = vmul.f32 1.0, %v3560
  %v3562 = vtanh.pop %v3468
  %v3563 = vtanh.pop %v3469
  %v3564 = vmul.f32 %v3546, %v3355
  %v3565 = vmul.f32 %v3561, %v3356
  %3568 = vrot.lane.b32.xlu0 %v3562, 64
  %v3569 = vpop.permute.xlu0 %3568
  %3570 = vrot.lane.b32.xlu0 %v3563, 64
  %v3571 = vpop.permute.xlu0 %3570
  %v3574 = vmul.f32 %v3496, %v3569
  %v3575 = vmul.f32 %v3511, %v3571
  %3578 = vrot.lane.b32.xlu0 %v3574, 32
  %v3579 = vpop.permute.xlu0 %3578
  %3580 = vrot.lane.b32.xlu0 %v3575, 32
  %v3581 = vpop.permute.xlu0 %3580
  %v3584 = vadd.f32 %v3564, %v3579
  %v3585 = vadd.f32 %v3565, %v3581
  %3588 = vrot.lane.b32.xlu0 %v3584, 96
  %v3589 = vpop.permute.xlu0 %3588
  %3590 = vrot.lane.b32.xlu0 %v3585, 96
  %v3591 = vpop.permute.xlu0 %3590
  %v3594 = vmul.f32 %v2669, %v3589
  %v3595 = vmul.f32 %v2669, %v3591
  %3598 = vrot.lane.b32.xlu0 %v3594, 96
  %v3599 = vpop.permute.xlu0 %3598
  %3600 = vrot.lane.b32.xlu0 %v3595, 96
  %v3601 = vpop.permute.xlu0 %3600
  %v3604 = vadd.f32 %v3468, %v3599
  %v3605 = vadd.f32 %v3469, %v3601
  %v3606 = vxor.u32 %v3604, 2147483648
  %v3607 = vxor.u32 %v3605, 2147483648
  %v3608 = vmul.f32 %v3606, 1.442695
  %v3609 = vpow.pop %v3608
  %v3610 = vmul.f32 %v3607, 1.442695
  %v3611 = vpow.pop %v3610
  %v3612 = vadd.f32 %v3609, 1.0
  %v3613 = vadd.f32 %v3611, 1.0
  %v3614 = vrcp.pop %v3612
  %v3615 = vmul.f32 %v3612, %v3614
  %v3616 = vsub.f32 1.0, %v3615
  %v3617 = vmul.f32 %v3614, %v3616
  %v3618 = vadd.f32 %v3614, %v3617
  %vm3619 = vweird.f32 %v3612
  %vm3620 = vweird.f32 %v3614
  %vm3621 = vmor %vm3619, %vm3620
  %v3622 = vsel %vm3621, %v3614, %v3618
  %v3623 = vand.u32 2147483647, %v3612
  %vm3624 = vcmp.eq.f32.partialorder %v3623, 8.507059e+37
  %v3625 = vand.u32 %v3612, 2147483648
  %v3626 = vor.u32 1.1754944e-38, %v3625
  %v3627 = vsel %vm3624, %v3626, %v3622
  %v3628 = vmul.f32 1.0, %v3627
  %v3629 = vrcp.pop %v3613
  %v3630 = vmul.f32 %v3613, %v3629
  %v3631 = vsub.f32 1.0, %v3630
  %v3632 = vmul.f32 %v3629, %v3631
  %v3633 = vadd.f32 %v3629, %v3632
  %vm3634 = vweird.f32 %v3613
  %vm3635 = vweird.f32 %v3629
  %vm3636 = vmor %vm3634, %vm3635
  %v3637 = vsel %vm3636, %v3629, %v3633
  %v3638 = vand.u32 2147483647, %v3613
  %vm3639 = vcmp.eq.f32.partialorder %v3638, 8.507059e+37
  %v3640 = vand.u32 %v3613, 2147483648
  %v3641 = vor.u32 1.1754944e-38, %v3640
  %v3642 = vsel %vm3639, %v3641, %v3637
  %v3643 = vmul.f32 1.0, %v3642
  %v3644 = vtanh.pop %v3584
  %v3645 = vtanh.pop %v3585
  %3648 = vrot.lane.b32.xlu0 %v3644, 64
  %v3649 = vpop.permute.xlu0 %3648
  %3650 = vrot.lane.b32.xlu0 %v3645, 64
  %v3651 = vpop.permute.xlu0 %3650
  %v3654 = vmul.f32 %v3628, %v3649
  %v3655 = vmul.f32 %v3643, %v3651
  %3658 = vrot.lane.b32.xlu0 %v3654, 32
  %v3659 = vpop.permute.xlu0 %3658
  %3660 = vrot.lane.b32.xlu0 %v3655, 32
  %v3661 = vpop.permute.xlu0 %3660
  %3664 = vst.msk [vmem:[#allocation5 + $0x40] sm:$0xff] %vm227, %v3659
  %3665 = vst.msk [vmem:[#allocation5 + $0x48] sm:$0xff] %vm227, %v3661
  %v3666 = vld [vmem:[#allocation3 + $0x50] sm:$0xff]
  %v3667 = vld [vmem:[#allocation3 + $0x58] sm:$0xff]
  %v3668 = vsel %vm227, %v3659, 0
  %v3670 = vsel %vm227, %v3661, 0
  %3672 = vmatpush.msra.mxu0 0.0
  %3673 = vmatpush.msra.mxu0 0.0
  %3674 = vmatpush.msra.mxu0 0.0
  %3675 = vmatpush.msra.mxu0 0.0
  %3676 = vmatpush.msra.mxu0 0.0
  %3677 = vmatpush.msra.mxu0 0.0
  %3678 = vmatpush.msra.mxu0 0.0
  %3679 = vmatpush.msra.mxu0 0.0
  %3680 = vmatpush.msra.mxu0 0.0
  %3681 = vmatpush.msra.mxu0 0.0
  %3682 = vmatpush.msra.mxu0 0.0
  %3683 = vmatpush.msra.mxu0 0.0
  %3684 = vmatpush.msra.mxu0 %v2522
  %3685 = vmatpush.msra.mxu0 %v2521
  %3686 = vmatpush.msra.mxu0 %v2520
  %3687 = vmatpush.msra.mxu0 %v2519
  %3688 = vmatmul.f32.gmra.mxu0 %v3668
  %v3689 = vpop.f32.mrf.mxu0
  %v3690 = vadd.f32 0.0, %v3689
  %3691 = vmatmul.f32.gmra.mxu0 %v3670
  %v3692 = vpop.f32.mrf.mxu0
  %v3693 = vadd.f32 0.0, %v3692
  %3694 = vdwg.mxu0
  %v3695 = vadd.f32 %v3666, %v3690
  %v3696 = vadd.f32 %v3667, %v3693
  %v3697 = vadd.f32 %v3695, %v2553
  %v3698 = vadd.f32 %v3696, %v2553
  %v3699 = vmul.f32 %v2557, %v3589
  %v3700 = vmul.f32 %v2557, %v3591
  %v3701 = vadd.f32 %v3697, %v3699
  %v3702 = vadd.f32 %v3698, %v3700
  %v3703 = vxor.u32 %v3701, 2147483648
  %v3704 = vxor.u32 %v3702, 2147483648
  %v3705 = vmul.f32 %v3703, 1.442695
  %v3706 = vpow.pop %v3705
  %v3707 = vmul.f32 %v3704, 1.442695
  %v3708 = vpow.pop %v3707
  %v3709 = vadd.f32 %v3706, 1.0
  %v3710 = vadd.f32 %v3708, 1.0
  %v3711 = vrcp.pop %v3709
  %v3712 = vmul.f32 %v3709, %v3711
  %v3713 = vsub.f32 1.0, %v3712
  %v3714 = vmul.f32 %v3711, %v3713
  %v3715 = vadd.f32 %v3711, %v3714
  %vm3716 = vweird.f32 %v3709
  %vm3717 = vweird.f32 %v3711
  %vm3718 = vmor %vm3716, %vm3717
  %v3719 = vsel %vm3718, %v3711, %v3715
  %v3720 = vand.u32 2147483647, %v3709
  %vm3721 = vcmp.eq.f32.partialorder %v3720, 8.507059e+37
  %v3722 = vand.u32 %v3709, 2147483648
  %v3723 = vor.u32 1.1754944e-38, %v3722
  %v3724 = vsel %vm3721, %v3723, %v3719
  %v3725 = vmul.f32 1.0, %v3724
  %v3726 = vrcp.pop %v3710
  %v3727 = vmul.f32 %v3710, %v3726
  %v3728 = vsub.f32 1.0, %v3727
  %v3729 = vmul.f32 %v3726, %v3728
  %v3730 = vadd.f32 %v3726, %v3729
  %vm3731 = vweird.f32 %v3710
  %vm3732 = vweird.f32 %v3726
  %vm3733 = vmor %vm3731, %vm3732
  %v3734 = vsel %vm3733, %v3726, %v3730
  %v3735 = vand.u32 2147483647, %v3710
  %vm3736 = vcmp.eq.f32.partialorder %v3735, 8.507059e+37
  %v3737 = vand.u32 %v3710, 2147483648
  %v3738 = vor.u32 1.1754944e-38, %v3737
  %v3739 = vsel %vm3736, %v3738, %v3734
  %v3740 = vmul.f32 1.0, %v3739
  %v3741 = vmul.f32 %v2599, %v3589
  %v3742 = vmul.f32 %v2599, %v3591
  %3745 = vrot.lane.b32.xlu0 %v3741, 32
  %v3746 = vpop.permute.xlu0 %3745
  %3747 = vrot.lane.b32.xlu0 %v3742, 32
  %v3748 = vpop.permute.xlu0 %3747
  %v3751 = vadd.f32 %v3697, %v3746
  %v3752 = vadd.f32 %v3698, %v3748
  %v3753 = vxor.u32 %v3751, 2147483648
  %v3754 = vxor.u32 %v3752, 2147483648
  %v3755 = vmul.f32 %v3753, 1.442695
  %v3756 = vpow.pop %v3755
  %v3757 = vmul.f32 %v3754, 1.442695
  %v3758 = vpow.pop %v3757
  %v3759 = vadd.f32 %v3756, 1.0
  %v3760 = vadd.f32 %v3758, 1.0
  %v3761 = vrcp.pop %v3759
  %v3762 = vmul.f32 %v3759, %v3761
  %v3763 = vsub.f32 1.0, %v3762
  %v3764 = vmul.f32 %v3761, %v3763
  %v3765 = vadd.f32 %v3761, %v3764
  %vm3766 = vweird.f32 %v3759
  %vm3767 = vweird.f32 %v3761
  %vm3768 = vmor %vm3766, %vm3767
  %v3769 = vsel %vm3768, %v3761, %v3765
  %v3770 = vand.u32 2147483647, %v3759
  %vm3771 = vcmp.eq.f32.partialorder %v3770, 8.507059e+37
  %v3772 = vand.u32 %v3759, 2147483648
  %v3773 = vor.u32 1.1754944e-38, %v3772
  %v3774 = vsel %vm3771, %v3773, %v3769
  %v3775 = vmul.f32 1.0, %v3774
  %v3776 = vrcp.pop %v3760
  %v3777 = vmul.f32 %v3760, %v3776
  %v3778 = vsub.f32 1.0, %v3777
  %v3779 = vmul.f32 %v3776, %v3778
  %v3780 = vadd.f32 %v3776, %v3779
  %vm3781 = vweird.f32 %v3760
  %vm3782 = vweird.f32 %v3776
  %vm3783 = vmor %vm3781, %vm3782
  %v3784 = vsel %vm3783, %v3776, %v3780
  %v3785 = vand.u32 2147483647, %v3760
  %vm3786 = vcmp.eq.f32.partialorder %v3785, 8.507059e+37
  %v3787 = vand.u32 %v3760, 2147483648
  %v3788 = vor.u32 1.1754944e-38, %v3787
  %v3789 = vsel %vm3786, %v3788, %v3784
  %v3790 = vmul.f32 1.0, %v3789
  %v3791 = vtanh.pop %v3697
  %v3792 = vtanh.pop %v3698
  %v3793 = vmul.f32 %v3775, %v3584
  %v3794 = vmul.f32 %v3790, %v3585
  %3797 = vrot.lane.b32.xlu0 %v3791, 64
  %v3798 = vpop.permute.xlu0 %3797
  %3799 = vrot.lane.b32.xlu0 %v3792, 64
  %v3800 = vpop.permute.xlu0 %3799
  %v3803 = vmul.f32 %v3725, %v3798
  %v3804 = vmul.f32 %v3740, %v3800
  %3807 = vrot.lane.b32.xlu0 %v3803, 32
  %v3808 = vpop.permute.xlu0 %3807
  %3809 = vrot.lane.b32.xlu0 %v3804, 32
  %v3810 = vpop.permute.xlu0 %3809
  %v3813 = vadd.f32 %v3793, %v3808
  %v3814 = vadd.f32 %v3794, %v3810
  %3817 = vrot.lane.b32.xlu0 %v3813, 96
  %v3818 = vpop.permute.xlu0 %3817
  %3819 = vrot.lane.b32.xlu0 %v3814, 96
  %v3820 = vpop.permute.xlu0 %3819
  %v3823 = vmul.f32 %v2669, %v3818
  %v3824 = vmul.f32 %v2669, %v3820
  %3827 = vrot.lane.b32.xlu0 %v3823, 96
  %v3828 = vpop.permute.xlu0 %3827
  %3829 = vrot.lane.b32.xlu0 %v3824, 96
  %v3830 = vpop.permute.xlu0 %3829
  %v3833 = vadd.f32 %v3697, %v3828
  %v3834 = vadd.f32 %v3698, %v3830
  %v3835 = vxor.u32 %v3833, 2147483648
  %v3836 = vxor.u32 %v3834, 2147483648
  %v3837 = vmul.f32 %v3835, 1.442695
  %v3838 = vpow.pop %v3837
  %v3839 = vmul.f32 %v3836, 1.442695
  %v3840 = vpow.pop %v3839
  %v3841 = vadd.f32 %v3838, 1.0
  %v3842 = vadd.f32 %v3840, 1.0
  %v3843 = vrcp.pop %v3841
  %v3844 = vmul.f32 %v3841, %v3843
  %v3845 = vsub.f32 1.0, %v3844
  %v3846 = vmul.f32 %v3843, %v3845
  %v3847 = vadd.f32 %v3843, %v3846
  %vm3848 = vweird.f32 %v3841
  %vm3849 = vweird.f32 %v3843
  %vm3850 = vmor %vm3848, %vm3849
  %v3851 = vsel %vm3850, %v3843, %v3847
  %v3852 = vand.u32 2147483647, %v3841
  %vm3853 = vcmp.eq.f32.partialorder %v3852, 8.507059e+37
  %v3854 = vand.u32 %v3841, 2147483648
  %v3855 = vor.u32 1.1754944e-38, %v3854
  %v3856 = vsel %vm3853, %v3855, %v3851
  %v3857 = vmul.f32 1.0, %v3856
  %v3858 = vrcp.pop %v3842
  %v3859 = vmul.f32 %v3842, %v3858
  %v3860 = vsub.f32 1.0, %v3859
  %v3861 = vmul.f32 %v3858, %v3860
  %v3862 = vadd.f32 %v3858, %v3861
  %vm3863 = vweird.f32 %v3842
  %vm3864 = vweird.f32 %v3858
  %vm3865 = vmor %vm3863, %vm3864
  %v3866 = vsel %vm3865, %v3858, %v3862
  %v3867 = vand.u32 2147483647, %v3842
  %vm3868 = vcmp.eq.f32.partialorder %v3867, 8.507059e+37
  %v3869 = vand.u32 %v3842, 2147483648
  %v3870 = vor.u32 1.1754944e-38, %v3869
  %v3871 = vsel %vm3868, %v3870, %v3866
  %v3872 = vmul.f32 1.0, %v3871
  %v3873 = vtanh.pop %v3813
  %v3874 = vtanh.pop %v3814
  %3877 = vrot.lane.b32.xlu0 %v3873, 64
  %v3878 = vpop.permute.xlu0 %3877
  %3879 = vrot.lane.b32.xlu0 %v3874, 64
  %v3880 = vpop.permute.xlu0 %3879
  %v3883 = vmul.f32 %v3857, %v3878
  %v3884 = vmul.f32 %v3872, %v3880
  %3887 = vrot.lane.b32.xlu0 %v3883, 32
  %v3888 = vpop.permute.xlu0 %3887
  %3889 = vrot.lane.b32.xlu0 %v3884, 32
  %v3890 = vpop.permute.xlu0 %3889
  %3893 = vst.msk [vmem:[#allocation5 + $0x50] sm:$0xff] %vm227, %v3888
  %3894 = vst.msk [vmem:[#allocation5 + $0x58] sm:$0xff] %vm227, %v3890
  %v3895 = vld [vmem:[#allocation3 + $0x60] sm:$0xff]
  %v3896 = vld [vmem:[#allocation3 + $0x68] sm:$0xff]
  %v3897 = vsel %vm227, %v3888, 0
  %v3899 = vsel %vm227, %v3890, 0
  %3901 = vmatpush.msra.mxu0 0.0
  %3902 = vmatpush.msra.mxu0 0.0
  %3903 = vmatpush.msra.mxu0 0.0
  %3904 = vmatpush.msra.mxu0 0.0
  %3905 = vmatpush.msra.mxu0 0.0
  %3906 = vmatpush.msra.mxu0 0.0
  %3907 = vmatpush.msra.mxu0 0.0
  %3908 = vmatpush.msra.mxu0 0.0
  %3909 = vmatpush.msra.mxu0 0.0
  %3910 = vmatpush.msra.mxu0 0.0
  %3911 = vmatpush.msra.mxu0 0.0
  %3912 = vmatpush.msra.mxu0 0.0
  %3913 = vmatpush.msra.mxu0 %v2522
  %3914 = vmatpush.msra.mxu0 %v2521
  %3915 = vmatpush.msra.mxu0 %v2520
  %3916 = vmatpush.msra.mxu0 %v2519
  %3917 = vmatmul.f32.gmra.mxu0 %v3897
  %v3918 = vpop.f32.mrf.mxu0
  %v3919 = vadd.f32 0.0, %v3918
  %3920 = vmatmul.f32.gmra.mxu0 %v3899
  %v3921 = vpop.f32.mrf.mxu0
  %v3922 = vadd.f32 0.0, %v3921
  %3923 = vdwg.mxu0
  %v3924 = vadd.f32 %v3895, %v3919
  %v3925 = vadd.f32 %v3896, %v3922
  %v3926 = vadd.f32 %v3924, %v2553
  %v3927 = vadd.f32 %v3925, %v2553
  %v3928 = vmul.f32 %v2557, %v3818
  %v3929 = vmul.f32 %v2557, %v3820
  %v3930 = vadd.f32 %v3926, %v3928
  %v3931 = vadd.f32 %v3927, %v3929
  %v3932 = vxor.u32 %v3930, 2147483648
  %v3933 = vxor.u32 %v3931, 2147483648
  %v3934 = vmul.f32 %v3932, 1.442695
  %v3935 = vpow.pop %v3934
  %v3936 = vmul.f32 %v3933, 1.442695
  %v3937 = vpow.pop %v3936
  %v3938 = vadd.f32 %v3935, 1.0
  %v3939 = vadd.f32 %v3937, 1.0
  %v3940 = vrcp.pop %v3938
  %v3941 = vmul.f32 %v3938, %v3940
  %v3942 = vsub.f32 1.0, %v3941
  %v3943 = vmul.f32 %v3940, %v3942
  %v3944 = vadd.f32 %v3940, %v3943
  %vm3945 = vweird.f32 %v3938
  %vm3946 = vweird.f32 %v3940
  %vm3947 = vmor %vm3945, %vm3946
  %v3948 = vsel %vm3947, %v3940, %v3944
  %v3949 = vand.u32 2147483647, %v3938
  %vm3950 = vcmp.eq.f32.partialorder %v3949, 8.507059e+37
  %v3951 = vand.u32 %v3938, 2147483648
  %v3952 = vor.u32 1.1754944e-38, %v3951
  %v3953 = vsel %vm3950, %v3952, %v3948
  %v3954 = vmul.f32 1.0, %v3953
  %v3955 = vrcp.pop %v3939
  %v3956 = vmul.f32 %v3939, %v3955
  %v3957 = vsub.f32 1.0, %v3956
  %v3958 = vmul.f32 %v3955, %v3957
  %v3959 = vadd.f32 %v3955, %v3958
  %vm3960 = vweird.f32 %v3939
  %vm3961 = vweird.f32 %v3955
  %vm3962 = vmor %vm3960, %vm3961
  %v3963 = vsel %vm3962, %v3955, %v3959
  %v3964 = vand.u32 2147483647, %v3939
  %vm3965 = vcmp.eq.f32.partialorder %v3964, 8.507059e+37
  %v3966 = vand.u32 %v3939, 2147483648
  %v3967 = vor.u32 1.1754944e-38, %v3966
  %v3968 = vsel %vm3965, %v3967, %v3963
  %v3969 = vmul.f32 1.0, %v3968
  %v3970 = vmul.f32 %v2599, %v3818
  %v3971 = vmul.f32 %v2599, %v3820
  %3974 = vrot.lane.b32.xlu0 %v3970, 32
  %v3975 = vpop.permute.xlu0 %3974
  %3976 = vrot.lane.b32.xlu0 %v3971, 32
  %v3977 = vpop.permute.xlu0 %3976
  %v3980 = vadd.f32 %v3926, %v3975
  %v3981 = vadd.f32 %v3927, %v3977
  %v3982 = vxor.u32 %v3980, 2147483648
  %v3983 = vxor.u32 %v3981, 2147483648
  %v3984 = vmul.f32 %v3982, 1.442695
  %v3985 = vpow.pop %v3984
  %v3986 = vmul.f32 %v3983, 1.442695
  %v3987 = vpow.pop %v3986
  %v3988 = vadd.f32 %v3985, 1.0
  %v3989 = vadd.f32 %v3987, 1.0
  %v3990 = vrcp.pop %v3988
  %v3991 = vmul.f32 %v3988, %v3990
  %v3992 = vsub.f32 1.0, %v3991
  %v3993 = vmul.f32 %v3990, %v3992
  %v3994 = vadd.f32 %v3990, %v3993
  %vm3995 = vweird.f32 %v3988
  %vm3996 = vweird.f32 %v3990
  %vm3997 = vmor %vm3995, %vm3996
  %v3998 = vsel %vm3997, %v3990, %v3994
  %v3999 = vand.u32 2147483647, %v3988
  %vm4000 = vcmp.eq.f32.partialorder %v3999, 8.507059e+37
  %v4001 = vand.u32 %v3988, 2147483648
  %v4002 = vor.u32 1.1754944e-38, %v4001
  %v4003 = vsel %vm4000, %v4002, %v3998
  %v4004 = vmul.f32 1.0, %v4003
  %v4005 = vrcp.pop %v3989
  %v4006 = vmul.f32 %v3989, %v4005
  %v4007 = vsub.f32 1.0, %v4006
  %v4008 = vmul.f32 %v4005, %v4007
  %v4009 = vadd.f32 %v4005, %v4008
  %vm4010 = vweird.f32 %v3989
  %vm4011 = vweird.f32 %v4005
  %vm4012 = vmor %vm4010, %vm4011
  %v4013 = vsel %vm4012, %v4005, %v4009
  %v4014 = vand.u32 2147483647, %v3989
  %vm4015 = vcmp.eq.f32.partialorder %v4014, 8.507059e+37
  %v4016 = vand.u32 %v3989, 2147483648
  %v4017 = vor.u32 1.1754944e-38, %v4016
  %v4018 = vsel %vm4015, %v4017, %v4013
  %v4019 = vmul.f32 1.0, %v4018
  %v4020 = vtanh.pop %v3926
  %v4021 = vtanh.pop %v3927
  %v4022 = vmul.f32 %v4004, %v3813
  %v4023 = vmul.f32 %v4019, %v3814
  %4026 = vrot.lane.b32.xlu0 %v4020, 64
  %v4027 = vpop.permute.xlu0 %4026
  %4028 = vrot.lane.b32.xlu0 %v4021, 64
  %v4029 = vpop.permute.xlu0 %4028
  %v4032 = vmul.f32 %v3954, %v4027
  %v4033 = vmul.f32 %v3969, %v4029
  %4036 = vrot.lane.b32.xlu0 %v4032, 32
  %v4037 = vpop.permute.xlu0 %4036
  %4038 = vrot.lane.b32.xlu0 %v4033, 32
  %v4039 = vpop.permute.xlu0 %4038
  %v4042 = vadd.f32 %v4022, %v4037
  %v4043 = vadd.f32 %v4023, %v4039
  %4046 = vrot.lane.b32.xlu0 %v4042, 96
  %v4047 = vpop.permute.xlu0 %4046
  %4048 = vrot.lane.b32.xlu0 %v4043, 96
  %v4049 = vpop.permute.xlu0 %4048
  %v4052 = vmul.f32 %v2669, %v4047
  %v4053 = vmul.f32 %v2669, %v4049
  %4056 = vrot.lane.b32.xlu0 %v4052, 96
  %v4057 = vpop.permute.xlu0 %4056
  %4058 = vrot.lane.b32.xlu0 %v4053, 96
  %v4059 = vpop.permute.xlu0 %4058
  %v4062 = vadd.f32 %v3926, %v4057
  %v4063 = vadd.f32 %v3927, %v4059
  %v4064 = vxor.u32 %v4062, 2147483648
  %v4065 = vxor.u32 %v4063, 2147483648
  %v4066 = vmul.f32 %v4064, 1.442695
  %v4067 = vpow.pop %v4066
  %v4068 = vmul.f32 %v4065, 1.442695
  %v4069 = vpow.pop %v4068
  %v4070 = vadd.f32 %v4067, 1.0
  %v4071 = vadd.f32 %v4069, 1.0
  %v4072 = vrcp.pop %v4070
  %v4073 = vmul.f32 %v4070, %v4072
  %v4074 = vsub.f32 1.0, %v4073
  %v4075 = vmul.f32 %v4072, %v4074
  %v4076 = vadd.f32 %v4072, %v4075
  %vm4077 = vweird.f32 %v4070
  %vm4078 = vweird.f32 %v4072
  %vm4079 = vmor %vm4077, %vm4078
  %v4080 = vsel %vm4079, %v4072, %v4076
  %v4081 = vand.u32 2147483647, %v4070
  %vm4082 = vcmp.eq.f32.partialorder %v4081, 8.507059e+37
  %v4083 = vand.u32 %v4070, 2147483648
  %v4084 = vor.u32 1.1754944e-38, %v4083
  %v4085 = vsel %vm4082, %v4084, %v4080
  %v4086 = vmul.f32 1.0, %v4085
  %v4087 = vrcp.pop %v4071
  %v4088 = vmul.f32 %v4071, %v4087
  %v4089 = vsub.f32 1.0, %v4088
  %v4090 = vmul.f32 %v4087, %v4089
  %v4091 = vadd.f32 %v4087, %v4090
  %vm4092 = vweird.f32 %v4071
  %vm4093 = vweird.f32 %v4087
  %vm4094 = vmor %vm4092, %vm4093
  %v4095 = vsel %vm4094, %v4087, %v4091
  %v4096 = vand.u32 2147483647, %v4071
  %vm4097 = vcmp.eq.f32.partialorder %v4096, 8.507059e+37
  %v4098 = vand.u32 %v4071, 2147483648
  %v4099 = vor.u32 1.1754944e-38, %v4098
  %v4100 = vsel %vm4097, %v4099, %v4095
  %v4101 = vmul.f32 1.0, %v4100
  %v4102 = vtanh.pop %v4042
  %v4103 = vtanh.pop %v4043
  %4106 = vrot.lane.b32.xlu0 %v4102, 64
  %v4107 = vpop.permute.xlu0 %4106
  %4108 = vrot.lane.b32.xlu0 %v4103, 64
  %v4109 = vpop.permute.xlu0 %4108
  %v4112 = vmul.f32 %v4086, %v4107
  %v4113 = vmul.f32 %v4101, %v4109
  %4116 = vrot.lane.b32.xlu0 %v4112, 32
  %v4117 = vpop.permute.xlu0 %4116
  %4118 = vrot.lane.b32.xlu0 %v4113, 32
  %v4119 = vpop.permute.xlu0 %4118
  %4122 = vst.msk [vmem:[#allocation5 + $0x60] sm:$0xff] %vm227, %v4117
  %4123 = vst.msk [vmem:[#allocation5 + $0x68] sm:$0xff] %vm227, %v4119
  %v4124 = vld [vmem:[#allocation3 + $0x70] sm:$0xff]
  %v4125 = vld [vmem:[#allocation3 + $0x78] sm:$0xff]
  %v4126 = vsel %vm227, %v4117, 0
  %v4128 = vsel %vm227, %v4119, 0
  %4130 = vmatpush.msra.mxu0 0.0
  %4131 = vmatpush.msra.mxu0 0.0
  %4132 = vmatpush.msra.mxu0 0.0
  %4133 = vmatpush.msra.mxu0 0.0
  %4134 = vmatpush.msra.mxu0 0.0
  %4135 = vmatpush.msra.mxu0 0.0
  %4136 = vmatpush.msra.mxu0 0.0
  %4137 = vmatpush.msra.mxu0 0.0
  %4138 = vmatpush.msra.mxu0 0.0
  %4139 = vmatpush.msra.mxu0 0.0
  %4140 = vmatpush.msra.mxu0 0.0
  %4141 = vmatpush.msra.mxu0 0.0
  %4142 = vmatpush.msra.mxu0 %v2522
  %4143 = vmatpush.msra.mxu0 %v2521
  %4144 = vmatpush.msra.mxu0 %v2520
  %4145 = vmatpush.msra.mxu0 %v2519
  %4146 = vmatmul.f32.gmra.mxu0 %v4126
  %v4147 = vpop.f32.mrf.mxu0
  %v4148 = vadd.f32 0.0, %v4147
  %4149 = vmatmul.f32.gmra.mxu0 %v4128
  %v4150 = vpop.f32.mrf.mxu0
  %v4151 = vadd.f32 0.0, %v4150
  %4152 = vdwg.mxu0
  %v4153 = vadd.f32 %v4124, %v4148
  %v4154 = vadd.f32 %v4125, %v4151
  %v4155 = vadd.f32 %v4153, %v2553
  %v4156 = vadd.f32 %v4154, %v2553
  %v4157 = vmul.f32 %v2557, %v4047
  %v4158 = vmul.f32 %v2557, %v4049
  %v4159 = vadd.f32 %v4155, %v4157
  %v4160 = vadd.f32 %v4156, %v4158
  %v4161 = vxor.u32 %v4159, 2147483648
  %v4162 = vxor.u32 %v4160, 2147483648
  %v4163 = vmul.f32 %v4161, 1.442695
  %v4164 = vpow.pop %v4163
  %v4165 = vmul.f32 %v4162, 1.442695
  %v4166 = vpow.pop %v4165
  %v4167 = vadd.f32 %v4164, 1.0
  %v4168 = vadd.f32 %v4166, 1.0
  %v4169 = vrcp.pop %v4167
  %v4170 = vmul.f32 %v4167, %v4169
  %v4171 = vsub.f32 1.0, %v4170
  %v4172 = vmul.f32 %v4169, %v4171
  %v4173 = vadd.f32 %v4169, %v4172
  %vm4174 = vweird.f32 %v4167
  %vm4175 = vweird.f32 %v4169
  %vm4176 = vmor %vm4174, %vm4175
  %v4177 = vsel %vm4176, %v4169, %v4173
  %v4178 = vand.u32 2147483647, %v4167
  %vm4179 = vcmp.eq.f32.partialorder %v4178, 8.507059e+37
  %v4180 = vand.u32 %v4167, 2147483648
  %v4181 = vor.u32 1.1754944e-38, %v4180
  %v4182 = vsel %vm4179, %v4181, %v4177
  %v4183 = vmul.f32 1.0, %v4182
  %v4184 = vrcp.pop %v4168
  %v4185 = vmul.f32 %v4168, %v4184
  %v4186 = vsub.f32 1.0, %v4185
  %v4187 = vmul.f32 %v4184, %v4186
  %v4188 = vadd.f32 %v4184, %v4187
  %vm4189 = vweird.f32 %v4168
  %vm4190 = vweird.f32 %v4184
  %vm4191 = vmor %vm4189, %vm4190
  %v4192 = vsel %vm4191, %v4184, %v4188
  %v4193 = vand.u32 2147483647, %v4168
  %vm4194 = vcmp.eq.f32.partialorder %v4193, 8.507059e+37
  %v4195 = vand.u32 %v4168, 2147483648
  %v4196 = vor.u32 1.1754944e-38, %v4195
  %v4197 = vsel %vm4194, %v4196, %v4192
  %v4198 = vmul.f32 1.0, %v4197
  %v4199 = vmul.f32 %v2599, %v4047
  %v4200 = vmul.f32 %v2599, %v4049
  %4203 = vrot.lane.b32.xlu0 %v4199, 32
  %v4204 = vpop.permute.xlu0 %4203
  %4205 = vrot.lane.b32.xlu0 %v4200, 32
  %v4206 = vpop.permute.xlu0 %4205
  %v4209 = vadd.f32 %v4155, %v4204
  %v4210 = vadd.f32 %v4156, %v4206
  %v4211 = vxor.u32 %v4209, 2147483648
  %v4212 = vxor.u32 %v4210, 2147483648
  %v4213 = vmul.f32 %v4211, 1.442695
  %v4214 = vpow.pop %v4213
  %v4215 = vmul.f32 %v4212, 1.442695
  %v4216 = vpow.pop %v4215
  %v4217 = vadd.f32 %v4214, 1.0
  %v4218 = vadd.f32 %v4216, 1.0
  %v4219 = vrcp.pop %v4217
  %v4220 = vmul.f32 %v4217, %v4219
  %v4221 = vsub.f32 1.0, %v4220
  %v4222 = vmul.f32 %v4219, %v4221
  %v4223 = vadd.f32 %v4219, %v4222
  %vm4224 = vweird.f32 %v4217
  %vm4225 = vweird.f32 %v4219
  %vm4226 = vmor %vm4224, %vm4225
  %v4227 = vsel %vm4226, %v4219, %v4223
  %v4228 = vand.u32 2147483647, %v4217
  %vm4229 = vcmp.eq.f32.partialorder %v4228, 8.507059e+37
  %v4230 = vand.u32 %v4217, 2147483648
  %v4231 = vor.u32 1.1754944e-38, %v4230
  %v4232 = vsel %vm4229, %v4231, %v4227
  %v4233 = vmul.f32 1.0, %v4232
  %v4234 = vrcp.pop %v4218
  %v4235 = vmul.f32 %v4218, %v4234
  %v4236 = vsub.f32 1.0, %v4235
  %v4237 = vmul.f32 %v4234, %v4236
  %v4238 = vadd.f32 %v4234, %v4237
  %vm4239 = vweird.f32 %v4218
  %vm4240 = vweird.f32 %v4234
  %vm4241 = vmor %vm4239, %vm4240
  %v4242 = vsel %vm4241, %v4234, %v4238
  %v4243 = vand.u32 2147483647, %v4218
  %vm4244 = vcmp.eq.f32.partialorder %v4243, 8.507059e+37
  %v4245 = vand.u32 %v4218, 2147483648
  %v4246 = vor.u32 1.1754944e-38, %v4245
  %v4247 = vsel %vm4244, %v4246, %v4242
  %v4248 = vmul.f32 1.0, %v4247
  %v4249 = vtanh.pop %v4155
  %v4250 = vtanh.pop %v4156
  %v4251 = vmul.f32 %v4233, %v4042
  %v4252 = vmul.f32 %v4248, %v4043
  %4255 = vrot.lane.b32.xlu0 %v4249, 64
  %v4256 = vpop.permute.xlu0 %4255
  %4257 = vrot.lane.b32.xlu0 %v4250, 64
  %v4258 = vpop.permute.xlu0 %4257
  %v4261 = vmul.f32 %v4183, %v4256
  %v4262 = vmul.f32 %v4198, %v4258
  %4265 = vrot.lane.b32.xlu0 %v4261, 32
  %v4266 = vpop.permute.xlu0 %4265
  %4267 = vrot.lane.b32.xlu0 %v4262, 32
  %v4268 = vpop.permute.xlu0 %4267
  %v4271 = vadd.f32 %v4251, %v4266
  %v4272 = vadd.f32 %v4252, %v4268
  %4275 = vrot.lane.b32.xlu0 %v4271, 96
  %v4276 = vpop.permute.xlu0 %4275
  %4277 = vrot.lane.b32.xlu0 %v4272, 96
  %v4278 = vpop.permute.xlu0 %4277
  %v4281 = vmul.f32 %v2669, %v4276
  %v4282 = vmul.f32 %v2669, %v4278
  %4285 = vrot.lane.b32.xlu0 %v4281, 96
  %v4286 = vpop.permute.xlu0 %4285
  %4287 = vrot.lane.b32.xlu0 %v4282, 96
  %v4288 = vpop.permute.xlu0 %4287
  %v4291 = vadd.f32 %v4155, %v4286
  %v4292 = vadd.f32 %v4156, %v4288
  %v4293 = vxor.u32 %v4291, 2147483648
  %v4294 = vxor.u32 %v4292, 2147483648
  %v4295 = vmul.f32 %v4293, 1.442695
  %v4296 = vpow.pop %v4295
  %v4297 = vmul.f32 %v4294, 1.442695
  %v4298 = vpow.pop %v4297
  %v4299 = vadd.f32 %v4296, 1.0
  %v4300 = vadd.f32 %v4298, 1.0
  %v4301 = vrcp.pop %v4299
  %v4302 = vmul.f32 %v4299, %v4301
  %v4303 = vsub.f32 1.0, %v4302
  %v4304 = vmul.f32 %v4301, %v4303
  %v4305 = vadd.f32 %v4301, %v4304
  %vm4306 = vweird.f32 %v4299
  %vm4307 = vweird.f32 %v4301
  %vm4308 = vmor %vm4306, %vm4307
  %v4309 = vsel %vm4308, %v4301, %v4305
  %v4310 = vand.u32 2147483647, %v4299
  %vm4311 = vcmp.eq.f32.partialorder %v4310, 8.507059e+37
  %v4312 = vand.u32 %v4299, 2147483648
  %v4313 = vor.u32 1.1754944e-38, %v4312
  %v4314 = vsel %vm4311, %v4313, %v4309
  %v4315 = vmul.f32 1.0, %v4314
  %v4316 = vrcp.pop %v4300
  %v4317 = vmul.f32 %v4300, %v4316
  %v4318 = vsub.f32 1.0, %v4317
  %v4319 = vmul.f32 %v4316, %v4318
  %v4320 = vadd.f32 %v4316, %v4319
  %vm4321 = vweird.f32 %v4300
  %vm4322 = vweird.f32 %v4316
  %vm4323 = vmor %vm4321, %vm4322
  %v4324 = vsel %vm4323, %v4316, %v4320
  %v4325 = vand.u32 2147483647, %v4300
  %vm4326 = vcmp.eq.f32.partialorder %v4325, 8.507059e+37
  %v4327 = vand.u32 %v4300, 2147483648
  %v4328 = vor.u32 1.1754944e-38, %v4327
  %v4329 = vsel %vm4326, %v4328, %v4324
  %v4330 = vmul.f32 1.0, %v4329
  %v4331 = vtanh.pop %v4271
  %v4332 = vtanh.pop %v4272
  %4335 = vrot.lane.b32.xlu0 %v4331, 64
  %v4336 = vpop.permute.xlu0 %4335
  %4337 = vrot.lane.b32.xlu0 %v4332, 64
  %v4338 = vpop.permute.xlu0 %4337
  %v4341 = vmul.f32 %v4315, %v4336
  %v4342 = vmul.f32 %v4330, %v4338
  %4345 = vrot.lane.b32.xlu0 %v4341, 32
  %v4346 = vpop.permute.xlu0 %4345
  %4347 = vrot.lane.b32.xlu0 %v4342, 32
  %v4348 = vpop.permute.xlu0 %4347
  %4351 = vst.msk [vmem:[#allocation5 + $0x70] sm:$0xff] %vm227, %v4346
  %4352 = vst.msk [vmem:[#allocation5 + $0x78] sm:$0xff] %vm227, %v4348
  %v4353 = vld [vmem:[#allocation5] sm:$0xff]
  %v4354 = vld [vmem:[#allocation5 + $0x8] sm:$0xff]
  %v4355 = vld [vmem:[#allocation5 + $0x10] sm:$0xff]
  %v4356 = vld [vmem:[#allocation5 + $0x18] sm:$0xff]
  %v4357 = vld [vmem:[#allocation5 + $0x20] sm:$0xff]
  %v4358 = vld [vmem:[#allocation5 + $0x28] sm:$0xff]
  %v4359 = vld [vmem:[#allocation5 + $0x30] sm:$0xff]
  %v4360 = vld [vmem:[#allocation5 + $0x38] sm:$0xff]
  %v4361 = vld [vmem:[#allocation5 + $0x40] sm:$0xff]
  %v4362 = vld [vmem:[#allocation5 + $0x48] sm:$0xff]
  %v4363 = vld [vmem:[#allocation5 + $0x50] sm:$0xff]
  %v4364 = vld [vmem:[#allocation5 + $0x58] sm:$0xff]
  %v4365 = vld [vmem:[#allocation5 + $0x60] sm:$0xff]
  %v4366 = vld [vmem:[#allocation5 + $0x68] sm:$0xff]
  %v4367 = vld [vmem:[#allocation5 + $0x70] sm:$0xff]
  %v4368 = vld [vmem:[#allocation5 + $0x78] sm:$0xff]
  %v4369 = vld [vmem:[%s15] sm:$0x1]
  %v4370 = vld [vmem:[%s16] sm:$0x1]
  %v4371 = vld [vmem:[%s17] sm:$0xff]
  %v4372 = vld [vmem:[%s17 + $0x8] sm:$0xff]
  %v4373 = vld [vmem:[%s17 + $0x10] sm:$0xff]
  %v4374 = vld [vmem:[%s17 + $0x18] sm:$0xff]
  %v4375 = vld [vmem:[%s18] sm:$0x1]
  %v4376 = vld [vmem:[%s19] sm:$0xff]
  %v4377 = vld [vmem:[%s19 + $0x8] sm:$0xff]
  %v4378 = vld [vmem:[%s19 + $0x10] sm:$0x3]
  %v4379 = vld [vmem:[%s20] sm:$0x1]
  %v4380 = vtanh.pop %v4353
  %v4381 = vtanh.pop %v4354
  %v4382 = vtanh.pop %v4355
  %v4383 = vtanh.pop %v4356
  %v4384 = vtanh.pop %v4357
  %v4385 = vtanh.pop %v4358
  %v4386 = vtanh.pop %v4359
  %v4387 = vtanh.pop %v4360
  %v4388 = vtanh.pop %v4361
  %v4389 = vtanh.pop %v4362
  %v4390 = vtanh.pop %v4363
  %v4391 = vtanh.pop %v4364
  %v4392 = vtanh.pop %v4365
  %v4393 = vtanh.pop %v4366
  %v4394 = vtanh.pop %v4367
  %v4395 = vtanh.pop %v4368
  %v4397 = vperm.slane %v4369, 0
  %v4399 = vmul.f32 %v4380, %v4397
  %v4400 = vmul.f32 %v4381, %v4397
  %v4401 = vmul.f32 %v4382, %v4397
  %v4402 = vmul.f32 %v4383, %v4397
  %v4403 = vmul.f32 %v4384, %v4397
  %v4404 = vmul.f32 %v4385, %v4397
  %v4405 = vmul.f32 %v4386, %v4397
  %v4406 = vmul.f32 %v4387, %v4397
  %v4407 = vmul.f32 %v4388, %v4397
  %v4408 = vmul.f32 %v4389, %v4397
  %v4409 = vmul.f32 %v4390, %v4397
  %v4410 = vmul.f32 %v4391, %v4397
  %v4411 = vmul.f32 %v4392, %v4397
  %v4412 = vmul.f32 %v4393, %v4397
  %v4413 = vmul.f32 %v4394, %v4397
  %v4414 = vmul.f32 %v4395, %v4397
  %v4416 = vperm.slane %v4370, 0
  %v4418 = vadd.f32 %v4399, %v4416
  %v4419 = vadd.f32 %v4400, %v4416
  %v4420 = vadd.f32 %v4401, %v4416
  %v4421 = vadd.f32 %v4402, %v4416
  %v4422 = vadd.f32 %v4403, %v4416
  %v4423 = vadd.f32 %v4404, %v4416
  %v4424 = vadd.f32 %v4405, %v4416
  %v4425 = vadd.f32 %v4406, %v4416
  %v4426 = vadd.f32 %v4407, %v4416
  %v4427 = vadd.f32 %v4408, %v4416
  %v4428 = vadd.f32 %v4409, %v4416
  %v4429 = vadd.f32 %v4410, %v4416
  %v4430 = vadd.f32 %v4411, %v4416
  %v4431 = vadd.f32 %v4412, %v4416
  %v4432 = vadd.f32 %v4413, %v4416
  %v4433 = vadd.f32 %v4414, %v4416
  %v4435 = vperm.slane %v4375, 0
  %v4438 = vsel %vm227, %v4418, 0
  %v4441 = vsel %vm227, %v4419, 0
  %v4444 = vsel %vm227, %v4420, 0
  %v4447 = vsel %vm227, %v4421, 0
  %v4450 = vsel %vm227, %v4422, 0
  %v4453 = vsel %vm227, %v4423, 0
  %v4456 = vsel %vm227, %v4424, 0
  %v4459 = vsel %vm227, %v4425, 0
  %v4462 = vsel %vm227, %v4426, 0
  %v4465 = vsel %vm227, %v4427, 0
  %v4468 = vsel %vm227, %v4428, 0
  %v4471 = vsel %vm227, %v4429, 0
  %v4474 = vsel %vm227, %v4430, 0
  %v4477 = vsel %vm227, %v4431, 0
  %v4480 = vsel %vm227, %v4432, 0
  %v4483 = vsel %vm227, %v4433, 0
  %4485 = vmatpush.msra.mxu0 0.0
  %4486 = vmatpush.msra.mxu0 0.0
  %4487 = vmatpush.msra.mxu0 0.0
  %4488 = vmatpush.msra.mxu0 0.0
  %4489 = vmatpush.msra.mxu0 0.0
  %4490 = vmatpush.msra.mxu0 0.0
  %4491 = vmatpush.msra.mxu0 0.0
  %4492 = vmatpush.msra.mxu0 0.0
  %4493 = vmatpush.msra.mxu0 0.0
  %4494 = vmatpush.msra.mxu0 0.0
  %4495 = vmatpush.msra.mxu0 0.0
  %4496 = vmatpush.msra.mxu0 0.0
  %4497 = vmatpush.msra.mxu0 %v4374
  %4498 = vmatpush.msra.mxu0 %v4373
  %4499 = vmatpush.msra.mxu0 %v4372
  %4500 = vmatpush.msra.mxu0 %v4371
  %4501 = vmatmul.f32.gmra.mxu0 %v4438
  %v4502 = vpop.f32.mrf.mxu0
  %v4503 = vadd.f32 %v4435, %v4502
  %4504 = vmatmul.f32.gmra.mxu0 %v4441
  %v4505 = vpop.f32.mrf.mxu0
  %v4506 = vadd.f32 %v4435, %v4505
  %4507 = vmatmul.f32.gmra.mxu0 %v4444
  %v4508 = vpop.f32.mrf.mxu0
  %v4509 = vadd.f32 %v4435, %v4508
  %4510 = vmatmul.f32.gmra.mxu0 %v4447
  %v4511 = vpop.f32.mrf.mxu0
  %v4512 = vadd.f32 %v4435, %v4511
  %4513 = vmatmul.f32.gmra.mxu0 %v4450
  %v4514 = vpop.f32.mrf.mxu0
  %v4515 = vadd.f32 %v4435, %v4514
  %4516 = vmatmul.f32.gmra.mxu0 %v4453
  %v4517 = vpop.f32.mrf.mxu0
  %v4518 = vadd.f32 %v4435, %v4517
  %4519 = vmatmul.f32.gmra.mxu0 %v4456
  %v4520 = vpop.f32.mrf.mxu0
  %v4521 = vadd.f32 %v4435, %v4520
  %4522 = vmatmul.f32.gmra.mxu0 %v4459
  %v4523 = vpop.f32.mrf.mxu0
  %v4524 = vadd.f32 %v4435, %v4523
  %4525 = vmatmul.f32.gmra.mxu0 %v4462
  %v4526 = vpop.f32.mrf.mxu0
  %v4527 = vadd.f32 %v4435, %v4526
  %4528 = vmatmul.f32.gmra.mxu0 %v4465
  %v4529 = vpop.f32.mrf.mxu0
  %v4530 = vadd.f32 %v4435, %v4529
  %4531 = vmatmul.f32.gmra.mxu0 %v4468
  %v4532 = vpop.f32.mrf.mxu0
  %v4533 = vadd.f32 %v4435, %v4532
  %4534 = vmatmul.f32.gmra.mxu0 %v4471
  %v4535 = vpop.f32.mrf.mxu0
  %v4536 = vadd.f32 %v4435, %v4535
  %4537 = vmatmul.f32.gmra.mxu0 %v4474
  %v4538 = vpop.f32.mrf.mxu0
  %v4539 = vadd.f32 %v4435, %v4538
  %4540 = vmatmul.f32.gmra.mxu0 %v4477
  %v4541 = vpop.f32.mrf.mxu0
  %v4542 = vadd.f32 %v4435, %v4541
  %4543 = vmatmul.f32.gmra.mxu0 %v4480
  %v4544 = vpop.f32.mrf.mxu0
  %v4545 = vadd.f32 %v4435, %v4544
  %4546 = vmatmul.f32.gmra.mxu0 %v4483
  %v4547 = vpop.f32.mrf.mxu0
  %v4548 = vadd.f32 %v4435, %v4547
  %4549 = vdwg.mxu0
  %v4550 = vmax.f32 %v4503, 0.0
  %v4551 = vmax.f32 %v4506, 0.0
  %v4552 = vmax.f32 %v4509, 0.0
  %v4553 = vmax.f32 %v4512, 0.0
  %v4554 = vmax.f32 %v4515, 0.0
  %v4555 = vmax.f32 %v4518, 0.0
  %v4556 = vmax.f32 %v4521, 0.0
  %v4557 = vmax.f32 %v4524, 0.0
  %v4558 = vmax.f32 %v4527, 0.0
  %v4559 = vmax.f32 %v4530, 0.0
  %v4560 = vmax.f32 %v4533, 0.0
  %v4561 = vmax.f32 %v4536, 0.0
  %v4562 = vmax.f32 %v4539, 0.0
  %v4563 = vmax.f32 %v4542, 0.0
  %v4564 = vmax.f32 %v4545, 0.0
  %v4565 = vmax.f32 %v4548, 0.0
  %v4567 = vperm.slane %v4379, 0
  %vm4569 = vcmask 146432
  %v4571 = vsel %vm4569, %v4550, 0
  %v4574 = vsel %vm4569, %v4551, 0
  %v4577 = vsel %vm4569, %v4552, 0
  %v4580 = vsel %vm4569, %v4553, 0
  %v4583 = vsel %vm4569, %v4554, 0
  %v4586 = vsel %vm4569, %v4555, 0
  %v4589 = vsel %vm4569, %v4556, 0
  %v4592 = vsel %vm4569, %v4557, 0
  %v4595 = vsel %vm4569, %v4558, 0
  %v4598 = vsel %vm4569, %v4559, 0
  %v4601 = vsel %vm4569, %v4560, 0
  %v4604 = vsel %vm4569, %v4561, 0
  %v4607 = vsel %vm4569, %v4562, 0
  %v4610 = vsel %vm4569, %v4563, 0
  %v4613 = vsel %vm4569, %v4564, 0
  %v4616 = vsel %vm4569, %v4565, 0
  %vm4618 = vcmask 1041408
  %v4620 = vsel %vm4618, %v4378, 0
  %4622 = vmatpush.msra.mxu0 0.0
  %4623 = vmatpush.msra.mxu0 0.0
  %4624 = vmatpush.msra.mxu0 0.0
  %4625 = vmatpush.msra.mxu0 0.0
  %4626 = vmatpush.msra.mxu0 0.0
  %4627 = vmatpush.msra.mxu0 0.0
  %4628 = vmatpush.msra.mxu0 0.0
  %4629 = vmatpush.msra.mxu0 0.0
  %4630 = vmatpush.msra.mxu0 0.0
  %4631 = vmatpush.msra.mxu0 0.0
  %4632 = vmatpush.msra.mxu0 0.0
  %4633 = vmatpush.msra.mxu0 0.0
  %4634 = vmatpush.msra.mxu0 0.0
  %4635 = vmatpush.msra.mxu0 %v4620
  %4636 = vmatpush.msra.mxu0 %v4377
  %4637 = vmatpush.msra.mxu0 %v4376
  %4638 = vmatmul.f32.gmra.mxu0 %v4571
  %v4639 = vpop.f32.mrf.mxu0
  %v4640 = vadd.f32 %v4567, %v4639
  %4641 = vmatmul.f32.gmra.mxu0 %v4574
  %v4642 = vpop.f32.mrf.mxu0
  %v4643 = vadd.f32 %v4567, %v4642
  %4644 = vmatmul.f32.gmra.mxu0 %v4577
  %v4645 = vpop.f32.mrf.mxu0
  %v4646 = vadd.f32 %v4567, %v4645
  %4647 = vmatmul.f32.gmra.mxu0 %v4580
  %v4648 = vpop.f32.mrf.mxu0
  %v4649 = vadd.f32 %v4567, %v4648
  %4650 = vmatmul.f32.gmra.mxu0 %v4583
  %v4651 = vpop.f32.mrf.mxu0
  %v4652 = vadd.f32 %v4567, %v4651
  %4653 = vmatmul.f32.gmra.mxu0 %v4586
  %v4654 = vpop.f32.mrf.mxu0
  %v4655 = vadd.f32 %v4567, %v4654
  %4656 = vmatmul.f32.gmra.mxu0 %v4589
  %v4657 = vpop.f32.mrf.mxu0
  %v4658 = vadd.f32 %v4567, %v4657
  %4659 = vmatmul.f32.gmra.mxu0 %v4592
  %v4660 = vpop.f32.mrf.mxu0
  %v4661 = vadd.f32 %v4567, %v4660
  %4662 = vmatmul.f32.gmra.mxu0 %v4595
  %v4663 = vpop.f32.mrf.mxu0
  %v4664 = vadd.f32 %v4567, %v4663
  %4665 = vmatmul.f32.gmra.mxu0 %v4598
  %v4666 = vpop.f32.mrf.mxu0
  %v4667 = vadd.f32 %v4567, %v4666
  %4668 = vmatmul.f32.gmra.mxu0 %v4601
  %v4669 = vpop.f32.mrf.mxu0
  %v4670 = vadd.f32 %v4567, %v4669
  %4671 = vmatmul.f32.gmra.mxu0 %v4604
  %v4672 = vpop.f32.mrf.mxu0
  %v4673 = vadd.f32 %v4567, %v4672
  %4674 = vmatmul.f32.gmra.mxu0 %v4607
  %v4675 = vpop.f32.mrf.mxu0
  %v4676 = vadd.f32 %v4567, %v4675
  %4677 = vmatmul.f32.gmra.mxu0 %v4610
  %v4678 = vpop.f32.mrf.mxu0
  %v4679 = vadd.f32 %v4567, %v4678
  %4680 = vmatmul.f32.gmra.mxu0 %v4613
  %v4681 = vpop.f32.mrf.mxu0
  %v4682 = vadd.f32 %v4567, %v4681
  %4683 = vmatmul.f32.gmra.mxu0 %v4616
  %v4684 = vpop.f32.mrf.mxu0
  %v4685 = vadd.f32 %v4567, %v4684
  %4686 = vdwg.mxu0
  %v4687 = vxor.u32 %v4640, 2147483648
  %v4688 = vxor.u32 %v4643, 2147483648
  %v4689 = vxor.u32 %v4646, 2147483648
  %v4690 = vxor.u32 %v4649, 2147483648
  %v4691 = vxor.u32 %v4652, 2147483648
  %v4692 = vxor.u32 %v4655, 2147483648
  %v4693 = vxor.u32 %v4658, 2147483648
  %v4694 = vxor.u32 %v4661, 2147483648
  %v4695 = vxor.u32 %v4664, 2147483648
  %v4696 = vxor.u32 %v4667, 2147483648
  %v4697 = vxor.u32 %v4670, 2147483648
  %v4698 = vxor.u32 %v4673, 2147483648
  %v4699 = vxor.u32 %v4676, 2147483648
  %v4700 = vxor.u32 %v4679, 2147483648
  %v4701 = vxor.u32 %v4682, 2147483648
  %v4702 = vxor.u32 %v4685, 2147483648
  %v4703 = vmul.f32 %v4687, 1.442695
  %v4704 = vpow.pop %v4703
  %v4705 = vmul.f32 %v4688, 1.442695
  %v4706 = vpow.pop %v4705
  %v4707 = vmul.f32 %v4689, 1.442695
  %v4708 = vpow.pop %v4707
  %v4709 = vmul.f32 %v4690, 1.442695
  %v4710 = vpow.pop %v4709
  %v4711 = vmul.f32 %v4691, 1.442695
  %v4712 = vpow.pop %v4711
  %v4713 = vmul.f32 %v4692, 1.442695
  %v4714 = vpow.pop %v4713
  %v4715 = vmul.f32 %v4693, 1.442695
  %v4716 = vpow.pop %v4715
  %v4717 = vmul.f32 %v4694, 1.442695
  %v4718 = vpow.pop %v4717
  %v4719 = vmul.f32 %v4695, 1.442695
  %v4720 = vpow.pop %v4719
  %v4721 = vmul.f32 %v4696, 1.442695
  %v4722 = vpow.pop %v4721
  %v4723 = vmul.f32 %v4697, 1.442695
  %v4724 = vpow.pop %v4723
  %v4725 = vmul.f32 %v4698, 1.442695
  %v4726 = vpow.pop %v4725
  %v4727 = vmul.f32 %v4699, 1.442695
  %v4728 = vpow.pop %v4727
  %v4729 = vmul.f32 %v4700, 1.442695
  %v4730 = vpow.pop %v4729
  %v4731 = vmul.f32 %v4701, 1.442695
  %v4732 = vpow.pop %v4731
  %v4733 = vmul.f32 %v4702, 1.442695
  %v4734 = vpow.pop %v4733
  %v4735 = vadd.f32 %v4704, 1.0
  %v4736 = vadd.f32 %v4706, 1.0
  %v4737 = vadd.f32 %v4708, 1.0
  %v4738 = vadd.f32 %v4710, 1.0
  %v4739 = vadd.f32 %v4712, 1.0
  %v4740 = vadd.f32 %v4714, 1.0
  %v4741 = vadd.f32 %v4716, 1.0
  %v4742 = vadd.f32 %v4718, 1.0
  %v4743 = vadd.f32 %v4720, 1.0
  %v4744 = vadd.f32 %v4722, 1.0
  %v4745 = vadd.f32 %v4724, 1.0
  %v4746 = vadd.f32 %v4726, 1.0
  %v4747 = vadd.f32 %v4728, 1.0
  %v4748 = vadd.f32 %v4730, 1.0
  %v4749 = vadd.f32 %v4732, 1.0
  %v4750 = vadd.f32 %v4734, 1.0
  %v4751 = vrcp.pop %v4735
  %v4752 = vmul.f32 %v4735, %v4751
  %v4753 = vsub.f32 1.0, %v4752
  %v4754 = vmul.f32 %v4751, %v4753
  %v4755 = vadd.f32 %v4751, %v4754
  %vm4756 = vweird.f32 %v4735
  %vm4757 = vweird.f32 %v4751
  %vm4758 = vmor %vm4756, %vm4757
  %v4759 = vsel %vm4758, %v4751, %v4755
  %v4760 = vand.u32 2147483647, %v4735
  %vm4761 = vcmp.eq.f32.partialorder %v4760, 8.507059e+37
  %v4762 = vand.u32 %v4735, 2147483648
  %v4763 = vor.u32 1.1754944e-38, %v4762
  %v4764 = vsel %vm4761, %v4763, %v4759
  %v4765 = vmul.f32 1.0, %v4764
  %v4766 = vrcp.pop %v4736
  %v4767 = vmul.f32 %v4736, %v4766
  %v4768 = vsub.f32 1.0, %v4767
  %v4769 = vmul.f32 %v4766, %v4768
  %v4770 = vadd.f32 %v4766, %v4769
  %vm4771 = vweird.f32 %v4736
  %vm4772 = vweird.f32 %v4766
  %vm4773 = vmor %vm4771, %vm4772
  %v4774 = vsel %vm4773, %v4766, %v4770
  %v4775 = vand.u32 2147483647, %v4736
  %vm4776 = vcmp.eq.f32.partialorder %v4775, 8.507059e+37
  %v4777 = vand.u32 %v4736, 2147483648
  %v4778 = vor.u32 1.1754944e-38, %v4777
  %v4779 = vsel %vm4776, %v4778, %v4774
  %v4780 = vmul.f32 1.0, %v4779
  %v4781 = vrcp.pop %v4737
  %v4782 = vmul.f32 %v4737, %v4781
  %v4783 = vsub.f32 1.0, %v4782
  %v4784 = vmul.f32 %v4781, %v4783
  %v4785 = vadd.f32 %v4781, %v4784
  %vm4786 = vweird.f32 %v4737
  %vm4787 = vweird.f32 %v4781
  %vm4788 = vmor %vm4786, %vm4787
  %v4789 = vsel %vm4788, %v4781, %v4785
  %v4790 = vand.u32 2147483647, %v4737
  %vm4791 = vcmp.eq.f32.partialorder %v4790, 8.507059e+37
  %v4792 = vand.u32 %v4737, 2147483648
  %v4793 = vor.u32 1.1754944e-38, %v4792
  %v4794 = vsel %vm4791, %v4793, %v4789
  %v4795 = vmul.f32 1.0, %v4794
  %v4796 = vrcp.pop %v4738
  %v4797 = vmul.f32 %v4738, %v4796
  %v4798 = vsub.f32 1.0, %v4797
  %v4799 = vmul.f32 %v4796, %v4798
  %v4800 = vadd.f32 %v4796, %v4799
  %vm4801 = vweird.f32 %v4738
  %vm4802 = vweird.f32 %v4796
  %vm4803 = vmor %vm4801, %vm4802
  %v4804 = vsel %vm4803, %v4796, %v4800
  %v4805 = vand.u32 2147483647, %v4738
  %vm4806 = vcmp.eq.f32.partialorder %v4805, 8.507059e+37
  %v4807 = vand.u32 %v4738, 2147483648
  %v4808 = vor.u32 1.1754944e-38, %v4807
  %v4809 = vsel %vm4806, %v4808, %v4804
  %v4810 = vmul.f32 1.0, %v4809
  %v4811 = vrcp.pop %v4739
  %v4812 = vmul.f32 %v4739, %v4811
  %v4813 = vsub.f32 1.0, %v4812
  %v4814 = vmul.f32 %v4811, %v4813
  %v4815 = vadd.f32 %v4811, %v4814
  %vm4816 = vweird.f32 %v4739
  %vm4817 = vweird.f32 %v4811
  %vm4818 = vmor %vm4816, %vm4817
  %v4819 = vsel %vm4818, %v4811, %v4815
  %v4820 = vand.u32 2147483647, %v4739
  %vm4821 = vcmp.eq.f32.partialorder %v4820, 8.507059e+37
  %v4822 = vand.u32 %v4739, 2147483648
  %v4823 = vor.u32 1.1754944e-38, %v4822
  %v4824 = vsel %vm4821, %v4823, %v4819
  %v4825 = vmul.f32 1.0, %v4824
  %v4826 = vrcp.pop %v4740
  %v4827 = vmul.f32 %v4740, %v4826
  %v4828 = vsub.f32 1.0, %v4827
  %v4829 = vmul.f32 %v4826, %v4828
  %v4830 = vadd.f32 %v4826, %v4829
  %vm4831 = vweird.f32 %v4740
  %vm4832 = vweird.f32 %v4826
  %vm4833 = vmor %vm4831, %vm4832
  %v4834 = vsel %vm4833, %v4826, %v4830
  %v4835 = vand.u32 2147483647, %v4740
  %vm4836 = vcmp.eq.f32.partialorder %v4835, 8.507059e+37
  %v4837 = vand.u32 %v4740, 2147483648
  %v4838 = vor.u32 1.1754944e-38, %v4837
  %v4839 = vsel %vm4836, %v4838, %v4834
  %v4840 = vmul.f32 1.0, %v4839
  %v4841 = vrcp.pop %v4741
  %v4842 = vmul.f32 %v4741, %v4841
  %v4843 = vsub.f32 1.0, %v4842
  %v4844 = vmul.f32 %v4841, %v4843
  %v4845 = vadd.f32 %v4841, %v4844
  %vm4846 = vweird.f32 %v4741
  %vm4847 = vweird.f32 %v4841
  %vm4848 = vmor %vm4846, %vm4847
  %v4849 = vsel %vm4848, %v4841, %v4845
  %v4850 = vand.u32 2147483647, %v4741
  %vm4851 = vcmp.eq.f32.partialorder %v4850, 8.507059e+37
  %v4852 = vand.u32 %v4741, 2147483648
  %v4853 = vor.u32 1.1754944e-38, %v4852
  %v4854 = vsel %vm4851, %v4853, %v4849
  %v4855 = vmul.f32 1.0, %v4854
  %v4856 = vrcp.pop %v4742
  %v4857 = vmul.f32 %v4742, %v4856
  %v4858 = vsub.f32 1.0, %v4857
  %v4859 = vmul.f32 %v4856, %v4858
  %v4860 = vadd.f32 %v4856, %v4859
  %vm4861 = vweird.f32 %v4742
  %vm4862 = vweird.f32 %v4856
  %vm4863 = vmor %vm4861, %vm4862
  %v4864 = vsel %vm4863, %v4856, %v4860
  %v4865 = vand.u32 2147483647, %v4742
  %vm4866 = vcmp.eq.f32.partialorder %v4865, 8.507059e+37
  %v4867 = vand.u32 %v4742, 2147483648
  %v4868 = vor.u32 1.1754944e-38, %v4867
  %v4869 = vsel %vm4866, %v4868, %v4864
  %v4870 = vmul.f32 1.0, %v4869
  %v4871 = vrcp.pop %v4743
  %v4872 = vmul.f32 %v4743, %v4871
  %v4873 = vsub.f32 1.0, %v4872
  %v4874 = vmul.f32 %v4871, %v4873
  %v4875 = vadd.f32 %v4871, %v4874
  %vm4876 = vweird.f32 %v4743
  %vm4877 = vweird.f32 %v4871
  %vm4878 = vmor %vm4876, %vm4877
  %v4879 = vsel %vm4878, %v4871, %v4875
  %v4880 = vand.u32 2147483647, %v4743
  %vm4881 = vcmp.eq.f32.partialorder %v4880, 8.507059e+37
  %v4882 = vand.u32 %v4743, 2147483648
  %v4883 = vor.u32 1.1754944e-38, %v4882
  %v4884 = vsel %vm4881, %v4883, %v4879
  %v4885 = vmul.f32 1.0, %v4884
  %v4886 = vrcp.pop %v4744
  %v4887 = vmul.f32 %v4744, %v4886
  %v4888 = vsub.f32 1.0, %v4887
  %v4889 = vmul.f32 %v4886, %v4888
  %v4890 = vadd.f32 %v4886, %v4889
  %vm4891 = vweird.f32 %v4744
  %vm4892 = vweird.f32 %v4886
  %vm4893 = vmor %vm4891, %vm4892
  %v4894 = vsel %vm4893, %v4886, %v4890
  %v4895 = vand.u32 2147483647, %v4744
  %vm4896 = vcmp.eq.f32.partialorder %v4895, 8.507059e+37
  %v4897 = vand.u32 %v4744, 2147483648
  %v4898 = vor.u32 1.1754944e-38, %v4897
  %v4899 = vsel %vm4896, %v4898, %v4894
  %v4900 = vmul.f32 1.0, %v4899
  %v4901 = vrcp.pop %v4745
  %v4902 = vmul.f32 %v4745, %v4901
  %v4903 = vsub.f32 1.0, %v4902
  %v4904 = vmul.f32 %v4901, %v4903
  %v4905 = vadd.f32 %v4901, %v4904
  %vm4906 = vweird.f32 %v4745
  %vm4907 = vweird.f32 %v4901
  %vm4908 = vmor %vm4906, %vm4907
  %v4909 = vsel %vm4908, %v4901, %v4905
  %v4910 = vand.u32 2147483647, %v4745
  %vm4911 = vcmp.eq.f32.partialorder %v4910, 8.507059e+37
  %v4912 = vand.u32 %v4745, 2147483648
  %v4913 = vor.u32 1.1754944e-38, %v4912
  %v4914 = vsel %vm4911, %v4913, %v4909
  %v4915 = vmul.f32 1.0, %v4914
  %v4916 = vrcp.pop %v4746
  %v4917 = vmul.f32 %v4746, %v4916
  %v4918 = vsub.f32 1.0, %v4917
  %v4919 = vmul.f32 %v4916, %v4918
  %v4920 = vadd.f32 %v4916, %v4919
  %vm4921 = vweird.f32 %v4746
  %vm4922 = vweird.f32 %v4916
  %vm4923 = vmor %vm4921, %vm4922
  %v4924 = vsel %vm4923, %v4916, %v4920
  %v4925 = vand.u32 2147483647, %v4746
  %vm4926 = vcmp.eq.f32.partialorder %v4925, 8.507059e+37
  %v4927 = vand.u32 %v4746, 2147483648
  %v4928 = vor.u32 1.1754944e-38, %v4927
  %v4929 = vsel %vm4926, %v4928, %v4924
  %v4930 = vmul.f32 1.0, %v4929
  %v4931 = vrcp.pop %v4747
  %v4932 = vmul.f32 %v4747, %v4931
  %v4933 = vsub.f32 1.0, %v4932
  %v4934 = vmul.f32 %v4931, %v4933
  %v4935 = vadd.f32 %v4931, %v4934
  %vm4936 = vweird.f32 %v4747
  %vm4937 = vweird.f32 %v4931
  %vm4938 = vmor %vm4936, %vm4937
  %v4939 = vsel %vm4938, %v4931, %v4935
  %v4940 = vand.u32 2147483647, %v4747
  %vm4941 = vcmp.eq.f32.partialorder %v4940, 8.507059e+37
  %v4942 = vand.u32 %v4747, 2147483648
  %v4943 = vor.u32 1.1754944e-38, %v4942
  %v4944 = vsel %vm4941, %v4943, %v4939
  %v4945 = vmul.f32 1.0, %v4944
  %v4946 = vrcp.pop %v4748
  %v4947 = vmul.f32 %v4748, %v4946
  %v4948 = vsub.f32 1.0, %v4947
  %v4949 = vmul.f32 %v4946, %v4948
  %v4950 = vadd.f32 %v4946, %v4949
  %vm4951 = vweird.f32 %v4748
  %vm4952 = vweird.f32 %v4946
  %vm4953 = vmor %vm4951, %vm4952
  %v4954 = vsel %vm4953, %v4946, %v4950
  %v4955 = vand.u32 2147483647, %v4748
  %vm4956 = vcmp.eq.f32.partialorder %v4955, 8.507059e+37
  %v4957 = vand.u32 %v4748, 2147483648
  %v4958 = vor.u32 1.1754944e-38, %v4957
  %v4959 = vsel %vm4956, %v4958, %v4954
  %v4960 = vmul.f32 1.0, %v4959
  %v4961 = vrcp.pop %v4749
  %v4962 = vmul.f32 %v4749, %v4961
  %v4963 = vsub.f32 1.0, %v4962
  %v4964 = vmul.f32 %v4961, %v4963
  %v4965 = vadd.f32 %v4961, %v4964
  %vm4966 = vweird.f32 %v4749
  %vm4967 = vweird.f32 %v4961
  %vm4968 = vmor %vm4966, %vm4967
  %v4969 = vsel %vm4968, %v4961, %v4965
  %v4970 = vand.u32 2147483647, %v4749
  %vm4971 = vcmp.eq.f32.partialorder %v4970, 8.507059e+37
  %v4972 = vand.u32 %v4749, 2147483648
  %v4973 = vor.u32 1.1754944e-38, %v4972
  %v4974 = vsel %vm4971, %v4973, %v4969
  %v4975 = vmul.f32 1.0, %v4974
  %v4976 = vrcp.pop %v4750
  %v4977 = vmul.f32 %v4750, %v4976
  %v4978 = vsub.f32 1.0, %v4977
  %v4979 = vmul.f32 %v4976, %v4978
  %v4980 = vadd.f32 %v4976, %v4979
  %vm4981 = vweird.f32 %v4750
  %vm4982 = vweird.f32 %v4976
  %vm4983 = vmor %vm4981, %vm4982
  %v4984 = vsel %vm4983, %v4976, %v4980
  %v4985 = vand.u32 2147483647, %v4750
  %vm4986 = vcmp.eq.f32.partialorder %v4985, 8.507059e+37
  %v4987 = vand.u32 %v4750, 2147483648
  %v4988 = vor.u32 1.1754944e-38, %v4987
  %v4989 = vsel %vm4986, %v4988, %v4984
  %v4990 = vmul.f32 1.0, %v4989
  %4991 = vst.msk [vmem:[%s21] sm:$0xff] %vm85, %v4765
  %4992 = vst.msk [vmem:[%s21 + $0x8] sm:$0xff] %vm85, %v4780
  %4993 = vst.msk [vmem:[%s21 + $0x10] sm:$0xff] %vm85, %v4795
  %4994 = vst.msk [vmem:[%s21 + $0x18] sm:$0xff] %vm85, %v4810
  %4995 = vst.msk [vmem:[%s21 + $0x20] sm:$0xff] %vm85, %v4825
  %4996 = vst.msk [vmem:[%s21 + $0x28] sm:$0xff] %vm85, %v4840
  %4997 = vst.msk [vmem:[%s21 + $0x30] sm:$0xff] %vm85, %v4855
  %4998 = vst.msk [vmem:[%s21 + $0x38] sm:$0xff] %vm85, %v4870
  %4999 = vst.msk [vmem:[%s21 + $0x40] sm:$0xff] %vm85, %v4885
  %5000 = vst.msk [vmem:[%s21 + $0x48] sm:$0xff] %vm85, %v4900
  %5001 = vst.msk [vmem:[%s21 + $0x50] sm:$0xff] %vm85, %v4915
  %5002 = vst.msk [vmem:[%s21 + $0x58] sm:$0xff] %vm85, %v4930
  %5003 = vst.msk [vmem:[%s21 + $0x60] sm:$0xff] %vm85, %v4945
  %5004 = vst.msk [vmem:[%s21 + $0x68] sm:$0xff] %vm85, %v4960
  %5005 = vst.msk [vmem:[%s21 + $0x70] sm:$0xff] %vm85, %v4975
  %5006 = vst.msk [vmem:[%s21 + $0x78] sm:$0xff] %vm85, %v4990
  // Predicated region
  $region86: #{tpu_custom_call.1} parent=0 // pred_check
    _
  $region87: #{tpu_custom_call.1} parent=0 // pred_check_branch
    %5008 = sbr.rel (0) target = $region89
  $region88: #{tpu_custom_call.1} parent=0 // pred_region
    _
  $region89: #{tpu_custom_call.1} parent=0 // pred_fallthru
    _
  // Predicated region
  $region90: #{tpu_custom_call.1} parent=0 // pred_check
    _
  $region91: #{tpu_custom_call.1} parent=0 // pred_check_branch
    %5010 = sbr.rel (0) target = $region93
  $region92: #{tpu_custom_call.1} parent=0 // pred_region
    _
  $region93: #{tpu_custom_call.1} parent=0 // pred_fallthru
    _

</llo_original>
